<compile_context>
chip_gen: v6e
topology: v6e:2x2x1
jax: 0.10.0
libtpu: 0.0.40
codegen_flags: <defaults>
</compile_context>

<pallas_src>
import functools

import jax
import jax.numpy as jnp
from jax import lax
from jax.experimental import pallas as pl
from jax.experimental.pallas import tpu as pltpu


def _round_up(x, m):
    return (x + m - 1) // m * m


def make_vamp_kernel(*, B_true, B_pad, N_true, N_pad, Lc, R, K, n_layers,
                     noise_var, eta_dim, sparsity, sig2t0,
                     sym_re, sym_im,
                     var_ratio_min=1e-5, var_min=1e-9, var_max=1e5,
                     use_bf16=False, use_gauss=True):
    """Builds ONE pallas_call that runs all n_layers VAMPLayer.forward steps."""
    f32 = jnp.float32
    mxu = jnp.bfloat16 if use_bf16 else jnp.float32
    var_ratio_max = 1.0 - var_ratio_min
    inv_BN = 1.0 / float(B_true * N_true)
    sym_re = tuple(float(v) for v in sym_re)
    sym_im = tuple(float(v) for v in sym_im)

    # ---- trace-time constellation analysis (symbols are config constants) ---
    mods = [c * c + d * d for c, d in zip(sym_re, sym_im)]
    const_modulus = (max(mods) - min(mods)) < 1e-6          # e.g. any PSK
    # antipodal pairs: |score(sym)| == |score(-sym)|, so the softmax stabilizer
    # max only needs one representative symbol per +/- pair.
    reps, used = [], [False] * K
    for k in range(K):
        if used[k]:
            continue
        used[k] = True
        reps.append(k)
        for j in range(k + 1, K):
            if (not used[j] and abs(sym_re[j] + sym_re[k]) < 1e-6
                    and abs(sym_im[j] + sym_im[k]) < 1e-6):
                used[j] = True
                break

    dot = functools.partial(lax.dot_general, preferred_element_type=f32)
    # (B,Npad)x(R,Npad)->(B,R)  and  (B,Lc)x(Npad,Lc)->(B,Npad): contract 1/1
    dn_11 = (((1,), (1,)), ((), ()))
    # (B,R)x(R,Npad)->(B,Npad)  and  (B,Npad)x(Npad,Lc)->(B,Lc): contract 1/0
    dn_10 = (((1,), (0,)), ((), ()))

    n_vh = 4 if use_gauss else 2
    n_in = n_vh + 5

    def kernel(*refs):
        vh = refs[:n_vh]                    # (R, N_pad) planes, dtype = mxu
        s2_ref, yt_re_ref, yt_im_ref, seg_ref, vmask_ref = refs[n_vh:n_in]
        (xm_re_out, xm_im_out, var_out,
         r_re_out, r_im_out, sig2t_out) = refs[n_in:]

        vmask = vmask_ref[...]              # (B_pad, N_pad) in {0, 1}
        s2 = s2_ref[...]                    # (1, R)
        yt_re = yt_re_ref[...]              # (B_pad, R), zero on padded rows
        yt_im = yt_im_ref[...]
        seg = seg_ref[...]                  # (N_pad, Lc) segment one-hot

        def cmv_vh(ar, ai):
            """q = Vh @ (ar + i*ai), row layout (B_pad, R)."""
            if use_gauss:
                t1 = dot(ar.astype(mxu), vh[0][...], dn_11)
                t2 = dot(ai.astype(mxu), vh[1][...], dn_11)
                t3 = dot((ar + ai).astype(mxu), vh[2][...], dn_11)   # Vr + Vi
                return t1 - t2, t3 - t1 - t2
            a, b = ar.astype(mxu), ai.astype(mxu)
            vr, vi = vh[0][...], vh[1][...]
            return (dot(a, vr, dn_11) - dot(b, vi, dn_11),
                    dot(a, vi, dn_11) + dot(b, vr, dn_11))

        def cmv_v(zr, zi):
            """V @ (zr + i*zi) with V = conj(Vh)^T, row layout (B_pad, N_pad)."""
            if use_gauss:
                u1 = dot(zr.astype(mxu), vh[0][...], dn_10)
                u2 = dot(zi.astype(mxu), vh[1][...], dn_10)
                u3 = dot((zr + zi).astype(mxu), vh[3][...], dn_10)   # Vr - Vi
                return u1 + u2, u3 - u1 + u2
            a, b = zr.astype(mxu), zi.astype(mxu)
            vr, vi = vh[0][...], vh[1][...]
            return (dot(a, vr, dn_10) + dot(b, vi, dn_10),
                    dot(b, vr, dn_10) - dot(a, vi, dn_10))

        def layer(_, carry):
            rt_re, rt_im, sigma2_tilde = carry[0], carry[1], carry[2]
            var_ratio = noise_var / sigma2_tilde

            # --- LMMSE stage ------------------------------------------------
            q_re, q_im = cmv_vh(rt_re, rt_im)
            scale = 1.0 / (s2 + var_ratio)                        # (1, R)
            xt_re = scale * (yt_re + var_ratio * q_re)
            xt_im = scale * (yt_im + var_ratio * q_im)
            var_lmmse = jnp.mean(scale) * noise_var

            u_re, u_im = cmv_v(xt_re - q_re, xt_im - q_im)
            xt2_re = u_re + rt_re
            xt2_im = u_im + rt_im

            x_tilde_var = eta_dim * var_lmmse + (1.0 - eta_dim) * sigma2_tilde
            alpha = jnp.clip(x_tilde_var / sigma2_tilde,
                             var_ratio_min, var_ratio_max)
            inv_1ma = 1.0 / (1.0 - alpha)
            r_re = (xt2_re - alpha * rt_re) * inv_1ma
            r_im = (xt2_im - alpha * rt_im) * inv_1ma
            sigma2 = jnp.clip(alpha * inv_1ma * sigma2_tilde, var_min, var_max)

            # --- segmented denoiser (online over K symbols, scores cached) ---
            inv_sigma2 = 1.0 / sigma2
            rs_re = r_re * inv_sigma2
            rs_im = r_im * inv_sigma2
            scores = [rs_re * sym_re[k] + rs_im * sym_im[k] for k in range(K)]

            # global softmax stabilizer g = max |Re((r/tau) conj(sym_k))|
            # (padded rows/lanes carry r == 0, contributing |0| <= real max)
            rowmax = jnp.zeros((B_pad, N_pad), f32)
            for k in reps:
                rowmax = jnp.maximum(rowmax, jnp.abs(scores[k]))
            g = jnp.max(rowmax)

            eta_k = jnp.zeros((B_pad, N_pad), f32)
            num_re = jnp.zeros((B_pad, N_pad), f32)
            num_im = jnp.zeros((B_pad, N_pad), f32)
            s2e = jnp.zeros((B_pad, N_pad), f32)
            for k in range(K):
                e = jnp.exp(scores[k] - g)
                eta_k = eta_k + e
                num_re = num_re + sym_re[k] * e
                num_im = num_im + sym_im[k] * e
                if not const_modulus:
                    s2e = s2e + mods[k] * e
            if const_modulus:
                s2e = mods[0] * eta_k

            # per-segment sum over the M entries of every segment, broadcast
            # back via a small (N_pad, Lc) one-hot matmul pair.
            eta_seg = dot(eta_k, seg, dn_10)                     # (B_pad, Lc)
            eta2 = dot(eta_seg, seg, dn_11)                      # (B_pad, N_pad)
            # clamp: if a whole segment underflowed (exp(score - g) -> 0), we
            # degrade gracefully to xm = 0 instead of inf/NaN poisoning r_tilde.
            inv_eta2 = 1.0 / jnp.maximum(eta2, 1e-30)

            xm_re = num_re * inv_eta2
            xm_im = num_im * inv_eta2
            xm2 = xm_re * xm_re + xm_im * xm_im
            var0 = xm2 * (1.0 - eta_k * inv_eta2)
            # sum_k |xm - sym_k|^2 e_k via the second-moment identity
            var_s = (xm2 * eta_k
                     - 2.0 * (xm_re * num_re + xm_im * num_im) + s2e) * inv_eta2
            var_m = (var0 + var_s) * vmask        # mask padded rows AND lanes

            # --- Onsager / extrinsic update ----------------------------------
            dxdr = jnp.clip(jnp.sum(var_m) * inv_BN / sigma2,
                            var_ratio_min, var_ratio_max)
            norm = 1.0 / (1.0 - dxdr)
            rtn_re = (xm_re - dxdr * r_re) * norm * vmask
            rtn_im = (xm_im - dxdr * r_im) * norm * vmask
            sig2t_new = jnp.clip(sigma2 * dxdr * norm, var_min, var_max)

            return (rtn_re, rtn_im, sig2t_new,
                    xm_re * vmask, xm_im * vmask, var_m,
                    r_re * vmask, r_im * vmask)

        # Tracker init: r_tilde = sparsity * 1 (on valid entries), sigma2_tilde
        zeros = jnp.zeros((B_pad, N_pad), f32)
        init = (jnp.asarray(sparsity, f32) * vmask, zeros,
                jnp.asarray(sig2t0, f32),
                zeros, zeros, zeros, zeros, zeros)
        final = lax.fori_loop(0, n_layers, layer, init,
                              unroll=True if n_layers <= 8 else False)
        (_, _, sig2t_fin, xm_re_f, xm_im_f, var_f, r_re_f, r_im_f) = final

        xm_re_out[...] = xm_re_f
        xm_im_out[...] = xm_im_f
        var_out[...] = var_f
        r_re_out[...] = r_re_f
        r_im_out[...] = r_im_f
        sig2t_out[...] = jnp.full((1, 1), sig2t_fin, f32)

    # --- explicit scoped-VMEM budget (valid on v5e/v6e/v7x) ------------------
    vh_item = 2 if use_bf16 else 4
    plane = B_pad * N_pad * 4
    need = (n_vh * R * N_pad * vh_item            # resident Vh planes
            + plane * (6 + K + 12)                # I/O planes + carries + temps
            + N_pad * Lc * 4 + 2 * B_pad * R * 4 + 4 * R)
    vmem_limit = int(min(max(2 * need, 16 * 2 ** 20), 64 * 2 ** 20))

    vmem_spec = lambda: pl.BlockSpec(memory_space=pltpu.MemorySpace.VMEM)
    vec_out = jax.ShapeDtypeStruct((B_pad, N_pad), jnp.float32)
    return pl.pallas_call(
        kernel,
        in_specs=[vmem_spec() for _ in range(n_in)],
        out_specs=tuple(vmem_spec() for _ in range(6)),
        out_shape=(vec_out, vec_out, vec_out, vec_out, vec_out,
                   jax.ShapeDtypeStruct((1, 1), jnp.float32)),
        compiler_params=pltpu.CompilerParams(vmem_limit_bytes=vmem_limit),
    )


def vamp_forward(U, s, Vh, y, SNR, x, symbols, *,
                 Nt, Na, Lin, B, K, Nr, n_layers,
                 use_bf16=False, use_gauss=True):
    """VAMP.forward: Tracker init (plain JAX glue) + ONE fused Pallas call."""
    M = Nt // Na
    L = Na * Lin
    N = L * M
    R = s.shape[0]
    E = Na / Nr
    sparsity = float(Na / Nt)
    noise_var = float(E / SNR)
    eta_dim = float(R) / float(N)                  # Tracker.eta = s.size(0)/Vh.size(1)
    sig2t0 = float(sparsity ** 2 * (1 - sparsity) + (1 - sparsity) ** 2 * sparsity)

    f32 = jnp.float32
    mxu = jnp.bfloat16 if use_bf16 else f32
    N_pad = max(_round_up(N, 128), 128)            # lane-dense (B, N) planes
    pad = N_pad - N
    Lc = L + (1 if pad > 0 else 0)                 # +1 dummy segment for padding
    B_pad = _round_up(max(B, 1), 16 if use_bf16 else 8)   # fill the sublanes

    U_re, U_im = jnp.real(U).astype(f32), jnp.imag(U).astype(f32)
    Vh_re, Vh_im = jnp.real(Vh).astype(f32), jnp.imag(Vh).astype(f32)
    y_re, y_im = jnp.real(y).astype(f32), jnp.imag(y).astype(f32)
    s_f = jnp.real(s).astype(f32)
    s2 = (s_f * s_f).reshape(1, R)

    # Tracker init:  y_tilde = s * (U^H @ y)   (row layout (B, R))
    Uh_re, Uh_im = U_re.T, -U_im.T
    uy_re = jnp.einsum('rn,bn->br', Uh_re, y_re) - jnp.einsum('rn,bn->br', Uh_im, y_im)
    uy_im = jnp.einsum('rn,bn->br', Uh_re, y_im) + jnp.einsum('rn,bn->br', Uh_im, y_re)
    yt_re = jnp.pad(s_f[None, :] * uy_re, ((0, B_pad - B), (0, 0)))
    yt_im = jnp.pad(s_f[None, :] * uy_im, ((0, B_pad - B), (0, 0)))

    # zero-padded Vh planes (+ optional Gauss-trick sum/diff planes)
    Vh_re_p = jnp.pad(Vh_re, ((0, 0), (0, pad)))
    Vh_im_p = jnp.pad(Vh_im, ((0, 0), (0, pad)))
    vh_planes = [Vh_re_p.astype(mxu), Vh_im_p.astype(mxu)]
    if use_gauss:
        vh_planes += [(Vh_re_p + Vh_im_p).astype(mxu),
                      (Vh_re_p - Vh_im_p).astype(mxu)]

    # segment one-hot (padded lanes -> dummy segment) + valid (row, lane) mask
    n_idx = jnp.arange(N_pad)
    seg_ids = jnp.where(n_idx < N, n_idx // M, L)
    seg_nl = (seg_ids[:, None] == jnp.arange(Lc)[None, :]).astype(f32)
    vmask = ((jnp.arange(B_pad) < B)[:, None] & (n_idx < N)[None, :]).astype(f32)

    # symbols are static config constants in the module -> bake into the kernel
    sym_re = [float(v) for v in jnp.real(symbols).astype(f32)]
    sym_im = [float(v) for v in jnp.imag(symbols).astype(f32)]

    vamp = make_vamp_kernel(
        B_true=B, B_pad=B_pad, N_true=N, N_pad=N_pad, Lc=Lc, R=R, K=K,
        n_layers=n_layers, noise_var=noise_var, eta_dim=eta_dim,
        sparsity=sparsity, sig2t0=sig2t0, sym_re=sym_re, sym_im=sym_im,
        use_bf16=use_bf16, use_gauss=use_gauss)

    xm_re, xm_im, var, r_re, r_im, sig2t = vamp(
        *vh_planes, s2, yt_re, yt_im, seg_nl, vmask)

    # TODO(synk): the Loss class is not provided in the reference code; return
    # the Tracker outputs (xmmse, var, r, sigma2_tilde, #layers) instead.
    xmmse = (xm_re[:B, :N] + 1j * xm_im[:B, :N]).astype(jnp.complex64).reshape(B, N, 1)
    r = (r_re[:B, :N] + 1j * r_im[:B, :N]).astype(jnp.complex64).reshape(B, N, 1)
    return xmmse, var[:B, :N].reshape(B, N, 1), r, sig2t.reshape(1), n_layers


if __name__ == "__main__":
    # Small config implied by the module: Nt=8, Na=2, Lin=2 -> M=4, L=4, LM=N=16
    Nt, Na, Lin, B, K, Nr, n_layers = 8, 2, 2, 2, 4, 8, 4
    M = Nt // Na
    L = Na * Lin
    N = L * M
    R = min(Nr, N)           # rank of the SVD factors
    SNR = 10.0

    keys = jax.random.split(jax.random.PRNGKey(0), 6)

    def crandn(kk, shape):
        a = jax.random.normal(kk, shape + (2,), dtype=jnp.float32)
        return (a[..., 0] + 1j * a[..., 1]).astype(jnp.complex64) / jnp.sqrt(2.0)

    U = crandn(keys[0], (Nr, R))                       # left singular vectors
    Vh = crandn(keys[1], (R, N))                       # right singular vectors^H
    s = jax.random.uniform(keys[2], (R,), jnp.float32, 0.5, 1.5)   # singular values
    x = crandn(keys[3], (B, N))                        # true signal (shapes only)
    y = crandn(keys[4], (B, Nr))                       # received signal
    theta = 2.0 * jnp.pi * jnp.arange(K, dtype=jnp.float32) / K
    symbols = (jnp.cos(theta) + 1j * jnp.sin(theta)).astype(jnp.complex64)   # QPSK

    xmmse, var, r, sig2t, t_used = vamp_forward(
        U, s, Vh, y, SNR, x, symbols,
        Nt=Nt, Na=Na, Lin=Lin, B=B, K=K, Nr=Nr, n_layers=n_layers)

    jax.block_until_ready((xmmse, var, r, sig2t))
    print("KERNEL_OK")
</pallas_src>

<mosaic_0001>
module attributes {stable_mosaic.version = 11 : i64} {
  func.func @kernel(%arg0: memref<8x128xf32, #tpu.memory_space<vmem>>, %arg1: memref<8x128xf32, #tpu.memory_space<vmem>>, %arg2: memref<8x128xf32, #tpu.memory_space<vmem>>, %arg3: memref<8x128xf32, #tpu.memory_space<vmem>>, %arg4: memref<1x8xf32, #tpu.memory_space<vmem>>, %arg5: memref<8x8xf32, #tpu.memory_space<vmem>>, %arg6: memref<8x8xf32, #tpu.memory_space<vmem>>, %arg7: memref<128x5xf32, #tpu.memory_space<vmem>>, %arg8: memref<8x128xf32, #tpu.memory_space<vmem>>, %arg9: memref<8x128xf32, #tpu.memory_space<vmem>>, %arg10: memref<8x128xf32, #tpu.memory_space<vmem>>, %arg11: memref<8x128xf32, #tpu.memory_space<vmem>>, %arg12: memref<8x128xf32, #tpu.memory_space<vmem>>, %arg13: memref<8x128xf32, #tpu.memory_space<vmem>>, %arg14: memref<1x1xf32, #tpu.memory_space<vmem>>) attributes {dimension_semantics = [], scalar_prefetch = 0 : i64, scratch_operands = 0 : i64, tpu.core_type = #tpu.core_type<tc>} {
    %c0 = arith.constant 0 : index
    %c0_0 = arith.constant 0 : index
    %0 = vector.load %arg8[%c0, %c0_0] : memref<8x128xf32, #tpu.memory_space<vmem>>, vector<8x128xf32>
    %c0_1 = arith.constant 0 : index
    %c0_2 = arith.constant 0 : index
    %1 = vector.load %arg4[%c0_1, %c0_2] : memref<1x8xf32, #tpu.memory_space<vmem>>, vector<1x8xf32>
    %c0_3 = arith.constant 0 : index
    %c0_4 = arith.constant 0 : index
    %2 = vector.load %arg5[%c0_3, %c0_4] : memref<8x8xf32, #tpu.memory_space<vmem>>, vector<8x8xf32>
    %c0_5 = arith.constant 0 : index
    %c0_6 = arith.constant 0 : index
    %3 = vector.load %arg6[%c0_5, %c0_6] : memref<8x8xf32, #tpu.memory_space<vmem>>, vector<8x8xf32>
    %c0_7 = arith.constant 0 : index
    %c0_8 = arith.constant 0 : index
    %4 = vector.load %arg7[%c0_7, %c0_8] : memref<128x5xf32, #tpu.memory_space<vmem>>, vector<128x5xf32>
    %cst = arith.constant 0.000000e+00 : f32
    %5 = vector.broadcast %cst : f32 to vector<8x128xf32>
    %cst_9 = arith.constant 2.500000e-01 : f32
    %6 = vector.broadcast %cst_9 : f32 to vector<8x128xf32>
    %7 = arith.mulf %6, %0 : vector<8x128xf32>
    %cst_10 = arith.constant 1.875000e-01 : f32
    %c0_i32 = arith.constant 0 : i32
    %cst_11 = arith.constant 2.500000e-02 : f32
    %8 = arith.divf %cst_11, %cst_10 : f32
    %c0_12 = arith.constant 0 : index
    %c0_13 = arith.constant 0 : index
    %9 = vector.load %arg0[%c0_12, %c0_13] : memref<8x128xf32, #tpu.memory_space<vmem>>, vector<8x128xf32>
    %cst_14 = arith.constant dense<0.000000e+00> : vector<8x8xf32>
    %10 = tpu.matmul %7, %9, %cst_14 {dimension_numbers = #tpu.dot_dimension_numbers<[1], [1], [0], [0], [0, 0, 1, 0], [], []>} : vector<8x128xf32>, vector<8x128xf32>, vector<8x8xf32> -> vector<8x8xf32>
    %c0_15 = arith.constant 0 : index
    %c0_16 = arith.constant 0 : index
    %11 = vector.load %arg1[%c0_15, %c0_16] : memref<8x128xf32, #tpu.memory_space<vmem>>, vector<8x128xf32>
    %cst_17 = arith.constant dense<0.000000e+00> : vector<8x8xf32>
    %12 = tpu.matmul %5, %11, %cst_17 {dimension_numbers = #tpu.dot_dimension_numbers<[1], [1], [0], [0], [0, 0, 1, 0], [], []>} : vector<8x128xf32>, vector<8x128xf32>, vector<8x8xf32> -> vector<8x8xf32>
    %13 = arith.addf %7, %5 : vector<8x128xf32>
    %c0_18 = arith.constant 0 : index
    %c0_19 = arith.constant 0 : index
    %14 = vector.load %arg2[%c0_18, %c0_19] : memref<8x128xf32, #tpu.memory_space<vmem>>, vector<8x128xf32>
    %cst_20 = arith.constant dense<0.000000e+00> : vector<8x8xf32>
    %15 = tpu.matmul %13, %14, %cst_20 {dimension_numbers = #tpu.dot_dimension_numbers<[1], [1], [0], [0], [0, 0, 1, 0], [], []>} : vector<8x128xf32>, vector<8x128xf32>, vector<8x8xf32> -> vector<8x8xf32>
    %16 = arith.subf %10, %12 : vector<8x8xf32>
    %17 = arith.subf %15, %10 : vector<8x8xf32>
    %18 = arith.subf %17, %12 : vector<8x8xf32>
    %19 = vector.broadcast %8 : f32 to vector<1x8xf32>
    %20 = arith.addf %1, %19 : vector<1x8xf32>
    %cst_21 = arith.constant 1.000000e+00 : f32
    %21 = vector.broadcast %cst_21 : f32 to vector<1x8xf32>
    %22 = arith.divf %21, %20 : vector<1x8xf32>
    %23 = vector.broadcast %8 : f32 to vector<8x8xf32>
    %24 = arith.mulf %23, %16 : vector<8x8xf32>
    %25 = arith.addf %2, %24 : vector<8x8xf32>
    %26 = vector.broadcast %22 : vector<1x8xf32> to vector<8x8xf32>
    %27 = arith.mulf %26, %25 : vector<8x8xf32>
    %28 = vector.broadcast %8 : f32 to vector<8x8xf32>
    %29 = arith.mulf %28, %18 : vector<8x8xf32>
    %30 = arith.addf %3, %29 : vector<8x8xf32>
    %31 = vector.broadcast %22 : vector<1x8xf32> to vector<8x8xf32>
    %32 = arith.mulf %31, %30 : vector<8x8xf32>
    %33 = vector.shape_cast %22 : vector<1x8xf32> to vector<1x1x8xf32>
    %cst_22 = arith.constant dense<0.000000e+00> : vector<1xf32>
    %34 = vector.multi_reduction <add>, %33, %cst_22 [1, 2] : vector<1x1x8xf32> to vector<1xf32>
    %35 = vector.shape_cast %34 : vector<1xf32> to vector<1x1x1xf32>
    %36 = vector.extract %35[0, 0, 0] : f32 from vector<1x1x1xf32>
    %cst_23 = arith.constant 8.000000e+00 : f32
    %37 = arith.divf %36, %cst_23 : f32
    %cst_24 = arith.constant 2.500000e-02 : f32
    %38 = arith.mulf %37, %cst_24 : f32
    %39 = arith.subf %27, %16 : vector<8x8xf32>
    %40 = arith.subf %32, %18 : vector<8x8xf32>
    %c0_25 = arith.constant 0 : index
    %c0_26 = arith.constant 0 : index
    %41 = vector.load %arg0[%c0_25, %c0_26] : memref<8x128xf32, #tpu.memory_space<vmem>>, vector<8x128xf32>
    %cst_27 = arith.constant dense<0.000000e+00> : vector<8x128xf32>
    %42 = tpu.matmul %39, %41, %cst_27 {dimension_numbers = #tpu.dot_dimension_numbers<[1], [0], [0], [1], [0, 0, 1, 1], [], []>} : vector<8x8xf32>, vector<8x128xf32>, vector<8x128xf32> -> vector<8x128xf32>
    %c0_28 = arith.constant 0 : index
    %c0_29 = arith.constant 0 : index
    %43 = vector.load %arg1[%c0_28, %c0_29] : memref<8x128xf32, #tpu.memory_space<vmem>>, vector<8x128xf32>
    %cst_30 = arith.constant dense<0.000000e+00> : vector<8x128xf32>
    %44 = tpu.matmul %40, %43, %cst_30 {dimension_numbers = #tpu.dot_dimension_numbers<[1], [0], [0], [1], [0, 0, 1, 1], [], []>} : vector<8x8xf32>, vector<8x128xf32>, vector<8x128xf32> -> vector<8x128xf32>
    %45 = arith.addf %39, %40 : vector<8x8xf32>
    %c0_31 = arith.constant 0 : index
    %c0_32 = arith.constant 0 : index
    %46 = vector.load %arg3[%c0_31, %c0_32] : memref<8x128xf32, #tpu.memory_space<vmem>>, vector<8x128xf32>
    %cst_33 = arith.constant dense<0.000000e+00> : vector<8x128xf32>
    %47 = tpu.matmul %45, %46, %cst_33 {dimension_numbers = #tpu.dot_dimension_numbers<[1], [0], [0], [1], [0, 0, 1, 1], [], []>} : vector<8x8xf32>, vector<8x128xf32>, vector<8x128xf32> -> vector<8x128xf32>
    %48 = arith.addf %42, %44 : vector<8x128xf32>
    %49 = arith.subf %47, %42 : vector<8x128xf32>
    %50 = arith.addf %49, %44 : vector<8x128xf32>
    %51 = arith.addf %48, %7 : vector<8x128xf32>
    %52 = arith.addf %50, %5 : vector<8x128xf32>
    %cst_34 = arith.constant 5.000000e-01 : f32
    %53 = arith.mulf %cst_34, %38 : f32
    %cst_35 = arith.constant 5.000000e-01 : f32
    %54 = arith.mulf %cst_35, %cst_10 : f32
    %55 = arith.addf %53, %54 : f32
    %56 = arith.divf %55, %cst_10 : f32
    %cst_36 = arith.constant 9.99999974E-6 : f32
    %cst_37 = arith.constant 0.999989986 : f32
    %57 = arith.maximumf %cst_36, %56 : f32
    %58 = arith.minimumf %cst_37, %57 : f32
    %cst_38 = arith.constant 1.000000e+00 : f32
    %59 = arith.subf %cst_38, %58 : f32
    %cst_39 = arith.constant 1.000000e+00 : f32
    %60 = arith.divf %cst_39, %59 : f32
    %61 = vector.broadcast %58 : f32 to vector<8x128xf32>
    %62 = arith.mulf %61, %7 : vector<8x128xf32>
    %63 = arith.subf %51, %62 : vector<8x128xf32>
    %64 = vector.broadcast %60 : f32 to vector<8x128xf32>
    %65 = arith.mulf %63, %64 : vector<8x128xf32>
    %66 = vector.broadcast %58 : f32 to vector<8x128xf32>
    %67 = arith.mulf %66, %5 : vector<8x128xf32>
    %68 = arith.subf %52, %67 : vector<8x128xf32>
    %69 = vector.broadcast %60 : f32 to vector<8x128xf32>
    %70 = arith.mulf %68, %69 : vector<8x128xf32>
    %71 = arith.mulf %58, %60 : f32
    %72 = arith.mulf %71, %cst_10 : f32
    %cst_40 = arith.constant 9.99999971E-10 : f32
    %cst_41 = arith.constant 1.000000e+05 : f32
    %73 = arith.maximumf %cst_40, %72 : f32
    %74 = arith.minimumf %cst_41, %73 : f32
    %cst_42 = arith.constant 1.000000e+00 : f32
    %75 = arith.divf %cst_42, %74 : f32
    %76 = vector.broadcast %75 : f32 to vector<8x128xf32>
    %77 = arith.mulf %65, %76 : vector<8x128xf32>
    %78 = vector.broadcast %75 : f32 to vector<8x128xf32>
    %79 = arith.mulf %70, %78 : vector<8x128xf32>
    %cst_43 = arith.constant 1.000000e+00 : f32
    %80 = vector.broadcast %cst_43 : f32 to vector<8x128xf32>
    %81 = arith.mulf %77, %80 : vector<8x128xf32>
    %cst_44 = arith.constant 0.000000e+00 : f32
    %82 = vector.broadcast %cst_44 : f32 to vector<8x128xf32>
    %83 = arith.mulf %79, %82 : vector<8x128xf32>
    %84 = arith.addf %81, %83 : vector<8x128xf32>
    %cst_45 = arith.constant -4.37113883E-8 : f32
    %85 = vector.broadcast %cst_45 : f32 to vector<8x128xf32>
    %86 = arith.mulf %77, %85 : vector<8x128xf32>
    %cst_46 = arith.constant 1.000000e+00 : f32
    %87 = vector.broadcast %cst_46 : f32 to vector<8x128xf32>
    %88 = arith.mulf %79, %87 : vector<8x128xf32>
    %89 = arith.addf %86, %88 : vector<8x128xf32>
    %cst_47 = arith.constant -1.000000e+00 : f32
    %90 = vector.broadcast %cst_47 : f32 to vector<8x128xf32>
    %91 = arith.mulf %77, %90 : vector<8x128xf32>
    %cst_48 = arith.constant -8.74227765E-8 : f32
    %92 = vector.broadcast %cst_48 : f32 to vector<8x128xf32>
    %93 = arith.mulf %79, %92 : vector<8x128xf32>
    %94 = arith.addf %91, %93 : vector<8x128xf32>
    %cst_49 = arith.constant 1.19248806E-8 : f32
    %95 = vector.broadcast %cst_49 : f32 to vector<8x128xf32>
    %96 = arith.mulf %77, %95 : vector<8x128xf32>
    %cst_50 = arith.constant -1.000000e+00 : f32
    %97 = vector.broadcast %cst_50 : f32 to vector<8x128xf32>
    %98 = arith.mulf %79, %97 : vector<8x128xf32>
    %99 = arith.addf %96, %98 : vector<8x128xf32>
    %cst_51 = arith.constant 0.000000e+00 : f32
    %100 = vector.broadcast %cst_51 : f32 to vector<8x128xf32>
    %101 = math.absf %84 : vector<8x128xf32>
    %102 = arith.maximumf %100, %101 : vector<8x128xf32>
    %103 = math.absf %89 : vector<8x128xf32>
    %104 = arith.maximumf %102, %103 : vector<8x128xf32>
    %105 = vector.shape_cast %104 : vector<8x128xf32> to vector<1x8x128xf32>
    %cst_52 = arith.constant dense<0xFF800000> : vector<1xf32>
    %106 = vector.multi_reduction <maximumf>, %105, %cst_52 [1, 2] : vector<1x8x128xf32> to vector<1xf32>
    %107 = vector.shape_cast %106 : vector<1xf32> to vector<1x1x1xf32>
    %108 = vector.extract %107[0, 0, 0] : f32 from vector<1x1x1xf32>
    %cst_53 = arith.constant 0.000000e+00 : f32
    %109 = vector.broadcast %cst_53 : f32 to vector<8x128xf32>
    %cst_54 = arith.constant 0.000000e+00 : f32
    %110 = vector.broadcast %cst_54 : f32 to vector<8x128xf32>
    %cst_55 = arith.constant 0.000000e+00 : f32
    %111 = vector.broadcast %cst_55 : f32 to vector<8x128xf32>
    %112 = vector.broadcast %108 : f32 to vector<8x128xf32>
    %113 = arith.subf %84, %112 : vector<8x128xf32>
    %114 = math.exp %113 : vector<8x128xf32>
    %115 = arith.addf %109, %114 : vector<8x128xf32>
    %cst_56 = arith.constant 1.000000e+00 : f32
    %116 = vector.broadcast %cst_56 : f32 to vector<8x128xf32>
    %117 = arith.mulf %116, %114 : vector<8x128xf32>
    %118 = arith.addf %110, %117 : vector<8x128xf32>
    %cst_57 = arith.constant 0.000000e+00 : f32
    %119 = vector.broadcast %cst_57 : f32 to vector<8x128xf32>
    %120 = arith.mulf %119, %114 : vector<8x128xf32>
    %121 = arith.addf %111, %120 : vector<8x128xf32>
    %122 = vector.broadcast %108 : f32 to vector<8x128xf32>
    %123 = arith.subf %89, %122 : vector<8x128xf32>
    %124 = math.exp %123 : vector<8x128xf32>
    %125 = arith.addf %115, %124 : vector<8x128xf32>
    %cst_58 = arith.constant -4.37113883E-8 : f32
    %126 = vector.broadcast %cst_58 : f32 to vector<8x128xf32>
    %127 = arith.mulf %126, %124 : vector<8x128xf32>
    %128 = arith.addf %118, %127 : vector<8x128xf32>
    %cst_59 = arith.constant 1.000000e+00 : f32
    %129 = vector.broadcast %cst_59 : f32 to vector<8x128xf32>
    %130 = arith.mulf %129, %124 : vector<8x128xf32>
    %131 = arith.addf %121, %130 : vector<8x128xf32>
    %132 = vector.broadcast %108 : f32 to vector<8x128xf32>
    %133 = arith.subf %94, %132 : vector<8x128xf32>
    %134 = math.exp %133 : vector<8x128xf32>
    %135 = arith.addf %125, %134 : vector<8x128xf32>
    %cst_60 = arith.constant -1.000000e+00 : f32
    %136 = vector.broadcast %cst_60 : f32 to vector<8x128xf32>
    %137 = arith.mulf %136, %134 : vector<8x128xf32>
    %138 = arith.addf %128, %137 : vector<8x128xf32>
    %cst_61 = arith.constant -8.74227765E-8 : f32
    %139 = vector.broadcast %cst_61 : f32 to vector<8x128xf32>
    %140 = arith.mulf %139, %134 : vector<8x128xf32>
    %141 = arith.addf %131, %140 : vector<8x128xf32>
    %142 = vector.broadcast %108 : f32 to vector<8x128xf32>
    %143 = arith.subf %99, %142 : vector<8x128xf32>
    %144 = math.exp %143 : vector<8x128xf32>
    %145 = arith.addf %135, %144 : vector<8x128xf32>
    %cst_62 = arith.constant 1.19248806E-8 : f32
    %146 = vector.broadcast %cst_62 : f32 to vector<8x128xf32>
    %147 = arith.mulf %146, %144 : vector<8x128xf32>
    %148 = arith.addf %138, %147 : vector<8x128xf32>
    %cst_63 = arith.constant -1.000000e+00 : f32
    %149 = vector.broadcast %cst_63 : f32 to vector<8x128xf32>
    %150 = arith.mulf %149, %144 : vector<8x128xf32>
    %151 = arith.addf %141, %150 : vector<8x128xf32>
    %cst_64 = arith.constant 1.000000e+00 : f32
    %152 = vector.broadcast %cst_64 : f32 to vector<8x128xf32>
    %153 = arith.mulf %152, %145 : vector<8x128xf32>
    %cst_65 = arith.constant dense<0.000000e+00> : vector<8x5xf32>
    %154 = tpu.matmul %145, %4, %cst_65 {dimension_numbers = #tpu.dot_dimension_numbers<[1], [0], [0], [1], [0, 0, 1, 1], [], []>} : vector<8x128xf32>, vector<128x5xf32>, vector<8x5xf32> -> vector<8x5xf32>
    %cst_66 = arith.constant dense<0.000000e+00> : vector<8x128xf32>
    %155 = tpu.matmul %154, %4, %cst_66 {dimension_numbers = #tpu.dot_dimension_numbers<[1], [1], [0], [0], [0, 0, 1, 0], [], []>} : vector<8x5xf32>, vector<128x5xf32>, vector<8x128xf32> -> vector<8x128xf32>
    %cst_67 = arith.constant 1.000000e-30 : f32
    %156 = vector.broadcast %cst_67 : f32 to vector<8x128xf32>
    %157 = arith.maximumf %155, %156 : vector<8x128xf32>
    %cst_68 = arith.constant 1.000000e+00 : f32
    %158 = vector.broadcast %cst_68 : f32 to vector<8x128xf32>
    %159 = arith.divf %158, %157 : vector<8x128xf32>
    %160 = arith.mulf %148, %159 : vector<8x128xf32>
    %161 = arith.mulf %151, %159 : vector<8x128xf32>
    %162 = arith.mulf %160, %160 : vector<8x128xf32>
    %163 = arith.mulf %161, %161 : vector<8x128xf32>
    %164 = arith.addf %162, %163 : vector<8x128xf32>
    %165 = arith.mulf %145, %159 : vector<8x128xf32>
    %cst_69 = arith.constant 1.000000e+00 : f32
    %166 = vector.broadcast %cst_69 : f32 to vector<8x128xf32>
    %167 = arith.subf %166, %165 : vector<8x128xf32>
    %168 = arith.mulf %164, %167 : vector<8x128xf32>
    %169 = arith.mulf %164, %145 : vector<8x128xf32>
    %170 = arith.mulf %160, %148 : vector<8x128xf32>
    %171 = arith.mulf %161, %151 : vector<8x128xf32>
    %172 = arith.addf %170, %171 : vector<8x128xf32>
    %cst_70 = arith.constant 2.000000e+00 : f32
    %173 = vector.broadcast %cst_70 : f32 to vector<8x128xf32>
    %174 = arith.mulf %173, %172 : vector<8x128xf32>
    %175 = arith.subf %169, %174 : vector<8x128xf32>
    %176 = arith.addf %175, %153 : vector<8x128xf32>
    %177 = arith.mulf %176, %159 : vector<8x128xf32>
    %178 = arith.addf %168, %177 : vector<8x128xf32>
    %179 = arith.mulf %178, %0 : vector<8x128xf32>
    %180 = vector.shape_cast %179 : vector<8x128xf32> to vector<1x8x128xf32>
    %cst_71 = arith.constant dense<0.000000e+00> : vector<1xf32>
    %181 = vector.multi_reduction <add>, %180, %cst_71 [1, 2] : vector<1x8x128xf32> to vector<1xf32>
    %182 = vector.shape_cast %181 : vector<1xf32> to vector<1x1x1xf32>
    %183 = vector.extract %182[0, 0, 0] : f32 from vector<1x1x1xf32>
    %cst_72 = arith.constant 3.125000e-02 : f32
    %184 = arith.mulf %183, %cst_72 : f32
    %185 = arith.divf %184, %74 : f32
    %cst_73 = arith.constant 9.99999974E-6 : f32
    %cst_74 = arith.constant 0.999989986 : f32
    %186 = arith.maximumf %cst_73, %185 : f32
    %187 = arith.minimumf %cst_74, %186 : f32
    %cst_75 = arith.constant 1.000000e+00 : f32
    %188 = arith.subf %cst_75, %187 : f32
    %cst_76 = arith.constant 1.000000e+00 : f32
    %189 = arith.divf %cst_76, %188 : f32
    %190 = vector.broadcast %187 : f32 to vector<8x128xf32>
    %191 = arith.mulf %190, %65 : vector<8x128xf32>
    %192 = arith.subf %160, %191 : vector<8x128xf32>
    %193 = vector.broadcast %189 : f32 to vector<8x128xf32>
    %194 = arith.mulf %192, %193 : vector<8x128xf32>
    %195 = arith.mulf %194, %0 : vector<8x128xf32>
    %196 = vector.broadcast %187 : f32 to vector<8x128xf32>
    %197 = arith.mulf %196, %70 : vector<8x128xf32>
    %198 = arith.subf %161, %197 : vector<8x128xf32>
    %199 = vector.broadcast %189 : f32 to vector<8x128xf32>
    %200 = arith.mulf %198, %199 : vector<8x128xf32>
    %201 = arith.mulf %200, %0 : vector<8x128xf32>
    %202 = arith.mulf %74, %187 : f32
    %203 = arith.mulf %202, %189 : f32
    %cst_77 = arith.constant 9.99999971E-10 : f32
    %cst_78 = arith.constant 1.000000e+05 : f32
    %204 = arith.maximumf %cst_77, %203 : f32
    %205 = arith.minimumf %cst_78, %204 : f32
    %206 = arith.mulf %160, %0 : vector<8x128xf32>
    %207 = arith.mulf %161, %0 : vector<8x128xf32>
    %208 = arith.mulf %65, %0 : vector<8x128xf32>
    %209 = arith.mulf %70, %0 : vector<8x128xf32>
    %c1_i32 = arith.constant 1 : i32
    %cst_79 = arith.constant 2.500000e-02 : f32
    %210 = arith.divf %cst_79, %205 : f32
    %c0_80 = arith.constant 0 : index
    %c0_81 = arith.constant 0 : index
    %211 = vector.load %arg0[%c0_80, %c0_81] : memref<8x128xf32, #tpu.memory_space<vmem>>, vector<8x128xf32>
    %cst_82 = arith.constant dense<0.000000e+00> : vector<8x8xf32>
    %212 = tpu.matmul %195, %211, %cst_82 {dimension_numbers = #tpu.dot_dimension_numbers<[1], [1], [0], [0], [0, 0, 1, 0], [], []>} : vector<8x128xf32>, vector<8x128xf32>, vector<8x8xf32> -> vector<8x8xf32>
    %c0_83 = arith.constant 0 : index
    %c0_84 = arith.constant 0 : index
    %213 = vector.load %arg1[%c0_83, %c0_84] : memref<8x128xf32, #tpu.memory_space<vmem>>, vector<8x128xf32>
    %cst_85 = arith.constant dense<0.000000e+00> : vector<8x8xf32>
    %214 = tpu.matmul %201, %213, %cst_85 {dimension_numbers = #tpu.dot_dimension_numbers<[1], [1], [0], [0], [0, 0, 1, 0], [], []>} : vector<8x128xf32>, vector<8x128xf32>, vector<8x8xf32> -> vector<8x8xf32>
    %215 = arith.addf %195, %201 : vector<8x128xf32>
    %c0_86 = arith.constant 0 : index
    %c0_87 = arith.constant 0 : index
    %216 = vector.load %arg2[%c0_86, %c0_87] : memref<8x128xf32, #tpu.memory_space<vmem>>, vector<8x128xf32>
    %cst_88 = arith.constant dense<0.000000e+00> : vector<8x8xf32>
    %217 = tpu.matmul %215, %216, %cst_88 {dimension_numbers = #tpu.dot_dimension_numbers<[1], [1], [0], [0], [0, 0, 1, 0], [], []>} : vector<8x128xf32>, vector<8x128xf32>, vector<8x8xf32> -> vector<8x8xf32>
    %218 = arith.subf %212, %214 : vector<8x8xf32>
    %219 = arith.subf %217, %212 : vector<8x8xf32>
    %220 = arith.subf %219, %214 : vector<8x8xf32>
    %221 = vector.broadcast %210 : f32 to vector<1x8xf32>
    %222 = arith.addf %1, %221 : vector<1x8xf32>
    %cst_89 = arith.constant 1.000000e+00 : f32
    %223 = vector.broadcast %cst_89 : f32 to vector<1x8xf32>
    %224 = arith.divf %223, %222 : vector<1x8xf32>
    %225 = vector.broadcast %210 : f32 to vector<8x8xf32>
    %226 = arith.mulf %225, %218 : vector<8x8xf32>
    %227 = arith.addf %2, %226 : vector<8x8xf32>
    %228 = vector.broadcast %224 : vector<1x8xf32> to vector<8x8xf32>
    %229 = arith.mulf %228, %227 : vector<8x8xf32>
    %230 = vector.broadcast %210 : f32 to vector<8x8xf32>
    %231 = arith.mulf %230, %220 : vector<8x8xf32>
    %232 = arith.addf %3, %231 : vector<8x8xf32>
    %233 = vector.broadcast %224 : vector<1x8xf32> to vector<8x8xf32>
    %234 = arith.mulf %233, %232 : vector<8x8xf32>
    %235 = vector.shape_cast %224 : vector<1x8xf32> to vector<1x1x8xf32>
    %cst_90 = arith.constant dense<0.000000e+00> : vector<1xf32>
    %236 = vector.multi_reduction <add>, %235, %cst_90 [1, 2] : vector<1x1x8xf32> to vector<1xf32>
    %237 = vector.shape_cast %236 : vector<1xf32> to vector<1x1x1xf32>
    %238 = vector.extract %237[0, 0, 0] : f32 from vector<1x1x1xf32>
    %cst_91 = arith.constant 8.000000e+00 : f32
    %239 = arith.divf %238, %cst_91 : f32
    %cst_92 = arith.constant 2.500000e-02 : f32
    %240 = arith.mulf %239, %cst_92 : f32
    %241 = arith.subf %229, %218 : vector<8x8xf32>
    %242 = arith.subf %234, %220 : vector<8x8xf32>
    %c0_93 = arith.constant 0 : index
    %c0_94 = arith.constant 0 : index
    %243 = vector.load %arg0[%c0_93, %c0_94] : memref<8x128xf32, #tpu.memory_space<vmem>>, vector<8x128xf32>
    %cst_95 = arith.constant dense<0.000000e+00> : vector<8x128xf32>
    %244 = tpu.matmul %241, %243, %cst_95 {dimension_numbers = #tpu.dot_dimension_numbers<[1], [0], [0], [1], [0, 0, 1, 1], [], []>} : vector<8x8xf32>, vector<8x128xf32>, vector<8x128xf32> -> vector<8x128xf32>
    %c0_96 = arith.constant 0 : index
    %c0_97 = arith.constant 0 : index
    %245 = vector.load %arg1[%c0_96, %c0_97] : memref<8x128xf32, #tpu.memory_space<vmem>>, vector<8x128xf32>
    %cst_98 = arith.constant dense<0.000000e+00> : vector<8x128xf32>
    %246 = tpu.matmul %242, %245, %cst_98 {dimension_numbers = #tpu.dot_dimension_numbers<[1], [0], [0], [1], [0, 0, 1, 1], [], []>} : vector<8x8xf32>, vector<8x128xf32>, vector<8x128xf32> -> vector<8x128xf32>
    %247 = arith.addf %241, %242 : vector<8x8xf32>
    %c0_99 = arith.constant 0 : index
    %c0_100 = arith.constant 0 : index
    %248 = vector.load %arg3[%c0_99, %c0_100] : memref<8x128xf32, #tpu.memory_space<vmem>>, vector<8x128xf32>
    %cst_101 = arith.constant dense<0.000000e+00> : vector<8x128xf32>
    %249 = tpu.matmul %247, %248, %cst_101 {dimension_numbers = #tpu.dot_dimension_numbers<[1], [0], [0], [1], [0, 0, 1, 1], [], []>} : vector<8x8xf32>, vector<8x128xf32>, vector<8x128xf32> -> vector<8x128xf32>
    %250 = arith.addf %244, %246 : vector<8x128xf32>
    %251 = arith.subf %249, %244 : vector<8x128xf32>
    %252 = arith.addf %251, %246 : vector<8x128xf32>
    %253 = arith.addf %250, %195 : vector<8x128xf32>
    %254 = arith.addf %252, %201 : vector<8x128xf32>
    %cst_102 = arith.constant 5.000000e-01 : f32
    %255 = arith.mulf %cst_102, %240 : f32
    %cst_103 = arith.constant 5.000000e-01 : f32
    %256 = arith.mulf %cst_103, %205 : f32
    %257 = arith.addf %255, %256 : f32
    %258 = arith.divf %257, %205 : f32
    %cst_104 = arith.constant 9.99999974E-6 : f32
    %cst_105 = arith.constant 0.999989986 : f32
    %259 = arith.maximumf %cst_104, %258 : f32
    %260 = arith.minimumf %cst_105, %259 : f32
    %cst_106 = arith.constant 1.000000e+00 : f32
    %261 = arith.subf %cst_106, %260 : f32
    %cst_107 = arith.constant 1.000000e+00 : f32
    %262 = arith.divf %cst_107, %261 : f32
    %263 = vector.broadcast %260 : f32 to vector<8x128xf32>
    %264 = arith.mulf %263, %195 : vector<8x128xf32>
    %265 = arith.subf %253, %264 : vector<8x128xf32>
    %266 = vector.broadcast %262 : f32 to vector<8x128xf32>
    %267 = arith.mulf %265, %266 : vector<8x128xf32>
    %268 = vector.broadcast %260 : f32 to vector<8x128xf32>
    %269 = arith.mulf %268, %201 : vector<8x128xf32>
    %270 = arith.subf %254, %269 : vector<8x128xf32>
    %271 = vector.broadcast %262 : f32 to vector<8x128xf32>
    %272 = arith.mulf %270, %271 : vector<8x128xf32>
    %273 = arith.mulf %260, %262 : f32
    %274 = arith.mulf %273, %205 : f32
    %cst_108 = arith.constant 9.99999971E-10 : f32
    %cst_109 = arith.constant 1.000000e+05 : f32
    %275 = arith.maximumf %cst_108, %274 : f32
    %276 = arith.minimumf %cst_109, %275 : f32
    %cst_110 = arith.constant 1.000000e+00 : f32
    %277 = arith.divf %cst_110, %276 : f32
    %278 = vector.broadcast %277 : f32 to vector<8x128xf32>
    %279 = arith.mulf %267, %278 : vector<8x128xf32>
    %280 = vector.broadcast %277 : f32 to vector<8x128xf32>
    %281 = arith.mulf %272, %280 : vector<8x128xf32>
    %cst_111 = arith.constant 1.000000e+00 : f32
    %282 = vector.broadcast %cst_111 : f32 to vector<8x128xf32>
    %283 = arith.mulf %279, %282 : vector<8x128xf32>
    %cst_112 = arith.constant 0.000000e+00 : f32
    %284 = vector.broadcast %cst_112 : f32 to vector<8x128xf32>
    %285 = arith.mulf %281, %284 : vector<8x128xf32>
    %286 = arith.addf %283, %285 : vector<8x128xf32>
    %cst_113 = arith.constant -4.37113883E-8 : f32
    %287 = vector.broadcast %cst_113 : f32 to vector<8x128xf32>
    %288 = arith.mulf %279, %287 : vector<8x128xf32>
    %cst_114 = arith.constant 1.000000e+00 : f32
    %289 = vector.broadcast %cst_114 : f32 to vector<8x128xf32>
    %290 = arith.mulf %281, %289 : vector<8x128xf32>
    %291 = arith.addf %288, %290 : vector<8x128xf32>
    %cst_115 = arith.constant -1.000000e+00 : f32
    %292 = vector.broadcast %cst_115 : f32 to vector<8x128xf32>
    %293 = arith.mulf %279, %292 : vector<8x128xf32>
    %cst_116 = arith.constant -8.74227765E-8 : f32
    %294 = vector.broadcast %cst_116 : f32 to vector<8x128xf32>
    %295 = arith.mulf %281, %294 : vector<8x128xf32>
    %296 = arith.addf %293, %295 : vector<8x128xf32>
    %cst_117 = arith.constant 1.19248806E-8 : f32
    %297 = vector.broadcast %cst_117 : f32 to vector<8x128xf32>
    %298 = arith.mulf %279, %297 : vector<8x128xf32>
    %cst_118 = arith.constant -1.000000e+00 : f32
    %299 = vector.broadcast %cst_118 : f32 to vector<8x128xf32>
    %300 = arith.mulf %281, %299 : vector<8x128xf32>
    %301 = arith.addf %298, %300 : vector<8x128xf32>
    %cst_119 = arith.constant 0.000000e+00 : f32
    %302 = vector.broadcast %cst_119 : f32 to vector<8x128xf32>
    %303 = math.absf %286 : vector<8x128xf32>
    %304 = arith.maximumf %302, %303 : vector<8x128xf32>
    %305 = math.absf %291 : vector<8x128xf32>
    %306 = arith.maximumf %304, %305 : vector<8x128xf32>
    %307 = vector.shape_cast %306 : vector<8x128xf32> to vector<1x8x128xf32>
    %cst_120 = arith.constant dense<0xFF800000> : vector<1xf32>
    %308 = vector.multi_reduction <maximumf>, %307, %cst_120 [1, 2] : vector<1x8x128xf32> to vector<1xf32>
    %309 = vector.shape_cast %308 : vector<1xf32> to vector<1x1x1xf32>
    %310 = vector.extract %309[0, 0, 0] : f32 from vector<1x1x1xf32>
    %cst_121 = arith.constant 0.000000e+00 : f32
    %311 = vector.broadcast %cst_121 : f32 to vector<8x128xf32>
    %cst_122 = arith.constant 0.000000e+00 : f32
    %312 = vector.broadcast %cst_122 : f32 to vector<8x128xf32>
    %cst_123 = arith.constant 0.000000e+00 : f32
    %313 = vector.broadcast %cst_123 : f32 to vector<8x128xf32>
    %314 = vector.broadcast %310 : f32 to vector<8x128xf32>
    %315 = arith.subf %286, %314 : vector<8x128xf32>
    %316 = math.exp %315 : vector<8x128xf32>
    %317 = arith.addf %311, %316 : vector<8x128xf32>
    %cst_124 = arith.constant 1.000000e+00 : f32
    %318 = vector.broadcast %cst_124 : f32 to vector<8x128xf32>
    %319 = arith.mulf %318, %316 : vector<8x128xf32>
    %320 = arith.addf %312, %319 : vector<8x128xf32>
    %cst_125 = arith.constant 0.000000e+00 : f32
    %321 = vector.broadcast %cst_125 : f32 to vector<8x128xf32>
    %322 = arith.mulf %321, %316 : vector<8x128xf32>
    %323 = arith.addf %313, %322 : vector<8x128xf32>
    %324 = vector.broadcast %310 : f32 to vector<8x128xf32>
    %325 = arith.subf %291, %324 : vector<8x128xf32>
    %326 = math.exp %325 : vector<8x128xf32>
    %327 = arith.addf %317, %326 : vector<8x128xf32>
    %cst_126 = arith.constant -4.37113883E-8 : f32
    %328 = vector.broadcast %cst_126 : f32 to vector<8x128xf32>
    %329 = arith.mulf %328, %326 : vector<8x128xf32>
    %330 = arith.addf %320, %329 : vector<8x128xf32>
    %cst_127 = arith.constant 1.000000e+00 : f32
    %331 = vector.broadcast %cst_127 : f32 to vector<8x128xf32>
    %332 = arith.mulf %331, %326 : vector<8x128xf32>
    %333 = arith.addf %323, %332 : vector<8x128xf32>
    %334 = vector.broadcast %310 : f32 to vector<8x128xf32>
    %335 = arith.subf %296, %334 : vector<8x128xf32>
    %336 = math.exp %335 : vector<8x128xf32>
    %337 = arith.addf %327, %336 : vector<8x128xf32>
    %cst_128 = arith.constant -1.000000e+00 : f32
    %338 = vector.broadcast %cst_128 : f32 to vector<8x128xf32>
    %339 = arith.mulf %338, %336 : vector<8x128xf32>
    %340 = arith.addf %330, %339 : vector<8x128xf32>
    %cst_129 = arith.constant -8.74227765E-8 : f32
    %341 = vector.broadcast %cst_129 : f32 to vector<8x128xf32>
    %342 = arith.mulf %341, %336 : vector<8x128xf32>
    %343 = arith.addf %333, %342 : vector<8x128xf32>
    %344 = vector.broadcast %310 : f32 to vector<8x128xf32>
    %345 = arith.subf %301, %344 : vector<8x128xf32>
    %346 = math.exp %345 : vector<8x128xf32>
    %347 = arith.addf %337, %346 : vector<8x128xf32>
    %cst_130 = arith.constant 1.19248806E-8 : f32
    %348 = vector.broadcast %cst_130 : f32 to vector<8x128xf32>
    %349 = arith.mulf %348, %346 : vector<8x128xf32>
    %350 = arith.addf %340, %349 : vector<8x128xf32>
    %cst_131 = arith.constant -1.000000e+00 : f32
    %351 = vector.broadcast %cst_131 : f32 to vector<8x128xf32>
    %352 = arith.mulf %351, %346 : vector<8x128xf32>
    %353 = arith.addf %343, %352 : vector<8x128xf32>
    %cst_132 = arith.constant 1.000000e+00 : f32
    %354 = vector.broadcast %cst_132 : f32 to vector<8x128xf32>
    %355 = arith.mulf %354, %347 : vector<8x128xf32>
    %cst_133 = arith.constant dense<0.000000e+00> : vector<8x5xf32>
    %356 = tpu.matmul %347, %4, %cst_133 {dimension_numbers = #tpu.dot_dimension_numbers<[1], [0], [0], [1], [0, 0, 1, 1], [], []>} : vector<8x128xf32>, vector<128x5xf32>, vector<8x5xf32> -> vector<8x5xf32>
    %cst_134 = arith.constant dense<0.000000e+00> : vector<8x128xf32>
    %357 = tpu.matmul %356, %4, %cst_134 {dimension_numbers = #tpu.dot_dimension_numbers<[1], [1], [0], [0], [0, 0, 1, 0], [], []>} : vector<8x5xf32>, vector<128x5xf32>, vector<8x128xf32> -> vector<8x128xf32>
    %cst_135 = arith.constant 1.000000e-30 : f32
    %358 = vector.broadcast %cst_135 : f32 to vector<8x128xf32>
    %359 = arith.maximumf %357, %358 : vector<8x128xf32>
    %cst_136 = arith.constant 1.000000e+00 : f32
    %360 = vector.broadcast %cst_136 : f32 to vector<8x128xf32>
    %361 = arith.divf %360, %359 : vector<8x128xf32>
    %362 = arith.mulf %350, %361 : vector<8x128xf32>
    %363 = arith.mulf %353, %361 : vector<8x128xf32>
    %364 = arith.mulf %362, %362 : vector<8x128xf32>
    %365 = arith.mulf %363, %363 : vector<8x128xf32>
    %366 = arith.addf %364, %365 : vector<8x128xf32>
    %367 = arith.mulf %347, %361 : vector<8x128xf32>
    %cst_137 = arith.constant 1.000000e+00 : f32
    %368 = vector.broadcast %cst_137 : f32 to vector<8x128xf32>
    %369 = arith.subf %368, %367 : vector<8x128xf32>
    %370 = arith.mulf %366, %369 : vector<8x128xf32>
    %371 = arith.mulf %366, %347 : vector<8x128xf32>
    %372 = arith.mulf %362, %350 : vector<8x128xf32>
    %373 = arith.mulf %363, %353 : vector<8x128xf32>
    %374 = arith.addf %372, %373 : vector<8x128xf32>
    %cst_138 = arith.constant 2.000000e+00 : f32
    %375 = vector.broadcast %cst_138 : f32 to vector<8x128xf32>
    %376 = arith.mulf %375, %374 : vector<8x128xf32>
    %377 = arith.subf %371, %376 : vector<8x128xf32>
    %378 = arith.addf %377, %355 : vector<8x128xf32>
    %379 = arith.mulf %378, %361 : vector<8x128xf32>
    %380 = arith.addf %370, %379 : vector<8x128xf32>
    %381 = arith.mulf %380, %0 : vector<8x128xf32>
    %382 = vector.shape_cast %381 : vector<8x128xf32> to vector<1x8x128xf32>
    %cst_139 = arith.constant dense<0.000000e+00> : vector<1xf32>
    %383 = vector.multi_reduction <add>, %382, %cst_139 [1, 2] : vector<1x8x128xf32> to vector<1xf32>
    %384 = vector.shape_cast %383 : vector<1xf32> to vector<1x1x1xf32>
    %385 = vector.extract %384[0, 0, 0] : f32 from vector<1x1x1xf32>
    %cst_140 = arith.constant 3.125000e-02 : f32
    %386 = arith.mulf %385, %cst_140 : f32
    %387 = arith.divf %386, %276 : f32
    %cst_141 = arith.constant 9.99999974E-6 : f32
    %cst_142 = arith.constant 0.999989986 : f32
    %388 = arith.maximumf %cst_141, %387 : f32
    %389 = arith.minimumf %cst_142, %388 : f32
    %cst_143 = arith.constant 1.000000e+00 : f32
    %390 = arith.subf %cst_143, %389 : f32
    %cst_144 = arith.constant 1.000000e+00 : f32
    %391 = arith.divf %cst_144, %390 : f32
    %392 = vector.broadcast %389 : f32 to vector<8x128xf32>
    %393 = arith.mulf %392, %267 : vector<8x128xf32>
    %394 = arith.subf %362, %393 : vector<8x128xf32>
    %395 = vector.broadcast %391 : f32 to vector<8x128xf32>
    %396 = arith.mulf %394, %395 : vector<8x128xf32>
    %397 = arith.mulf %396, %0 : vector<8x128xf32>
    %398 = vector.broadcast %389 : f32 to vector<8x128xf32>
    %399 = arith.mulf %398, %272 : vector<8x128xf32>
    %400 = arith.subf %363, %399 : vector<8x128xf32>
    %401 = vector.broadcast %391 : f32 to vector<8x128xf32>
    %402 = arith.mulf %400, %401 : vector<8x128xf32>
    %403 = arith.mulf %402, %0 : vector<8x128xf32>
    %404 = arith.mulf %276, %389 : f32
    %405 = arith.mulf %404, %391 : f32
    %cst_145 = arith.constant 9.99999971E-10 : f32
    %cst_146 = arith.constant 1.000000e+05 : f32
    %406 = arith.maximumf %cst_145, %405 : f32
    %407 = arith.minimumf %cst_146, %406 : f32
    %408 = arith.mulf %362, %0 : vector<8x128xf32>
    %409 = arith.mulf %363, %0 : vector<8x128xf32>
    %410 = arith.mulf %267, %0 : vector<8x128xf32>
    %411 = arith.mulf %272, %0 : vector<8x128xf32>
    %c2_i32 = arith.constant 2 : i32
    %cst_147 = arith.constant 2.500000e-02 : f32
    %412 = arith.divf %cst_147, %407 : f32
    %c0_148 = arith.constant 0 : index
    %c0_149 = arith.constant 0 : index
    %413 = vector.load %arg0[%c0_148, %c0_149] : memref<8x128xf32, #tpu.memory_space<vmem>>, vector<8x128xf32>
    %cst_150 = arith.constant dense<0.000000e+00> : vector<8x8xf32>
    %414 = tpu.matmul %397, %413, %cst_150 {dimension_numbers = #tpu.dot_dimension_numbers<[1], [1], [0], [0], [0, 0, 1, 0], [], []>} : vector<8x128xf32>, vector<8x128xf32>, vector<8x8xf32> -> vector<8x8xf32>
    %c0_151 = arith.constant 0 : index
    %c0_152 = arith.constant 0 : index
    %415 = vector.load %arg1[%c0_151, %c0_152] : memref<8x128xf32, #tpu.memory_space<vmem>>, vector<8x128xf32>
    %cst_153 = arith.constant dense<0.000000e+00> : vector<8x8xf32>
    %416 = tpu.matmul %403, %415, %cst_153 {dimension_numbers = #tpu.dot_dimension_numbers<[1], [1], [0], [0], [0, 0, 1, 0], [], []>} : vector<8x128xf32>, vector<8x128xf32>, vector<8x8xf32> -> vector<8x8xf32>
    %417 = arith.addf %397, %403 : vector<8x128xf32>
    %c0_154 = arith.constant 0 : index
    %c0_155 = arith.constant 0 : index
    %418 = vector.load %arg2[%c0_154, %c0_155] : memref<8x128xf32, #tpu.memory_space<vmem>>, vector<8x128xf32>
    %cst_156 = arith.constant dense<0.000000e+00> : vector<8x8xf32>
    %419 = tpu.matmul %417, %418, %cst_156 {dimension_numbers = #tpu.dot_dimension_numbers<[1], [1], [0], [0], [0, 0, 1, 0], [], []>} : vector<8x128xf32>, vector<8x128xf32>, vector<8x8xf32> -> vector<8x8xf32>
    %420 = arith.subf %414, %416 : vector<8x8xf32>
    %421 = arith.subf %419, %414 : vector<8x8xf32>
    %422 = arith.subf %421, %416 : vector<8x8xf32>
    %423 = vector.broadcast %412 : f32 to vector<1x8xf32>
    %424 = arith.addf %1, %423 : vector<1x8xf32>
    %cst_157 = arith.constant 1.000000e+00 : f32
    %425 = vector.broadcast %cst_157 : f32 to vector<1x8xf32>
    %426 = arith.divf %425, %424 : vector<1x8xf32>
    %427 = vector.broadcast %412 : f32 to vector<8x8xf32>
    %428 = arith.mulf %427, %420 : vector<8x8xf32>
    %429 = arith.addf %2, %428 : vector<8x8xf32>
    %430 = vector.broadcast %426 : vector<1x8xf32> to vector<8x8xf32>
    %431 = arith.mulf %430, %429 : vector<8x8xf32>
    %432 = vector.broadcast %412 : f32 to vector<8x8xf32>
    %433 = arith.mulf %432, %422 : vector<8x8xf32>
    %434 = arith.addf %3, %433 : vector<8x8xf32>
    %435 = vector.broadcast %426 : vector<1x8xf32> to vector<8x8xf32>
    %436 = arith.mulf %435, %434 : vector<8x8xf32>
    %437 = vector.shape_cast %426 : vector<1x8xf32> to vector<1x1x8xf32>
    %cst_158 = arith.constant dense<0.000000e+00> : vector<1xf32>
    %438 = vector.multi_reduction <add>, %437, %cst_158 [1, 2] : vector<1x1x8xf32> to vector<1xf32>
    %439 = vector.shape_cast %438 : vector<1xf32> to vector<1x1x1xf32>
    %440 = vector.extract %439[0, 0, 0] : f32 from vector<1x1x1xf32>
    %cst_159 = arith.constant 8.000000e+00 : f32
    %441 = arith.divf %440, %cst_159 : f32
    %cst_160 = arith.constant 2.500000e-02 : f32
    %442 = arith.mulf %441, %cst_160 : f32
    %443 = arith.subf %431, %420 : vector<8x8xf32>
    %444 = arith.subf %436, %422 : vector<8x8xf32>
    %c0_161 = arith.constant 0 : index
    %c0_162 = arith.constant 0 : index
    %445 = vector.load %arg0[%c0_161, %c0_162] : memref<8x128xf32, #tpu.memory_space<vmem>>, vector<8x128xf32>
    %cst_163 = arith.constant dense<0.000000e+00> : vector<8x128xf32>
    %446 = tpu.matmul %443, %445, %cst_163 {dimension_numbers = #tpu.dot_dimension_numbers<[1], [0], [0], [1], [0, 0, 1, 1], [], []>} : vector<8x8xf32>, vector<8x128xf32>, vector<8x128xf32> -> vector<8x128xf32>
    %c0_164 = arith.constant 0 : index
    %c0_165 = arith.constant 0 : index
    %447 = vector.load %arg1[%c0_164, %c0_165] : memref<8x128xf32, #tpu.memory_space<vmem>>, vector<8x128xf32>
    %cst_166 = arith.constant dense<0.000000e+00> : vector<8x128xf32>
    %448 = tpu.matmul %444, %447, %cst_166 {dimension_numbers = #tpu.dot_dimension_numbers<[1], [0], [0], [1], [0, 0, 1, 1], [], []>} : vector<8x8xf32>, vector<8x128xf32>, vector<8x128xf32> -> vector<8x128xf32>
    %449 = arith.addf %443, %444 : vector<8x8xf32>
    %c0_167 = arith.constant 0 : index
    %c0_168 = arith.constant 0 : index
    %450 = vector.load %arg3[%c0_167, %c0_168] : memref<8x128xf32, #tpu.memory_space<vmem>>, vector<8x128xf32>
    %cst_169 = arith.constant dense<0.000000e+00> : vector<8x128xf32>
    %451 = tpu.matmul %449, %450, %cst_169 {dimension_numbers = #tpu.dot_dimension_numbers<[1], [0], [0], [1], [0, 0, 1, 1], [], []>} : vector<8x8xf32>, vector<8x128xf32>, vector<8x128xf32> -> vector<8x128xf32>
    %452 = arith.addf %446, %448 : vector<8x128xf32>
    %453 = arith.subf %451, %446 : vector<8x128xf32>
    %454 = arith.addf %453, %448 : vector<8x128xf32>
    %455 = arith.addf %452, %397 : vector<8x128xf32>
    %456 = arith.addf %454, %403 : vector<8x128xf32>
    %cst_170 = arith.constant 5.000000e-01 : f32
    %457 = arith.mulf %cst_170, %442 : f32
    %cst_171 = arith.constant 5.000000e-01 : f32
    %458 = arith.mulf %cst_171, %407 : f32
    %459 = arith.addf %457, %458 : f32
    %460 = arith.divf %459, %407 : f32
    %cst_172 = arith.constant 9.99999974E-6 : f32
    %cst_173 = arith.constant 0.999989986 : f32
    %461 = arith.maximumf %cst_172, %460 : f32
    %462 = arith.minimumf %cst_173, %461 : f32
    %cst_174 = arith.constant 1.000000e+00 : f32
    %463 = arith.subf %cst_174, %462 : f32
    %cst_175 = arith.constant 1.000000e+00 : f32
    %464 = arith.divf %cst_175, %463 : f32
    %465 = vector.broadcast %462 : f32 to vector<8x128xf32>
    %466 = arith.mulf %465, %397 : vector<8x128xf32>
    %467 = arith.subf %455, %466 : vector<8x128xf32>
    %468 = vector.broadcast %464 : f32 to vector<8x128xf32>
    %469 = arith.mulf %467, %468 : vector<8x128xf32>
    %470 = vector.broadcast %462 : f32 to vector<8x128xf32>
    %471 = arith.mulf %470, %403 : vector<8x128xf32>
    %472 = arith.subf %456, %471 : vector<8x128xf32>
    %473 = vector.broadcast %464 : f32 to vector<8x128xf32>
    %474 = arith.mulf %472, %473 : vector<8x128xf32>
    %475 = arith.mulf %462, %464 : f32
    %476 = arith.mulf %475, %407 : f32
    %cst_176 = arith.constant 9.99999971E-10 : f32
    %cst_177 = arith.constant 1.000000e+05 : f32
    %477 = arith.maximumf %cst_176, %476 : f32
    %478 = arith.minimumf %cst_177, %477 : f32
    %cst_178 = arith.constant 1.000000e+00 : f32
    %479 = arith.divf %cst_178, %478 : f32
    %480 = vector.broadcast %479 : f32 to vector<8x128xf32>
    %481 = arith.mulf %469, %480 : vector<8x128xf32>
    %482 = vector.broadcast %479 : f32 to vector<8x128xf32>
    %483 = arith.mulf %474, %482 : vector<8x128xf32>
    %cst_179 = arith.constant 1.000000e+00 : f32
    %484 = vector.broadcast %cst_179 : f32 to vector<8x128xf32>
    %485 = arith.mulf %481, %484 : vector<8x128xf32>
    %cst_180 = arith.constant 0.000000e+00 : f32
    %486 = vector.broadcast %cst_180 : f32 to vector<8x128xf32>
    %487 = arith.mulf %483, %486 : vector<8x128xf32>
    %488 = arith.addf %485, %487 : vector<8x128xf32>
    %cst_181 = arith.constant -4.37113883E-8 : f32
    %489 = vector.broadcast %cst_181 : f32 to vector<8x128xf32>
    %490 = arith.mulf %481, %489 : vector<8x128xf32>
    %cst_182 = arith.constant 1.000000e+00 : f32
    %491 = vector.broadcast %cst_182 : f32 to vector<8x128xf32>
    %492 = arith.mulf %483, %491 : vector<8x128xf32>
    %493 = arith.addf %490, %492 : vector<8x128xf32>
    %cst_183 = arith.constant -1.000000e+00 : f32
    %494 = vector.broadcast %cst_183 : f32 to vector<8x128xf32>
    %495 = arith.mulf %481, %494 : vector<8x128xf32>
    %cst_184 = arith.constant -8.74227765E-8 : f32
    %496 = vector.broadcast %cst_184 : f32 to vector<8x128xf32>
    %497 = arith.mulf %483, %496 : vector<8x128xf32>
    %498 = arith.addf %495, %497 : vector<8x128xf32>
    %cst_185 = arith.constant 1.19248806E-8 : f32
    %499 = vector.broadcast %cst_185 : f32 to vector<8x128xf32>
    %500 = arith.mulf %481, %499 : vector<8x128xf32>
    %cst_186 = arith.constant -1.000000e+00 : f32
    %501 = vector.broadcast %cst_186 : f32 to vector<8x128xf32>
    %502 = arith.mulf %483, %501 : vector<8x128xf32>
    %503 = arith.addf %500, %502 : vector<8x128xf32>
    %cst_187 = arith.constant 0.000000e+00 : f32
    %504 = vector.broadcast %cst_187 : f32 to vector<8x128xf32>
    %505 = math.absf %488 : vector<8x128xf32>
    %506 = arith.maximumf %504, %505 : vector<8x128xf32>
    %507 = math.absf %493 : vector<8x128xf32>
    %508 = arith.maximumf %506, %507 : vector<8x128xf32>
    %509 = vector.shape_cast %508 : vector<8x128xf32> to vector<1x8x128xf32>
    %cst_188 = arith.constant dense<0xFF800000> : vector<1xf32>
    %510 = vector.multi_reduction <maximumf>, %509, %cst_188 [1, 2] : vector<1x8x128xf32> to vector<1xf32>
    %511 = vector.shape_cast %510 : vector<1xf32> to vector<1x1x1xf32>
    %512 = vector.extract %511[0, 0, 0] : f32 from vector<1x1x1xf32>
    %cst_189 = arith.constant 0.000000e+00 : f32
    %513 = vector.broadcast %cst_189 : f32 to vector<8x128xf32>
    %cst_190 = arith.constant 0.000000e+00 : f32
    %514 = vector.broadcast %cst_190 : f32 to vector<8x128xf32>
    %cst_191 = arith.constant 0.000000e+00 : f32
    %515 = vector.broadcast %cst_191 : f32 to vector<8x128xf32>
    %516 = vector.broadcast %512 : f32 to vector<8x128xf32>
    %517 = arith.subf %488, %516 : vector<8x128xf32>
    %518 = math.exp %517 : vector<8x128xf32>
    %519 = arith.addf %513, %518 : vector<8x128xf32>
    %cst_192 = arith.constant 1.000000e+00 : f32
    %520 = vector.broadcast %cst_192 : f32 to vector<8x128xf32>
    %521 = arith.mulf %520, %518 : vector<8x128xf32>
    %522 = arith.addf %514, %521 : vector<8x128xf32>
    %cst_193 = arith.constant 0.000000e+00 : f32
    %523 = vector.broadcast %cst_193 : f32 to vector<8x128xf32>
    %524 = arith.mulf %523, %518 : vector<8x128xf32>
    %525 = arith.addf %515, %524 : vector<8x128xf32>
    %526 = vector.broadcast %512 : f32 to vector<8x128xf32>
    %527 = arith.subf %493, %526 : vector<8x128xf32>
    %528 = math.exp %527 : vector<8x128xf32>
    %529 = arith.addf %519, %528 : vector<8x128xf32>
    %cst_194 = arith.constant -4.37113883E-8 : f32
    %530 = vector.broadcast %cst_194 : f32 to vector<8x128xf32>
    %531 = arith.mulf %530, %528 : vector<8x128xf32>
    %532 = arith.addf %522, %531 : vector<8x128xf32>
    %cst_195 = arith.constant 1.000000e+00 : f32
    %533 = vector.broadcast %cst_195 : f32 to vector<8x128xf32>
    %534 = arith.mulf %533, %528 : vector<8x128xf32>
    %535 = arith.addf %525, %534 : vector<8x128xf32>
    %536 = vector.broadcast %512 : f32 to vector<8x128xf32>
    %537 = arith.subf %498, %536 : vector<8x128xf32>
    %538 = math.exp %537 : vector<8x128xf32>
    %539 = arith.addf %529, %538 : vector<8x128xf32>
    %cst_196 = arith.constant -1.000000e+00 : f32
    %540 = vector.broadcast %cst_196 : f32 to vector<8x128xf32>
    %541 = arith.mulf %540, %538 : vector<8x128xf32>
    %542 = arith.addf %532, %541 : vector<8x128xf32>
    %cst_197 = arith.constant -8.74227765E-8 : f32
    %543 = vector.broadcast %cst_197 : f32 to vector<8x128xf32>
    %544 = arith.mulf %543, %538 : vector<8x128xf32>
    %545 = arith.addf %535, %544 : vector<8x128xf32>
    %546 = vector.broadcast %512 : f32 to vector<8x128xf32>
    %547 = arith.subf %503, %546 : vector<8x128xf32>
    %548 = math.exp %547 : vector<8x128xf32>
    %549 = arith.addf %539, %548 : vector<8x128xf32>
    %cst_198 = arith.constant 1.19248806E-8 : f32
    %550 = vector.broadcast %cst_198 : f32 to vector<8x128xf32>
    %551 = arith.mulf %550, %548 : vector<8x128xf32>
    %552 = arith.addf %542, %551 : vector<8x128xf32>
    %cst_199 = arith.constant -1.000000e+00 : f32
    %553 = vector.broadcast %cst_199 : f32 to vector<8x128xf32>
    %554 = arith.mulf %553, %548 : vector<8x128xf32>
    %555 = arith.addf %545, %554 : vector<8x128xf32>
    %cst_200 = arith.constant 1.000000e+00 : f32
    %556 = vector.broadcast %cst_200 : f32 to vector<8x128xf32>
    %557 = arith.mulf %556, %549 : vector<8x128xf32>
    %cst_201 = arith.constant dense<0.000000e+00> : vector<8x5xf32>
    %558 = tpu.matmul %549, %4, %cst_201 {dimension_numbers = #tpu.dot_dimension_numbers<[1], [0], [0], [1], [0, 0, 1, 1], [], []>} : vector<8x128xf32>, vector<128x5xf32>, vector<8x5xf32> -> vector<8x5xf32>
    %cst_202 = arith.constant dense<0.000000e+00> : vector<8x128xf32>
    %559 = tpu.matmul %558, %4, %cst_202 {dimension_numbers = #tpu.dot_dimension_numbers<[1], [1], [0], [0], [0, 0, 1, 0], [], []>} : vector<8x5xf32>, vector<128x5xf32>, vector<8x128xf32> -> vector<8x128xf32>
    %cst_203 = arith.constant 1.000000e-30 : f32
    %560 = vector.broadcast %cst_203 : f32 to vector<8x128xf32>
    %561 = arith.maximumf %559, %560 : vector<8x128xf32>
    %cst_204 = arith.constant 1.000000e+00 : f32
    %562 = vector.broadcast %cst_204 : f32 to vector<8x128xf32>
    %563 = arith.divf %562, %561 : vector<8x128xf32>
    %564 = arith.mulf %552, %563 : vector<8x128xf32>
    %565 = arith.mulf %555, %563 : vector<8x128xf32>
    %566 = arith.mulf %564, %564 : vector<8x128xf32>
    %567 = arith.mulf %565, %565 : vector<8x128xf32>
    %568 = arith.addf %566, %567 : vector<8x128xf32>
    %569 = arith.mulf %549, %563 : vector<8x128xf32>
    %cst_205 = arith.constant 1.000000e+00 : f32
    %570 = vector.broadcast %cst_205 : f32 to vector<8x128xf32>
    %571 = arith.subf %570, %569 : vector<8x128xf32>
    %572 = arith.mulf %568, %571 : vector<8x128xf32>
    %573 = arith.mulf %568, %549 : vector<8x128xf32>
    %574 = arith.mulf %564, %552 : vector<8x128xf32>
    %575 = arith.mulf %565, %555 : vector<8x128xf32>
    %576 = arith.addf %574, %575 : vector<8x128xf32>
    %cst_206 = arith.constant 2.000000e+00 : f32
    %577 = vector.broadcast %cst_206 : f32 to vector<8x128xf32>
    %578 = arith.mulf %577, %576 : vector<8x128xf32>
    %579 = arith.subf %573, %578 : vector<8x128xf32>
    %580 = arith.addf %579, %557 : vector<8x128xf32>
    %581 = arith.mulf %580, %563 : vector<8x128xf32>
    %582 = arith.addf %572, %581 : vector<8x128xf32>
    %583 = arith.mulf %582, %0 : vector<8x128xf32>
    %584 = vector.shape_cast %583 : vector<8x128xf32> to vector<1x8x128xf32>
    %cst_207 = arith.constant dense<0.000000e+00> : vector<1xf32>
    %585 = vector.multi_reduction <add>, %584, %cst_207 [1, 2] : vector<1x8x128xf32> to vector<1xf32>
    %586 = vector.shape_cast %585 : vector<1xf32> to vector<1x1x1xf32>
    %587 = vector.extract %586[0, 0, 0] : f32 from vector<1x1x1xf32>
    %cst_208 = arith.constant 3.125000e-02 : f32
    %588 = arith.mulf %587, %cst_208 : f32
    %589 = arith.divf %588, %478 : f32
    %cst_209 = arith.constant 9.99999974E-6 : f32
    %cst_210 = arith.constant 0.999989986 : f32
    %590 = arith.maximumf %cst_209, %589 : f32
    %591 = arith.minimumf %cst_210, %590 : f32
    %cst_211 = arith.constant 1.000000e+00 : f32
    %592 = arith.subf %cst_211, %591 : f32
    %cst_212 = arith.constant 1.000000e+00 : f32
    %593 = arith.divf %cst_212, %592 : f32
    %594 = vector.broadcast %591 : f32 to vector<8x128xf32>
    %595 = arith.mulf %594, %469 : vector<8x128xf32>
    %596 = arith.subf %564, %595 : vector<8x128xf32>
    %597 = vector.broadcast %593 : f32 to vector<8x128xf32>
    %598 = arith.mulf %596, %597 : vector<8x128xf32>
    %599 = arith.mulf %598, %0 : vector<8x128xf32>
    %600 = vector.broadcast %591 : f32 to vector<8x128xf32>
    %601 = arith.mulf %600, %474 : vector<8x128xf32>
    %602 = arith.subf %565, %601 : vector<8x128xf32>
    %603 = vector.broadcast %593 : f32 to vector<8x128xf32>
    %604 = arith.mulf %602, %603 : vector<8x128xf32>
    %605 = arith.mulf %604, %0 : vector<8x128xf32>
    %606 = arith.mulf %478, %591 : f32
    %607 = arith.mulf %606, %593 : f32
    %cst_213 = arith.constant 9.99999971E-10 : f32
    %cst_214 = arith.constant 1.000000e+05 : f32
    %608 = arith.maximumf %cst_213, %607 : f32
    %609 = arith.minimumf %cst_214, %608 : f32
    %610 = arith.mulf %564, %0 : vector<8x128xf32>
    %611 = arith.mulf %565, %0 : vector<8x128xf32>
    %612 = arith.mulf %469, %0 : vector<8x128xf32>
    %613 = arith.mulf %474, %0 : vector<8x128xf32>
    %c3_i32 = arith.constant 3 : i32
    %cst_215 = arith.constant 2.500000e-02 : f32
    %614 = arith.divf %cst_215, %609 : f32
    %c0_216 = arith.constant 0 : index
    %c0_217 = arith.constant 0 : index
    %615 = vector.load %arg0[%c0_216, %c0_217] : memref<8x128xf32, #tpu.memory_space<vmem>>, vector<8x128xf32>
    %cst_218 = arith.constant dense<0.000000e+00> : vector<8x8xf32>
    %616 = tpu.matmul %599, %615, %cst_218 {dimension_numbers = #tpu.dot_dimension_numbers<[1], [1], [0], [0], [0, 0, 1, 0], [], []>} : vector<8x128xf32>, vector<8x128xf32>, vector<8x8xf32> -> vector<8x8xf32>
    %c0_219 = arith.constant 0 : index
    %c0_220 = arith.constant 0 : index
    %617 = vector.load %arg1[%c0_219, %c0_220] : memref<8x128xf32, #tpu.memory_space<vmem>>, vector<8x128xf32>
    %cst_221 = arith.constant dense<0.000000e+00> : vector<8x8xf32>
    %618 = tpu.matmul %605, %617, %cst_221 {dimension_numbers = #tpu.dot_dimension_numbers<[1], [1], [0], [0], [0, 0, 1, 0], [], []>} : vector<8x128xf32>, vector<8x128xf32>, vector<8x8xf32> -> vector<8x8xf32>
    %619 = arith.addf %599, %605 : vector<8x128xf32>
    %c0_222 = arith.constant 0 : index
    %c0_223 = arith.constant 0 : index
    %620 = vector.load %arg2[%c0_222, %c0_223] : memref<8x128xf32, #tpu.memory_space<vmem>>, vector<8x128xf32>
    %cst_224 = arith.constant dense<0.000000e+00> : vector<8x8xf32>
    %621 = tpu.matmul %619, %620, %cst_224 {dimension_numbers = #tpu.dot_dimension_numbers<[1], [1], [0], [0], [0, 0, 1, 0], [], []>} : vector<8x128xf32>, vector<8x128xf32>, vector<8x8xf32> -> vector<8x8xf32>
    %622 = arith.subf %616, %618 : vector<8x8xf32>
    %623 = arith.subf %621, %616 : vector<8x8xf32>
    %624 = arith.subf %623, %618 : vector<8x8xf32>
    %625 = vector.broadcast %614 : f32 to vector<1x8xf32>
    %626 = arith.addf %1, %625 : vector<1x8xf32>
    %cst_225 = arith.constant 1.000000e+00 : f32
    %627 = vector.broadcast %cst_225 : f32 to vector<1x8xf32>
    %628 = arith.divf %627, %626 : vector<1x8xf32>
    %629 = vector.broadcast %614 : f32 to vector<8x8xf32>
    %630 = arith.mulf %629, %622 : vector<8x8xf32>
    %631 = arith.addf %2, %630 : vector<8x8xf32>
    %632 = vector.broadcast %628 : vector<1x8xf32> to vector<8x8xf32>
    %633 = arith.mulf %632, %631 : vector<8x8xf32>
    %634 = vector.broadcast %614 : f32 to vector<8x8xf32>
    %635 = arith.mulf %634, %624 : vector<8x8xf32>
    %636 = arith.addf %3, %635 : vector<8x8xf32>
    %637 = vector.broadcast %628 : vector<1x8xf32> to vector<8x8xf32>
    %638 = arith.mulf %637, %636 : vector<8x8xf32>
    %639 = vector.shape_cast %628 : vector<1x8xf32> to vector<1x1x8xf32>
    %cst_226 = arith.constant dense<0.000000e+00> : vector<1xf32>
    %640 = vector.multi_reduction <add>, %639, %cst_226 [1, 2] : vector<1x1x8xf32> to vector<1xf32>
    %641 = vector.shape_cast %640 : vector<1xf32> to vector<1x1x1xf32>
    %642 = vector.extract %641[0, 0, 0] : f32 from vector<1x1x1xf32>
    %cst_227 = arith.constant 8.000000e+00 : f32
    %643 = arith.divf %642, %cst_227 : f32
    %cst_228 = arith.constant 2.500000e-02 : f32
    %644 = arith.mulf %643, %cst_228 : f32
    %645 = arith.subf %633, %622 : vector<8x8xf32>
    %646 = arith.subf %638, %624 : vector<8x8xf32>
    %c0_229 = arith.constant 0 : index
    %c0_230 = arith.constant 0 : index
    %647 = vector.load %arg0[%c0_229, %c0_230] : memref<8x128xf32, #tpu.memory_space<vmem>>, vector<8x128xf32>
    %cst_231 = arith.constant dense<0.000000e+00> : vector<8x128xf32>
    %648 = tpu.matmul %645, %647, %cst_231 {dimension_numbers = #tpu.dot_dimension_numbers<[1], [0], [0], [1], [0, 0, 1, 1], [], []>} : vector<8x8xf32>, vector<8x128xf32>, vector<8x128xf32> -> vector<8x128xf32>
    %c0_232 = arith.constant 0 : index
    %c0_233 = arith.constant 0 : index
    %649 = vector.load %arg1[%c0_232, %c0_233] : memref<8x128xf32, #tpu.memory_space<vmem>>, vector<8x128xf32>
    %cst_234 = arith.constant dense<0.000000e+00> : vector<8x128xf32>
    %650 = tpu.matmul %646, %649, %cst_234 {dimension_numbers = #tpu.dot_dimension_numbers<[1], [0], [0], [1], [0, 0, 1, 1], [], []>} : vector<8x8xf32>, vector<8x128xf32>, vector<8x128xf32> -> vector<8x128xf32>
    %651 = arith.addf %645, %646 : vector<8x8xf32>
    %c0_235 = arith.constant 0 : index
    %c0_236 = arith.constant 0 : index
    %652 = vector.load %arg3[%c0_235, %c0_236] : memref<8x128xf32, #tpu.memory_space<vmem>>, vector<8x128xf32>
    %cst_237 = arith.constant dense<0.000000e+00> : vector<8x128xf32>
    %653 = tpu.matmul %651, %652, %cst_237 {dimension_numbers = #tpu.dot_dimension_numbers<[1], [0], [0], [1], [0, 0, 1, 1], [], []>} : vector<8x8xf32>, vector<8x128xf32>, vector<8x128xf32> -> vector<8x128xf32>
    %654 = arith.addf %648, %650 : vector<8x128xf32>
    %655 = arith.subf %653, %648 : vector<8x128xf32>
    %656 = arith.addf %655, %650 : vector<8x128xf32>
    %657 = arith.addf %654, %599 : vector<8x128xf32>
    %658 = arith.addf %656, %605 : vector<8x128xf32>
    %cst_238 = arith.constant 5.000000e-01 : f32
    %659 = arith.mulf %cst_238, %644 : f32
    %cst_239 = arith.constant 5.000000e-01 : f32
    %660 = arith.mulf %cst_239, %609 : f32
    %661 = arith.addf %659, %660 : f32
    %662 = arith.divf %661, %609 : f32
    %cst_240 = arith.constant 9.99999974E-6 : f32
    %cst_241 = arith.constant 0.999989986 : f32
    %663 = arith.maximumf %cst_240, %662 : f32
    %664 = arith.minimumf %cst_241, %663 : f32
    %cst_242 = arith.constant 1.000000e+00 : f32
    %665 = arith.subf %cst_242, %664 : f32
    %cst_243 = arith.constant 1.000000e+00 : f32
    %666 = arith.divf %cst_243, %665 : f32
    %667 = vector.broadcast %664 : f32 to vector<8x128xf32>
    %668 = arith.mulf %667, %599 : vector<8x128xf32>
    %669 = arith.subf %657, %668 : vector<8x128xf32>
    %670 = vector.broadcast %666 : f32 to vector<8x128xf32>
    %671 = arith.mulf %669, %670 : vector<8x128xf32>
    %672 = vector.broadcast %664 : f32 to vector<8x128xf32>
    %673 = arith.mulf %672, %605 : vector<8x128xf32>
    %674 = arith.subf %658, %673 : vector<8x128xf32>
    %675 = vector.broadcast %666 : f32 to vector<8x128xf32>
    %676 = arith.mulf %674, %675 : vector<8x128xf32>
    %677 = arith.mulf %664, %666 : f32
    %678 = arith.mulf %677, %609 : f32
    %cst_244 = arith.constant 9.99999971E-10 : f32
    %cst_245 = arith.constant 1.000000e+05 : f32
    %679 = arith.maximumf %cst_244, %678 : f32
    %680 = arith.minimumf %cst_245, %679 : f32
    %cst_246 = arith.constant 1.000000e+00 : f32
    %681 = arith.divf %cst_246, %680 : f32
    %682 = vector.broadcast %681 : f32 to vector<8x128xf32>
    %683 = arith.mulf %671, %682 : vector<8x128xf32>
    %684 = vector.broadcast %681 : f32 to vector<8x128xf32>
    %685 = arith.mulf %676, %684 : vector<8x128xf32>
    %cst_247 = arith.constant 1.000000e+00 : f32
    %686 = vector.broadcast %cst_247 : f32 to vector<8x128xf32>
    %687 = arith.mulf %683, %686 : vector<8x128xf32>
    %cst_248 = arith.constant 0.000000e+00 : f32
    %688 = vector.broadcast %cst_248 : f32 to vector<8x128xf32>
    %689 = arith.mulf %685, %688 : vector<8x128xf32>
    %690 = arith.addf %687, %689 : vector<8x128xf32>
    %cst_249 = arith.constant -4.37113883E-8 : f32
    %691 = vector.broadcast %cst_249 : f32 to vector<8x128xf32>
    %692 = arith.mulf %683, %691 : vector<8x128xf32>
    %cst_250 = arith.constant 1.000000e+00 : f32
    %693 = vector.broadcast %cst_250 : f32 to vector<8x128xf32>
    %694 = arith.mulf %685, %693 : vector<8x128xf32>
    %695 = arith.addf %692, %694 : vector<8x128xf32>
    %cst_251 = arith.constant -1.000000e+00 : f32
    %696 = vector.broadcast %cst_251 : f32 to vector<8x128xf32>
    %697 = arith.mulf %683, %696 : vector<8x128xf32>
    %cst_252 = arith.constant -8.74227765E-8 : f32
    %698 = vector.broadcast %cst_252 : f32 to vector<8x128xf32>
    %699 = arith.mulf %685, %698 : vector<8x128xf32>
    %700 = arith.addf %697, %699 : vector<8x128xf32>
    %cst_253 = arith.constant 1.19248806E-8 : f32
    %701 = vector.broadcast %cst_253 : f32 to vector<8x128xf32>
    %702 = arith.mulf %683, %701 : vector<8x128xf32>
    %cst_254 = arith.constant -1.000000e+00 : f32
    %703 = vector.broadcast %cst_254 : f32 to vector<8x128xf32>
    %704 = arith.mulf %685, %703 : vector<8x128xf32>
    %705 = arith.addf %702, %704 : vector<8x128xf32>
    %cst_255 = arith.constant 0.000000e+00 : f32
    %706 = vector.broadcast %cst_255 : f32 to vector<8x128xf32>
    %707 = math.absf %690 : vector<8x128xf32>
    %708 = arith.maximumf %706, %707 : vector<8x128xf32>
    %709 = math.absf %695 : vector<8x128xf32>
    %710 = arith.maximumf %708, %709 : vector<8x128xf32>
    %711 = vector.shape_cast %710 : vector<8x128xf32> to vector<1x8x128xf32>
    %cst_256 = arith.constant dense<0xFF800000> : vector<1xf32>
    %712 = vector.multi_reduction <maximumf>, %711, %cst_256 [1, 2] : vector<1x8x128xf32> to vector<1xf32>
    %713 = vector.shape_cast %712 : vector<1xf32> to vector<1x1x1xf32>
    %714 = vector.extract %713[0, 0, 0] : f32 from vector<1x1x1xf32>
    %cst_257 = arith.constant 0.000000e+00 : f32
    %715 = vector.broadcast %cst_257 : f32 to vector<8x128xf32>
    %cst_258 = arith.constant 0.000000e+00 : f32
    %716 = vector.broadcast %cst_258 : f32 to vector<8x128xf32>
    %cst_259 = arith.constant 0.000000e+00 : f32
    %717 = vector.broadcast %cst_259 : f32 to vector<8x128xf32>
    %718 = vector.broadcast %714 : f32 to vector<8x128xf32>
    %719 = arith.subf %690, %718 : vector<8x128xf32>
    %720 = math.exp %719 : vector<8x128xf32>
    %721 = arith.addf %715, %720 : vector<8x128xf32>
    %cst_260 = arith.constant 1.000000e+00 : f32
    %722 = vector.broadcast %cst_260 : f32 to vector<8x128xf32>
    %723 = arith.mulf %722, %720 : vector<8x128xf32>
    %724 = arith.addf %716, %723 : vector<8x128xf32>
    %cst_261 = arith.constant 0.000000e+00 : f32
    %725 = vector.broadcast %cst_261 : f32 to vector<8x128xf32>
    %726 = arith.mulf %725, %720 : vector<8x128xf32>
    %727 = arith.addf %717, %726 : vector<8x128xf32>
    %728 = vector.broadcast %714 : f32 to vector<8x128xf32>
    %729 = arith.subf %695, %728 : vector<8x128xf32>
    %730 = math.exp %729 : vector<8x128xf32>
    %731 = arith.addf %721, %730 : vector<8x128xf32>
    %cst_262 = arith.constant -4.37113883E-8 : f32
    %732 = vector.broadcast %cst_262 : f32 to vector<8x128xf32>
    %733 = arith.mulf %732, %730 : vector<8x128xf32>
    %734 = arith.addf %724, %733 : vector<8x128xf32>
    %cst_263 = arith.constant 1.000000e+00 : f32
    %735 = vector.broadcast %cst_263 : f32 to vector<8x128xf32>
    %736 = arith.mulf %735, %730 : vector<8x128xf32>
    %737 = arith.addf %727, %736 : vector<8x128xf32>
    %738 = vector.broadcast %714 : f32 to vector<8x128xf32>
    %739 = arith.subf %700, %738 : vector<8x128xf32>
    %740 = math.exp %739 : vector<8x128xf32>
    %741 = arith.addf %731, %740 : vector<8x128xf32>
    %cst_264 = arith.constant -1.000000e+00 : f32
    %742 = vector.broadcast %cst_264 : f32 to vector<8x128xf32>
    %743 = arith.mulf %742, %740 : vector<8x128xf32>
    %744 = arith.addf %734, %743 : vector<8x128xf32>
    %cst_265 = arith.constant -8.74227765E-8 : f32
    %745 = vector.broadcast %cst_265 : f32 to vector<8x128xf32>
    %746 = arith.mulf %745, %740 : vector<8x128xf32>
    %747 = arith.addf %737, %746 : vector<8x128xf32>
    %748 = vector.broadcast %714 : f32 to vector<8x128xf32>
    %749 = arith.subf %705, %748 : vector<8x128xf32>
    %750 = math.exp %749 : vector<8x128xf32>
    %751 = arith.addf %741, %750 : vector<8x128xf32>
    %cst_266 = arith.constant 1.19248806E-8 : f32
    %752 = vector.broadcast %cst_266 : f32 to vector<8x128xf32>
    %753 = arith.mulf %752, %750 : vector<8x128xf32>
    %754 = arith.addf %744, %753 : vector<8x128xf32>
    %cst_267 = arith.constant -1.000000e+00 : f32
    %755 = vector.broadcast %cst_267 : f32 to vector<8x128xf32>
    %756 = arith.mulf %755, %750 : vector<8x128xf32>
    %757 = arith.addf %747, %756 : vector<8x128xf32>
    %cst_268 = arith.constant 1.000000e+00 : f32
    %758 = vector.broadcast %cst_268 : f32 to vector<8x128xf32>
    %759 = arith.mulf %758, %751 : vector<8x128xf32>
    %cst_269 = arith.constant dense<0.000000e+00> : vector<8x5xf32>
    %760 = tpu.matmul %751, %4, %cst_269 {dimension_numbers = #tpu.dot_dimension_numbers<[1], [0], [0], [1], [0, 0, 1, 1], [], []>} : vector<8x128xf32>, vector<128x5xf32>, vector<8x5xf32> -> vector<8x5xf32>
    %cst_270 = arith.constant dense<0.000000e+00> : vector<8x128xf32>
    %761 = tpu.matmul %760, %4, %cst_270 {dimension_numbers = #tpu.dot_dimension_numbers<[1], [1], [0], [0], [0, 0, 1, 0], [], []>} : vector<8x5xf32>, vector<128x5xf32>, vector<8x128xf32> -> vector<8x128xf32>
    %cst_271 = arith.constant 1.000000e-30 : f32
    %762 = vector.broadcast %cst_271 : f32 to vector<8x128xf32>
    %763 = arith.maximumf %761, %762 : vector<8x128xf32>
    %cst_272 = arith.constant 1.000000e+00 : f32
    %764 = vector.broadcast %cst_272 : f32 to vector<8x128xf32>
    %765 = arith.divf %764, %763 : vector<8x128xf32>
    %766 = arith.mulf %754, %765 : vector<8x128xf32>
    %767 = arith.mulf %757, %765 : vector<8x128xf32>
    %768 = arith.mulf %766, %766 : vector<8x128xf32>
    %769 = arith.mulf %767, %767 : vector<8x128xf32>
    %770 = arith.addf %768, %769 : vector<8x128xf32>
    %771 = arith.mulf %751, %765 : vector<8x128xf32>
    %cst_273 = arith.constant 1.000000e+00 : f32
    %772 = vector.broadcast %cst_273 : f32 to vector<8x128xf32>
    %773 = arith.subf %772, %771 : vector<8x128xf32>
    %774 = arith.mulf %770, %773 : vector<8x128xf32>
    %775 = arith.mulf %770, %751 : vector<8x128xf32>
    %776 = arith.mulf %766, %754 : vector<8x128xf32>
    %777 = arith.mulf %767, %757 : vector<8x128xf32>
    %778 = arith.addf %776, %777 : vector<8x128xf32>
    %cst_274 = arith.constant 2.000000e+00 : f32
    %779 = vector.broadcast %cst_274 : f32 to vector<8x128xf32>
    %780 = arith.mulf %779, %778 : vector<8x128xf32>
    %781 = arith.subf %775, %780 : vector<8x128xf32>
    %782 = arith.addf %781, %759 : vector<8x128xf32>
    %783 = arith.mulf %782, %765 : vector<8x128xf32>
    %784 = arith.addf %774, %783 : vector<8x128xf32>
    %785 = arith.mulf %784, %0 : vector<8x128xf32>
    %786 = vector.shape_cast %785 : vector<8x128xf32> to vector<1x8x128xf32>
    %cst_275 = arith.constant dense<0.000000e+00> : vector<1xf32>
    %787 = vector.multi_reduction <add>, %786, %cst_275 [1, 2] : vector<1x8x128xf32> to vector<1xf32>
    %788 = vector.shape_cast %787 : vector<1xf32> to vector<1x1x1xf32>
    %789 = vector.extract %788[0, 0, 0] : f32 from vector<1x1x1xf32>
    %cst_276 = arith.constant 3.125000e-02 : f32
    %790 = arith.mulf %789, %cst_276 : f32
    %791 = arith.divf %790, %680 : f32
    %cst_277 = arith.constant 9.99999974E-6 : f32
    %cst_278 = arith.constant 0.999989986 : f32
    %792 = arith.maximumf %cst_277, %791 : f32
    %793 = arith.minimumf %cst_278, %792 : f32
    %cst_279 = arith.constant 1.000000e+00 : f32
    %794 = arith.subf %cst_279, %793 : f32
    %cst_280 = arith.constant 1.000000e+00 : f32
    %795 = arith.divf %cst_280, %794 : f32
    %796 = vector.broadcast %793 : f32 to vector<8x128xf32>
    %797 = arith.mulf %796, %671 : vector<8x128xf32>
    %798 = arith.subf %766, %797 : vector<8x128xf32>
    %799 = vector.broadcast %795 : f32 to vector<8x128xf32>
    %800 = arith.mulf %798, %799 : vector<8x128xf32>
    %801 = arith.mulf %800, %0 : vector<8x128xf32>
    %802 = vector.broadcast %793 : f32 to vector<8x128xf32>
    %803 = arith.mulf %802, %676 : vector<8x128xf32>
    %804 = arith.subf %767, %803 : vector<8x128xf32>
    %805 = vector.broadcast %795 : f32 to vector<8x128xf32>
    %806 = arith.mulf %804, %805 : vector<8x128xf32>
    %807 = arith.mulf %806, %0 : vector<8x128xf32>
    %808 = arith.mulf %680, %793 : f32
    %809 = arith.mulf %808, %795 : f32
    %cst_281 = arith.constant 9.99999971E-10 : f32
    %cst_282 = arith.constant 1.000000e+05 : f32
    %810 = arith.maximumf %cst_281, %809 : f32
    %811 = arith.minimumf %cst_282, %810 : f32
    %812 = arith.mulf %766, %0 : vector<8x128xf32>
    %813 = arith.mulf %767, %0 : vector<8x128xf32>
    %814 = arith.mulf %671, %0 : vector<8x128xf32>
    %815 = arith.mulf %676, %0 : vector<8x128xf32>
    %c0_283 = arith.constant 0 : index
    %c0_284 = arith.constant 0 : index
    %816 = vector.load %arg9[%c0_283, %c0_284] : memref<8x128xf32, #tpu.memory_space<vmem>>, vector<8x128xf32>
    tpu.vector_store %arg9[%c0_283, %c0_284], %812 {strides = array<i32>} : memref<8x128xf32, #tpu.memory_space<vmem>>, vector<8x128xf32>,
    %c0_285 = arith.constant 0 : index
    %c0_286 = arith.constant 0 : index
    %817 = vector.load %arg10[%c0_285, %c0_286] : memref<8x128xf32, #tpu.memory_space<vmem>>, vector<8x128xf32>
    tpu.vector_store %arg10[%c0_285, %c0_286], %813 {strides = array<i32>} : memref<8x128xf32, #tpu.memory_space<vmem>>, vector<8x128xf32>,
    %c0_287 = arith.constant 0 : index
    %c0_288 = arith.constant 0 : index
    %818 = vector.load %arg11[%c0_287, %c0_288] : memref<8x128xf32, #tpu.memory_space<vmem>>, vector<8x128xf32>
    tpu.vector_store %arg11[%c0_287, %c0_288], %785 {strides = array<i32>} : memref<8x128xf32, #tpu.memory_space<vmem>>, vector<8x128xf32>,
    %c0_289 = arith.constant 0 : index
    %c0_290 = arith.constant 0 : index
    %819 = vector.load %arg12[%c0_289, %c0_290] : memref<8x128xf32, #tpu.memory_space<vmem>>, vector<8x128xf32>
    tpu.vector_store %arg12[%c0_289, %c0_290], %814 {strides = array<i32>} : memref<8x128xf32, #tpu.memory_space<vmem>>, vector<8x128xf32>,
    %c0_291 = arith.constant 0 : index
    %c0_292 = arith.constant 0 : index
    %820 = vector.load %arg13[%c0_291, %c0_292] : memref<8x128xf32, #tpu.memory_space<vmem>>, vector<8x128xf32>
    tpu.vector_store %arg13[%c0_291, %c0_292], %815 {strides = array<i32>} : memref<8x128xf32, #tpu.memory_space<vmem>>, vector<8x128xf32>,
    %821 = vector.broadcast %811 : f32 to vector<1x1xf32>
    %c0_293 = arith.constant 0 : index
    %c0_294 = arith.constant 0 : index
    %822 = vector.load %arg14[%c0_293, %c0_294] : memref<1x1xf32, #tpu.memory_space<vmem>>, vector<1x1xf32>
    tpu.vector_store %arg14[%c0_293, %c0_294], %821 {strides = array<i32>} : memref<1x1xf32, #tpu.memory_space<vmem>>, vector<1x1xf32>,
    return
  }
}

</mosaic_0001>

<llo_original>
// kernel: tpu_custom_call.1
$region0: #{tpu_custom_call.1}
  #allocation0 [shape = 'u32[]', space=smem, size = 0x4, offset = 0x4, fixed_abs, tag = 'smem constant byte address 0x4 - core index']
  #allocation1 [shape = 'u32[144,128]{1,0:T(1,128)}', space=vmem, size = 0x12000, scoped, tag = 'internal scratch']
  %s0 = inlined_call_operand.vmem [shape: f32[8,128], index: 0, kind: input, shape index: {}]
  %s1 = inlined_call_operand.vmem [shape: f32[8,128], index: 1, kind: input, shape index: {}]
  %s2 = inlined_call_operand.vmem [shape: f32[8,128], index: 2, kind: input, shape index: {}]
  %s3 = inlined_call_operand.vmem [shape: f32[8,128], index: 3, kind: input, shape index: {}]
  %s4 = inlined_call_operand.vmem [shape: f32[1,8], index: 4, kind: input, shape index: {}]
  %s5 = inlined_call_operand.vmem [shape: f32[8,8], index: 5, kind: input, shape index: {}]
  %s6 = inlined_call_operand.vmem [shape: f32[8,8], index: 6, kind: input, shape index: {}]
  %s7 = inlined_call_operand.vmem [shape: f32[128,5], index: 7, kind: input, shape index: {}]
  %s8 = inlined_call_operand.vmem [shape: f32[8,128], index: 8, kind: input, shape index: {}]
  %s9 = inlined_call_operand.hbm [shape: f32[8,128], index: 9, kind: output, shape index: {0}]
  %s10 = inlined_call_operand.hbm [shape: f32[8,128], index: 10, kind: output, shape index: {1}]
  %s11 = inlined_call_operand.hbm [shape: f32[8,128], index: 11, kind: output, shape index: {2}]
  %s12 = inlined_call_operand.hbm [shape: f32[8,128], index: 12, kind: output, shape index: {3}]
  %s13 = inlined_call_operand.hbm [shape: f32[8,128], index: 13, kind: output, shape index: {4}]
  %s14 = inlined_call_operand.hbm [shape: f32[1,1], index: 14, kind: output, shape index: {5}]
  %15 = xla_tuple %s9, %s10, %s11, %s12, %s13, %s14
  %s16 = sld [smem:[#allocation0]]
  $region86: #{tpu_custom_call.1} parent=0
    _
  %s18 = ssub.s32 1, %s16
  %s19 = scalar_select 0, %s18, %s16
  $region1: #{tpu_custom_call.1} parent=0
    #allocation2 [shape = 'u8[4096]{0}', space=vmem, size = 0x1000, scoped, tag = 'output window, operand 0, single buffered']
    #allocation3 [shape = 's32[1]{0}', space=sflag, size = 0x4, scoped, tag = 'scoped memory for tpu_custom_call.1']
    #allocation4 [shape = 'u8[4096]{0}', space=vmem, size = 0x1000, scoped, tag = 'output window, operand 1, single buffered']
    #allocation5 [shape = 's32[1]{0}', space=sflag, size = 0x4, scoped, tag = 'scoped memory for tpu_custom_call.1']
    #allocation6 [shape = 'u8[4096]{0}', space=vmem, size = 0x1000, scoped, tag = 'output window, operand 2, single buffered']
    #allocation7 [shape = 'u8[4096]{0}', space=vmem, size = 0x1000, scoped, tag = 'output window, operand 3, single buffered']
    #allocation8 [shape = 's32[1]{0}', space=sflag, size = 0x4, scoped, tag = 'scoped memory for tpu_custom_call.1']
    #allocation9 [shape = 'u8[4096]{0}', space=vmem, size = 0x1000, scoped, tag = 'output window, operand 4, single buffered']
    #allocation10 [shape = 'u8[512]{0}', space=vmem, size = 0x400, scoped, tag = 'output window, operand 5, single buffered']
    #allocation11 [shape = 's32[1]{0}', space=sflag, size = 0x4, scoped, tag = 'scoped memory for tpu_custom_call.1']
    %20 = vsyncpa [#allocation3], 0
    %21 = vsyncpa [#allocation5], 0
    %22 = vsyncpa [#allocation8], 0
    %23 = vsyncpa [#allocation11], 0
    // Predicated region
    $region2: #{tpu_custom_call.1} parent=1 // pred_check
      _
    $region3: #{tpu_custom_call.1} parent=1 // pred_check_branch
      %25 = sbr.rel (0) target = $region5
    $region4: #{tpu_custom_call.1} parent=1 // pred_region
      _
    $region5: #{tpu_custom_call.1} parent=1 // pred_fallthru
      _
    // Predicated region
    $region6: #{tpu_custom_call.1} parent=1 // pred_check
      _
    $region7: #{tpu_custom_call.1} parent=1 // pred_check_branch
      %27 = sbr.rel (0) target = $region9
    $region8: #{tpu_custom_call.1} parent=1 // pred_region
      _
    $region9: #{tpu_custom_call.1} parent=1 // pred_fallthru
      _
    // Predicated region
    $region10: #{tpu_custom_call.1} parent=1 // pred_check
      _
    $region11: #{tpu_custom_call.1} parent=1 // pred_check_branch
      %29 = sbr.rel (0) target = $region13
    $region12: #{tpu_custom_call.1} parent=1 // pred_region
      _
    $region13: #{tpu_custom_call.1} parent=1 // pred_fallthru
      _
    // Predicated region
    $region14: #{tpu_custom_call.1} parent=1 // pred_check
      _
    $region15: #{tpu_custom_call.1} parent=1 // pred_check_branch
      %31 = sbr.rel (0) target = $region17
    $region16: #{tpu_custom_call.1} parent=1 // pred_region
      _
    $region17: #{tpu_custom_call.1} parent=1 // pred_fallthru
      _
    // Predicated region
    $region18: #{tpu_custom_call.1} parent=1 // pred_check
      _
    $region19: #{tpu_custom_call.1} parent=1 // pred_check_branch
      %33 = sbr.rel (0) target = $region21
    $region20: #{tpu_custom_call.1} parent=1 // pred_region
      _
    $region21: #{tpu_custom_call.1} parent=1 // pred_fallthru
      _
    // Predicated region
    $region22: #{tpu_custom_call.1} parent=1 // pred_check
      _
    $region23: #{tpu_custom_call.1} parent=1 // pred_check_branch
      %35 = sbr.rel (0) target = $region25
    $region24: #{tpu_custom_call.1} parent=1 // pred_region
      _
    $region25: #{tpu_custom_call.1} parent=1 // pred_fallthru
      _
    // Predicated region
    $region26: #{tpu_custom_call.1} parent=1 // pred_check
      _
    $region27: #{tpu_custom_call.1} parent=1 // pred_check_branch
      %37 = sbr.rel (0) target = $region29
    $region28: #{tpu_custom_call.1} parent=1 // pred_region
      _
    $region29: #{tpu_custom_call.1} parent=1 // pred_fallthru
      _
    // Predicated region
    $region30: #{tpu_custom_call.1} parent=1 // pred_check
      _
    $region31: #{tpu_custom_call.1} parent=1 // pred_check_branch
      %39 = sbr.rel (0) target = $region33
    $region32: #{tpu_custom_call.1} parent=1 // pred_region
      _
    $region33: #{tpu_custom_call.1} parent=1 // pred_fallthru
      _
    // Predicated region
    $region34: #{tpu_custom_call.1} parent=1 // pred_check
      _
    $region35: #{tpu_custom_call.1} parent=1 // pred_check_branch
      %41 = sbr.rel (0) target = $region37
    $region36: #{tpu_custom_call.1} parent=1 // pred_region
      _
    $region37: #{tpu_custom_call.1} parent=1 // pred_fallthru
      _
    %v42 = vld [vmem:[%s8] sm:$0xff]
    %v43 = vld [vmem:[%s4] sm:$0x1]
    %v44 = vld [vmem:[%s5] sm:$0xff]
    %v45 = vld [vmem:[%s6] sm:$0xff]
    %v46 = vld [vmem:[%s7] sm:$0xff]
    %v47 = vld [vmem:[%s7 + $0x8] sm:$0xff]
    %v48 = vld [vmem:[%s7 + $0x10] sm:$0xff]
    %v49 = vld [vmem:[%s7 + $0x18] sm:$0xff]
    %v50 = vld [vmem:[%s7 + $0x20] sm:$0xff]
    %v51 = vld [vmem:[%s7 + $0x28] sm:$0xff]
    %v52 = vld [vmem:[%s7 + $0x30] sm:$0xff]
    %v53 = vld [vmem:[%s7 + $0x38] sm:$0xff]
    %v54 = vld [vmem:[%s7 + $0x40] sm:$0xff]
    %v55 = vld [vmem:[%s7 + $0x48] sm:$0xff]
    %v56 = vld [vmem:[%s7 + $0x50] sm:$0xff]
    %v57 = vld [vmem:[%s7 + $0x58] sm:$0xff]
    %v58 = vld [vmem:[%s7 + $0x60] sm:$0xff]
    %v59 = vld [vmem:[%s7 + $0x68] sm:$0xff]
    %v60 = vld [vmem:[%s7 + $0x70] sm:$0xff]
    %v61 = vld [vmem:[%s7 + $0x78] sm:$0xff]
    %v62 = vmul.f32 %v42, 0.25
    %v63 = vld [vmem:[%s0] sm:$0xff]
    %64 = vmatprep.subr.mxu0 0.0
    %65 = vmatpush1.xpose.msra.mxu0 0.0
    %66 = vmatprep.subr.mxu0 0.0
    %67 = vmatpush1.xpose.msra.mxu0 0.0
    %68 = vmatprep.subr.mxu0 0.0
    %69 = vmatpush1.xpose.msra.mxu0 0.0
    %70 = vmatprep.subr.mxu0 0.0
    %71 = vmatpush1.xpose.msra.mxu0 0.0
    %72 = vmatprep.subr.mxu0 0.0
    %73 = vmatpush1.xpose.msra.mxu0 0.0
    %74 = vmatprep.subr.mxu0 0.0
    %75 = vmatpush1.xpose.msra.mxu0 0.0
    %76 = vmatprep.subr.mxu0 0.0
    %77 = vmatpush1.xpose.msra.mxu0 0.0
    %78 = vmatprep.subr.mxu0 0.0
    %79 = vmatpush1.xpose.msra.mxu0 0.0
    %80 = vmatprep.subr.mxu0 0.0
    %81 = vmatpush1.xpose.msra.mxu0 0.0
    %82 = vmatprep.subr.mxu0 0.0
    %83 = vmatpush1.xpose.msra.mxu0 0.0
    %84 = vmatprep.subr.mxu0 0.0
    %85 = vmatpush1.xpose.msra.mxu0 0.0
    %86 = vmatprep.subr.mxu0 0.0
    %87 = vmatpush1.xpose.msra.mxu0 0.0
    %88 = vmatprep.subr.mxu0 0.0
    %89 = vmatpush1.xpose.msra.mxu0 0.0
    %90 = vmatprep.subr.mxu0 0.0
    %91 = vmatpush1.xpose.msra.mxu0 0.0
    %92 = vmatprep.subr.mxu0 0.0
    %93 = vmatpush1.xpose.msra.mxu0 0.0
    %94 = vmatprep.subr.mxu0 0.0
    %95 = vmatpush1.xpose.msra.mxu0 %v63
    %96 = vmatprep.subr.mxu0 0.0
    %97 = vmatpush2.xpose.msra.mxu0 0.0
    %98 = vmatprep.subr.mxu0 0.0
    %99 = vmatpush2.xpose.msra.mxu0 0.0
    %100 = vmatprep.subr.mxu0 0.0
    %101 = vmatpush2.xpose.msra.mxu0 0.0
    %102 = vmatprep.subr.mxu0 0.0
    %103 = vmatpush2.xpose.msra.mxu0 0.0
    %104 = vmatprep.subr.mxu0 0.0
    %105 = vmatpush2.xpose.msra.mxu0 0.0
    %106 = vmatprep.subr.mxu0 0.0
    %107 = vmatpush2.xpose.msra.mxu0 0.0
    %108 = vmatprep.subr.mxu0 0.0
    %109 = vmatpush2.xpose.msra.mxu0 0.0
    %110 = vmatprep.subr.mxu0 0.0
    %111 = vmatpush2.xpose.msra.mxu0 0.0
    %112 = vmatprep.subr.mxu0 0.0
    %113 = vmatpush2.xpose.msra.mxu0 0.0
    %114 = vmatprep.subr.mxu0 0.0
    %115 = vmatpush2.xpose.msra.mxu0 0.0
    %116 = vmatprep.subr.mxu0 0.0
    %117 = vmatpush2.xpose.msra.mxu0 0.0
    %118 = vmatprep.subr.mxu0 0.0
    %119 = vmatpush2.xpose.msra.mxu0 0.0
    %120 = vmatprep.subr.mxu0 0.0
    %121 = vmatpush2.xpose.msra.mxu0 0.0
    %122 = vmatprep.subr.mxu0 0.0
    %123 = vmatpush2.xpose.msra.mxu0 0.0
    %124 = vmatprep.subr.mxu0 0.0
    %125 = vmatpush2.xpose.msra.mxu0 0.0
    %126 = vmatprep.subr.mxu0 0.0
    %127 = vmatpush2.xpose.msra.mxu0 0.0
    %128 = vmatprep.mubr.f32.mxu0 0.0
    %129 = vmatmul.mubr.f32.gmra.mxu0 %v62
    %v130 = vpop.f32.mrf.mxu0
    %v131 = vadd.f32 0.0, %v130
    %v132 = vpop.f32.mrf.mxu0
    %133 = vdwg.mxu0
    %v134 = vld [vmem:[%s1] sm:$0xff]
    %135 = vmatprep.subr.mxu0 0.0
    %136 = vmatpush1.xpose.msra.mxu0 0.0
    %137 = vmatprep.subr.mxu0 0.0
    %138 = vmatpush1.xpose.msra.mxu0 0.0
    %139 = vmatprep.subr.mxu0 0.0
    %140 = vmatpush1.xpose.msra.mxu0 0.0
    %141 = vmatprep.subr.mxu0 0.0
    %142 = vmatpush1.xpose.msra.mxu0 0.0
    %143 = vmatprep.subr.mxu0 0.0
    %144 = vmatpush1.xpose.msra.mxu0 0.0
    %145 = vmatprep.subr.mxu0 0.0
    %146 = vmatpush1.xpose.msra.mxu0 0.0
    %147 = vmatprep.subr.mxu0 0.0
    %148 = vmatpush1.xpose.msra.mxu0 0.0
    %149 = vmatprep.subr.mxu0 0.0
    %150 = vmatpush1.xpose.msra.mxu0 0.0
    %151 = vmatprep.subr.mxu0 0.0
    %152 = vmatpush1.xpose.msra.mxu0 0.0
    %153 = vmatprep.subr.mxu0 0.0
    %154 = vmatpush1.xpose.msra.mxu0 0.0
    %155 = vmatprep.subr.mxu0 0.0
    %156 = vmatpush1.xpose.msra.mxu0 0.0
    %157 = vmatprep.subr.mxu0 0.0
    %158 = vmatpush1.xpose.msra.mxu0 0.0
    %159 = vmatprep.subr.mxu0 0.0
    %160 = vmatpush1.xpose.msra.mxu0 0.0
    %161 = vmatprep.subr.mxu0 0.0
    %162 = vmatpush1.xpose.msra.mxu0 0.0
    %163 = vmatprep.subr.mxu0 0.0
    %164 = vmatpush1.xpose.msra.mxu0 0.0
    %165 = vmatprep.subr.mxu0 0.0
    %166 = vmatpush1.xpose.msra.mxu0 %v134
    %167 = vmatprep.subr.mxu0 0.0
    %168 = vmatpush2.xpose.msra.mxu0 0.0
    %169 = vmatprep.subr.mxu0 0.0
    %170 = vmatpush2.xpose.msra.mxu0 0.0
    %171 = vmatprep.subr.mxu0 0.0
    %172 = vmatpush2.xpose.msra.mxu0 0.0
    %173 = vmatprep.subr.mxu0 0.0
    %174 = vmatpush2.xpose.msra.mxu0 0.0
    %175 = vmatprep.subr.mxu0 0.0
    %176 = vmatpush2.xpose.msra.mxu0 0.0
    %177 = vmatprep.subr.mxu0 0.0
    %178 = vmatpush2.xpose.msra.mxu0 0.0
    %179 = vmatprep.subr.mxu0 0.0
    %180 = vmatpush2.xpose.msra.mxu0 0.0
    %181 = vmatprep.subr.mxu0 0.0
    %182 = vmatpush2.xpose.msra.mxu0 0.0
    %183 = vmatprep.subr.mxu0 0.0
    %184 = vmatpush2.xpose.msra.mxu0 0.0
    %185 = vmatprep.subr.mxu0 0.0
    %186 = vmatpush2.xpose.msra.mxu0 0.0
    %187 = vmatprep.subr.mxu0 0.0
    %188 = vmatpush2.xpose.msra.mxu0 0.0
    %189 = vmatprep.subr.mxu0 0.0
    %190 = vmatpush2.xpose.msra.mxu0 0.0
    %191 = vmatprep.subr.mxu0 0.0
    %192 = vmatpush2.xpose.msra.mxu0 0.0
    %193 = vmatprep.subr.mxu0 0.0
    %194 = vmatpush2.xpose.msra.mxu0 0.0
    %195 = vmatprep.subr.mxu0 0.0
    %196 = vmatpush2.xpose.msra.mxu0 0.0
    %197 = vmatprep.subr.mxu0 0.0
    %198 = vmatpush2.xpose.msra.mxu0 0.0
    %199 = vmatprep.mubr.f32.mxu0 0.0
    %200 = vmatmul.mubr.f32.gmra.mxu0 0.0
    %v201 = vpop.f32.mrf.mxu0
    %v202 = vadd.f32 0.0, %v201
    %v203 = vpop.f32.mrf.mxu0
    %204 = vdwg.mxu0
    %v205 = vadd.f32 %v62, 0.0
    %v206 = vld [vmem:[%s2] sm:$0xff]
    %207 = vmatprep.subr.mxu0 0.0
    %208 = vmatpush1.xpose.msra.mxu0 0.0
    %209 = vmatprep.subr.mxu0 0.0
    %210 = vmatpush1.xpose.msra.mxu0 0.0
    %211 = vmatprep.subr.mxu0 0.0
    %212 = vmatpush1.xpose.msra.mxu0 0.0
    %213 = vmatprep.subr.mxu0 0.0
    %214 = vmatpush1.xpose.msra.mxu0 0.0
    %215 = vmatprep.subr.mxu0 0.0
    %216 = vmatpush1.xpose.msra.mxu0 0.0
    %217 = vmatprep.subr.mxu0 0.0
    %218 = vmatpush1.xpose.msra.mxu0 0.0
    %219 = vmatprep.subr.mxu0 0.0
    %220 = vmatpush1.xpose.msra.mxu0 0.0
    %221 = vmatprep.subr.mxu0 0.0
    %222 = vmatpush1.xpose.msra.mxu0 0.0
    %223 = vmatprep.subr.mxu0 0.0
    %224 = vmatpush1.xpose.msra.mxu0 0.0
    %225 = vmatprep.subr.mxu0 0.0
    %226 = vmatpush1.xpose.msra.mxu0 0.0
    %227 = vmatprep.subr.mxu0 0.0
    %228 = vmatpush1.xpose.msra.mxu0 0.0
    %229 = vmatprep.subr.mxu0 0.0
    %230 = vmatpush1.xpose.msra.mxu0 0.0
    %231 = vmatprep.subr.mxu0 0.0
    %232 = vmatpush1.xpose.msra.mxu0 0.0
    %233 = vmatprep.subr.mxu0 0.0
    %234 = vmatpush1.xpose.msra.mxu0 0.0
    %235 = vmatprep.subr.mxu0 0.0
    %236 = vmatpush1.xpose.msra.mxu0 0.0
    %237 = vmatprep.subr.mxu0 0.0
    %238 = vmatpush1.xpose.msra.mxu0 %v206
    %239 = vmatprep.subr.mxu0 0.0
    %240 = vmatpush2.xpose.msra.mxu0 0.0
    %241 = vmatprep.subr.mxu0 0.0
    %242 = vmatpush2.xpose.msra.mxu0 0.0
    %243 = vmatprep.subr.mxu0 0.0
    %244 = vmatpush2.xpose.msra.mxu0 0.0
    %245 = vmatprep.subr.mxu0 0.0
    %246 = vmatpush2.xpose.msra.mxu0 0.0
    %247 = vmatprep.subr.mxu0 0.0
    %248 = vmatpush2.xpose.msra.mxu0 0.0
    %249 = vmatprep.subr.mxu0 0.0
    %250 = vmatpush2.xpose.msra.mxu0 0.0
    %251 = vmatprep.subr.mxu0 0.0
    %252 = vmatpush2.xpose.msra.mxu0 0.0
    %253 = vmatprep.subr.mxu0 0.0
    %254 = vmatpush2.xpose.msra.mxu0 0.0
    %255 = vmatprep.subr.mxu0 0.0
    %256 = vmatpush2.xpose.msra.mxu0 0.0
    %257 = vmatprep.subr.mxu0 0.0
    %258 = vmatpush2.xpose.msra.mxu0 0.0
    %259 = vmatprep.subr.mxu0 0.0
    %260 = vmatpush2.xpose.msra.mxu0 0.0
    %261 = vmatprep.subr.mxu0 0.0
    %262 = vmatpush2.xpose.msra.mxu0 0.0
    %263 = vmatprep.subr.mxu0 0.0
    %264 = vmatpush2.xpose.msra.mxu0 0.0
    %265 = vmatprep.subr.mxu0 0.0
    %266 = vmatpush2.xpose.msra.mxu0 0.0
    %267 = vmatprep.subr.mxu0 0.0
    %268 = vmatpush2.xpose.msra.mxu0 0.0
    %269 = vmatprep.subr.mxu0 0.0
    %270 = vmatpush2.xpose.msra.mxu0 0.0
    %271 = vmatprep.mubr.f32.mxu0 0.0
    %272 = vmatmul.mubr.f32.gmra.mxu0 %v205
    %v273 = vpop.f32.mrf.mxu0
    %v274 = vadd.f32 0.0, %v273
    %v275 = vpop.f32.mrf.mxu0
    %276 = vdwg.mxu0
    %v277 = vsub.f32 %v131, %v202
    %v278 = vsub.f32 %v274, %v131
    %v279 = vsub.f32 %v278, %v202
    %v280 = vadd.f32 %v43, 0.13333334
    %v281 = vrcp.pop %v280
    %v282 = vmul.f32 1.0, %v281
    %v283 = vmul.f32 %v277, 0.13333334
    %v284 = vadd.f32 %v44, %v283
    %v286 = vlaneseq
    %v287 = vshrl.u32 %v286, 7
    %v288 = vsub.s32 0, %v287
    %v289 = vrot.slane %v282, %v288
    %v291 = vmul.f32 %v289, %v284
    %v292 = vmul.f32 %v279, 0.13333334
    %v293 = vadd.f32 %v45, %v292
    %v294 = vmul.f32 %v289, %v293
    %vm295 = vcmask 57344
    %v296 = vsel %vm295, %v282, 0.0
    %297 = vadd.xlane.f32.xlu0 %v296
    %v298 = vpop.xlane.xlu0 %297
    %v299 = vrot.slane %v298, 4
    %v300 = vadd.f32 %v298, %v299
    %v301 = vrot.slane %v300, 2
    %v302 = vadd.f32 %v300, %v301
    %v303 = vrot.slane %v302, 1
    %v304 = vadd.f32 %v302, %v303
    %s305 = vtos %v304
    %v306 = vrcp.pop 8.0
    %s307 = vtos %v306
    %s308 = smul.f32 %s305, %s307
    %s309 = smul.f32 %s308, 0.025
    %v310 = vsub.f32 %v291, %v277
    %v311 = vsub.f32 %v294, %v279
    %vm312 = vcmask 64512
    %v314 = vsel %vm312, %v310, 0
    %316 = vmatprep.subr.mxu0 0.0
    %317 = vmatpush1.msra.mxu0 0.0
    %318 = vmatprep.subr.mxu0 0.0
    %319 = vmatpush1.msra.mxu0 0.0
    %320 = vmatprep.subr.mxu0 0.0
    %321 = vmatpush1.msra.mxu0 0.0
    %322 = vmatprep.subr.mxu0 0.0
    %323 = vmatpush1.msra.mxu0 0.0
    %324 = vmatprep.subr.mxu0 0.0
    %325 = vmatpush1.msra.mxu0 0.0
    %326 = vmatprep.subr.mxu0 0.0
    %327 = vmatpush1.msra.mxu0 0.0
    %328 = vmatprep.subr.mxu0 0.0
    %329 = vmatpush1.msra.mxu0 0.0
    %330 = vmatprep.subr.mxu0 0.0
    %331 = vmatpush1.msra.mxu0 0.0
    %332 = vmatprep.subr.mxu0 0.0
    %333 = vmatpush1.msra.mxu0 0.0
    %334 = vmatprep.subr.mxu0 0.0
    %335 = vmatpush1.msra.mxu0 0.0
    %336 = vmatprep.subr.mxu0 0.0
    %337 = vmatpush1.msra.mxu0 0.0
    %338 = vmatprep.subr.mxu0 0.0
    %339 = vmatpush1.msra.mxu0 0.0
    %340 = vmatprep.subr.mxu0 0.0
    %341 = vmatpush1.msra.mxu0 0.0
    %342 = vmatprep.subr.mxu0 0.0
    %343 = vmatpush1.msra.mxu0 0.0
    %344 = vmatprep.subr.mxu0 0.0
    %345 = vmatpush1.msra.mxu0 0.0
    %346 = vmatprep.subr.mxu0 0.0
    %347 = vmatpush1.msra.mxu0 %v63
    %348 = vmatprep.subr.mxu0 0.0
    %349 = vmatpush2.msra.mxu0 0.0
    %350 = vmatprep.subr.mxu0 0.0
    %351 = vmatpush2.msra.mxu0 0.0
    %352 = vmatprep.subr.mxu0 0.0
    %353 = vmatpush2.msra.mxu0 0.0
    %354 = vmatprep.subr.mxu0 0.0
    %355 = vmatpush2.msra.mxu0 0.0
    %356 = vmatprep.subr.mxu0 0.0
    %357 = vmatpush2.msra.mxu0 0.0
    %358 = vmatprep.subr.mxu0 0.0
    %359 = vmatpush2.msra.mxu0 0.0
    %360 = vmatprep.subr.mxu0 0.0
    %361 = vmatpush2.msra.mxu0 0.0
    %362 = vmatprep.subr.mxu0 0.0
    %363 = vmatpush2.msra.mxu0 0.0
    %364 = vmatprep.subr.mxu0 0.0
    %365 = vmatpush2.msra.mxu0 0.0
    %366 = vmatprep.subr.mxu0 0.0
    %367 = vmatpush2.msra.mxu0 0.0
    %368 = vmatprep.subr.mxu0 0.0
    %369 = vmatpush2.msra.mxu0 0.0
    %370 = vmatprep.subr.mxu0 0.0
    %371 = vmatpush2.msra.mxu0 0.0
    %372 = vmatprep.subr.mxu0 0.0
    %373 = vmatpush2.msra.mxu0 0.0
    %374 = vmatprep.subr.mxu0 0.0
    %375 = vmatpush2.msra.mxu0 0.0
    %376 = vmatprep.subr.mxu0 0.0
    %377 = vmatpush2.msra.mxu0 0.0
    %378 = vmatprep.subr.mxu0 0.0
    %379 = vmatpush2.msra.mxu0 0.0
    %380 = vmatprep.mubr.f32.mxu0 0.0
    %381 = vmatmul.mubr.f32.gmra.mxu0 %v314
    %v382 = vpop.f32.mrf.mxu0
    %v383 = vadd.f32 0.0, %v382
    %v384 = vpop.f32.mrf.mxu0
    %385 = vdwg.mxu0
    %v387 = vsel %vm312, %v311, 0
    %389 = vmatprep.subr.mxu0 0.0
    %390 = vmatpush1.msra.mxu0 0.0
    %391 = vmatprep.subr.mxu0 0.0
    %392 = vmatpush1.msra.mxu0 0.0
    %393 = vmatprep.subr.mxu0 0.0
    %394 = vmatpush1.msra.mxu0 0.0
    %395 = vmatprep.subr.mxu0 0.0
    %396 = vmatpush1.msra.mxu0 0.0
    %397 = vmatprep.subr.mxu0 0.0
    %398 = vmatpush1.msra.mxu0 0.0
    %399 = vmatprep.subr.mxu0 0.0
    %400 = vmatpush1.msra.mxu0 0.0
    %401 = vmatprep.subr.mxu0 0.0
    %402 = vmatpush1.msra.mxu0 0.0
    %403 = vmatprep.subr.mxu0 0.0
    %404 = vmatpush1.msra.mxu0 0.0
    %405 = vmatprep.subr.mxu0 0.0
    %406 = vmatpush1.msra.mxu0 0.0
    %407 = vmatprep.subr.mxu0 0.0
    %408 = vmatpush1.msra.mxu0 0.0
    %409 = vmatprep.subr.mxu0 0.0
    %410 = vmatpush1.msra.mxu0 0.0
    %411 = vmatprep.subr.mxu0 0.0
    %412 = vmatpush1.msra.mxu0 0.0
    %413 = vmatprep.subr.mxu0 0.0
    %414 = vmatpush1.msra.mxu0 0.0
    %415 = vmatprep.subr.mxu0 0.0
    %416 = vmatpush1.msra.mxu0 0.0
    %417 = vmatprep.subr.mxu0 0.0
    %418 = vmatpush1.msra.mxu0 0.0
    %419 = vmatprep.subr.mxu0 0.0
    %420 = vmatpush1.msra.mxu0 %v134
    %421 = vmatprep.subr.mxu0 0.0
    %422 = vmatpush2.msra.mxu0 0.0
    %423 = vmatprep.subr.mxu0 0.0
    %424 = vmatpush2.msra.mxu0 0.0
    %425 = vmatprep.subr.mxu0 0.0
    %426 = vmatpush2.msra.mxu0 0.0
    %427 = vmatprep.subr.mxu0 0.0
    %428 = vmatpush2.msra.mxu0 0.0
    %429 = vmatprep.subr.mxu0 0.0
    %430 = vmatpush2.msra.mxu0 0.0
    %431 = vmatprep.subr.mxu0 0.0
    %432 = vmatpush2.msra.mxu0 0.0
    %433 = vmatprep.subr.mxu0 0.0
    %434 = vmatpush2.msra.mxu0 0.0
    %435 = vmatprep.subr.mxu0 0.0
    %436 = vmatpush2.msra.mxu0 0.0
    %437 = vmatprep.subr.mxu0 0.0
    %438 = vmatpush2.msra.mxu0 0.0
    %439 = vmatprep.subr.mxu0 0.0
    %440 = vmatpush2.msra.mxu0 0.0
    %441 = vmatprep.subr.mxu0 0.0
    %442 = vmatpush2.msra.mxu0 0.0
    %443 = vmatprep.subr.mxu0 0.0
    %444 = vmatpush2.msra.mxu0 0.0
    %445 = vmatprep.subr.mxu0 0.0
    %446 = vmatpush2.msra.mxu0 0.0
    %447 = vmatprep.subr.mxu0 0.0
    %448 = vmatpush2.msra.mxu0 0.0
    %449 = vmatprep.subr.mxu0 0.0
    %450 = vmatpush2.msra.mxu0 0.0
    %451 = vmatprep.subr.mxu0 0.0
    %452 = vmatpush2.msra.mxu0 0.0
    %453 = vmatprep.mubr.f32.mxu0 0.0
    %454 = vmatmul.mubr.f32.gmra.mxu0 %v387
    %v455 = vpop.f32.mrf.mxu0
    %v456 = vadd.f32 0.0, %v455
    %v457 = vpop.f32.mrf.mxu0
    %458 = vdwg.mxu0
    %v459 = vadd.f32 %v310, %v311
    %v460 = vld [vmem:[%s3] sm:$0xff]
    %v462 = vsel %vm312, %v459, 0
    %464 = vmatprep.subr.mxu0 0.0
    %465 = vmatpush1.msra.mxu0 0.0
    %466 = vmatprep.subr.mxu0 0.0
    %467 = vmatpush1.msra.mxu0 0.0
    %468 = vmatprep.subr.mxu0 0.0
    %469 = vmatpush1.msra.mxu0 0.0
    %470 = vmatprep.subr.mxu0 0.0
    %471 = vmatpush1.msra.mxu0 0.0
    %472 = vmatprep.subr.mxu0 0.0
    %473 = vmatpush1.msra.mxu0 0.0
    %474 = vmatprep.subr.mxu0 0.0
    %475 = vmatpush1.msra.mxu0 0.0
    %476 = vmatprep.subr.mxu0 0.0
    %477 = vmatpush1.msra.mxu0 0.0
    %478 = vmatprep.subr.mxu0 0.0
    %479 = vmatpush1.msra.mxu0 0.0
    %480 = vmatprep.subr.mxu0 0.0
    %481 = vmatpush1.msra.mxu0 0.0
    %482 = vmatprep.subr.mxu0 0.0
    %483 = vmatpush1.msra.mxu0 0.0
    %484 = vmatprep.subr.mxu0 0.0
    %485 = vmatpush1.msra.mxu0 0.0
    %486 = vmatprep.subr.mxu0 0.0
    %487 = vmatpush1.msra.mxu0 0.0
    %488 = vmatprep.subr.mxu0 0.0
    %489 = vmatpush1.msra.mxu0 0.0
    %490 = vmatprep.subr.mxu0 0.0
    %491 = vmatpush1.msra.mxu0 0.0
    %492 = vmatprep.subr.mxu0 0.0
    %493 = vmatpush1.msra.mxu0 0.0
    %494 = vmatprep.subr.mxu0 0.0
    %495 = vmatpush1.msra.mxu0 %v460
    %496 = vmatprep.subr.mxu0 0.0
    %497 = vmatpush2.msra.mxu0 0.0
    %498 = vmatprep.subr.mxu0 0.0
    %499 = vmatpush2.msra.mxu0 0.0
    %500 = vmatprep.subr.mxu0 0.0
    %501 = vmatpush2.msra.mxu0 0.0
    %502 = vmatprep.subr.mxu0 0.0
    %503 = vmatpush2.msra.mxu0 0.0
    %504 = vmatprep.subr.mxu0 0.0
    %505 = vmatpush2.msra.mxu0 0.0
    %506 = vmatprep.subr.mxu0 0.0
    %507 = vmatpush2.msra.mxu0 0.0
    %508 = vmatprep.subr.mxu0 0.0
    %509 = vmatpush2.msra.mxu0 0.0
    %510 = vmatprep.subr.mxu0 0.0
    %511 = vmatpush2.msra.mxu0 0.0
    %512 = vmatprep.subr.mxu0 0.0
    %513 = vmatpush2.msra.mxu0 0.0
    %514 = vmatprep.subr.mxu0 0.0
    %515 = vmatpush2.msra.mxu0 0.0
    %516 = vmatprep.subr.mxu0 0.0
    %517 = vmatpush2.msra.mxu0 0.0
    %518 = vmatprep.subr.mxu0 0.0
    %519 = vmatpush2.msra.mxu0 0.0
    %520 = vmatprep.subr.mxu0 0.0
    %521 = vmatpush2.msra.mxu0 0.0
    %522 = vmatprep.subr.mxu0 0.0
    %523 = vmatpush2.msra.mxu0 0.0
    %524 = vmatprep.subr.mxu0 0.0
    %525 = vmatpush2.msra.mxu0 0.0
    %526 = vmatprep.subr.mxu0 0.0
    %527 = vmatpush2.msra.mxu0 0.0
    %528 = vmatprep.mubr.f32.mxu0 0.0
    %529 = vmatmul.mubr.f32.gmra.mxu0 %v462
    %v530 = vpop.f32.mrf.mxu0
    %v531 = vadd.f32 0.0, %v530
    %v532 = vpop.f32.mrf.mxu0
    %533 = vdwg.mxu0
    %v534 = vadd.f32 %v383, %v456
    %v535 = vsub.f32 %v531, %v383
    %v536 = vadd.f32 %v535, %v456
    %v537 = vadd.f32 %v534, %v62
    %v538 = vadd.f32 %v536, 0.0
    %s539 = smul.f32 %s309, 0.5
    %s540 = sadd.f32 %s539, 0.09375
    %v541 = vrcp.pop 0.1875
    %s542 = vtos %v541
    %s543 = smul.f32 %s540, %s542
    %s544 = smax.f32 %s543, 1e-05
    %s545 = smin.f32 %s544, 0.99999
    %s546 = ssub.f32 1.0, %s545
    %v547 = vstv %s546
    %v548 = vrcp.pop %v547
    %s549 = vtos %v548
    %v550 = vstv %s545
    %v551 = vmul.f32 %v550, %v62
    %v552 = vsub.f32 %v537, %v551
    %v553 = vstv %s549
    %v554 = vmul.f32 %v552, %v553
    %v555 = vmul.f32 %v550, 0.0
    %v556 = vsub.f32 %v538, %v555
    %v557 = vmul.f32 %v556, %v553
    %s558 = smul.f32 %s545, %s549
    %s559 = smul.f32 %s558, 0.1875
    %s560 = smax.f32 %s559, 1e-09
    %s561 = smin.f32 %s560, 100000.0
    %v562 = vstv %s561
    %v563 = vrcp.pop %v562
    %s564 = vtos %v563
    %v565 = vstv %s564
    %v566 = vmul.f32 %v554, %v565
    %v567 = vmul.f32 %v557, %v565
    %v568 = vmul.f32 %v567, 0.0
    %v569 = vadd.f32 %v566, %v568
    %v570 = vmul.f32 %v566, -4.371139e-08
    %v571 = vadd.f32 %v570, %v567
    %v572 = vmul.f32 %v566, -1.0
    %v573 = vmul.f32 %v567, -8.742278e-08
    %v574 = vadd.f32 %v572, %v573
    %v575 = vmul.f32 %v566, 1.1924881e-08
    %v576 = vmul.f32 %v567, -1.0
    %v577 = vadd.f32 %v575, %v576
    %v578 = vand.u32 2147483647, %v569
    %v579 = vmax.f32 %v578, 0.0
    %v580 = vand.u32 2147483647, %v571
    %v581 = vmax.f32 %v579, %v580
    %582 = vmax.xlane.f32.xlu0 %v581
    %v583 = vpop.xlane.xlu0 %582
    %v584 = vrot.slane %v583, 4
    %v585 = vmax.f32 %v583, %v584
    %v586 = vrot.slane %v585, 2
    %v587 = vmax.f32 %v585, %v586
    %v588 = vrot.slane %v587, 1
    %v589 = vmax.f32 %v587, %v588
    %s590 = vtos %v589
    %v591 = vstv %s590
    %v592 = vsub.f32 %v569, %v591
    %v593 = vmul.f32 %v592, 1.442695
    %v594 = vpow.pop %v593
    %v595 = vadd.f32 %v594, 0.0
    %v596 = vmul.f32 %v594, 0.0
    %v597 = vadd.f32 %v596, 0.0
    %v598 = vsub.f32 %v571, %v591
    %v599 = vmul.f32 %v598, 1.442695
    %v600 = vpow.pop %v599
    %v601 = vadd.f32 %v595, %v600
    %v602 = vmul.f32 %v600, -4.371139e-08
    %v603 = vadd.f32 %v595, %v602
    %v604 = vadd.f32 %v597, %v600
    %v605 = vsub.f32 %v574, %v591
    %v606 = vmul.f32 %v605, 1.442695
    %v607 = vpow.pop %v606
    %v608 = vadd.f32 %v601, %v607
    %v609 = vmul.f32 %v607, -1.0
    %v610 = vadd.f32 %v603, %v609
    %v611 = vmul.f32 %v607, -8.742278e-08
    %v612 = vadd.f32 %v604, %v611
    %v613 = vsub.f32 %v577, %v591
    %v614 = vmul.f32 %v613, 1.442695
    %v615 = vpow.pop %v614
    %v616 = vadd.f32 %v608, %v615
    %v617 = vmul.f32 %v615, 1.1924881e-08
    %v618 = vadd.f32 %v610, %v617
    %v619 = vmul.f32 %v615, -1.0
    %v620 = vadd.f32 %v612, %v619
    %621 = vmatprep.subr.mxu0 0.0
    %622 = vmatpush1.msra.mxu0 %v61
    %623 = vmatprep.subr.mxu0 0.0
    %624 = vmatpush1.msra.mxu0 %v60
    %625 = vmatprep.subr.mxu0 0.0
    %626 = vmatpush1.msra.mxu0 %v59
    %627 = vmatprep.subr.mxu0 0.0
    %628 = vmatpush1.msra.mxu0 %v58
    %629 = vmatprep.subr.mxu0 0.0
    %630 = vmatpush1.msra.mxu0 %v57
    %631 = vmatprep.subr.mxu0 0.0
    %632 = vmatpush1.msra.mxu0 %v56
    %633 = vmatprep.subr.mxu0 0.0
    %634 = vmatpush1.msra.mxu0 %v55
    %635 = vmatprep.subr.mxu0 0.0
    %636 = vmatpush1.msra.mxu0 %v54
    %637 = vmatprep.subr.mxu0 0.0
    %638 = vmatpush1.msra.mxu0 %v53
    %639 = vmatprep.subr.mxu0 0.0
    %640 = vmatpush1.msra.mxu0 %v52
    %641 = vmatprep.subr.mxu0 0.0
    %642 = vmatpush1.msra.mxu0 %v51
    %643 = vmatprep.subr.mxu0 0.0
    %644 = vmatpush1.msra.mxu0 %v50
    %645 = vmatprep.subr.mxu0 0.0
    %646 = vmatpush1.msra.mxu0 %v49
    %647 = vmatprep.subr.mxu0 0.0
    %648 = vmatpush1.msra.mxu0 %v48
    %649 = vmatprep.subr.mxu0 0.0
    %650 = vmatpush1.msra.mxu0 %v47
    %651 = vmatprep.subr.mxu0 0.0
    %652 = vmatpush1.msra.mxu0 %v46
    %653 = vmatprep.subr.mxu0 0.0
    %654 = vmatpush2.msra.mxu0 0.0
    %655 = vmatprep.subr.mxu0 0.0
    %656 = vmatpush2.msra.mxu0 0.0
    %657 = vmatprep.subr.mxu0 0.0
    %658 = vmatpush2.msra.mxu0 0.0
    %659 = vmatprep.subr.mxu0 0.0
    %660 = vmatpush2.msra.mxu0 0.0
    %661 = vmatprep.subr.mxu0 0.0
    %662 = vmatpush2.msra.mxu0 0.0
    %663 = vmatprep.subr.mxu0 0.0
    %664 = vmatpush2.msra.mxu0 0.0
    %665 = vmatprep.subr.mxu0 0.0
    %666 = vmatpush2.msra.mxu0 0.0
    %667 = vmatprep.subr.mxu0 0.0
    %668 = vmatpush2.msra.mxu0 0.0
    %669 = vmatprep.subr.mxu0 0.0
    %670 = vmatpush2.msra.mxu0 0.0
    %671 = vmatprep.subr.mxu0 0.0
    %672 = vmatpush2.msra.mxu0 0.0
    %673 = vmatprep.subr.mxu0 0.0
    %674 = vmatpush2.msra.mxu0 0.0
    %675 = vmatprep.subr.mxu0 0.0
    %676 = vmatpush2.msra.mxu0 0.0
    %677 = vmatprep.subr.mxu0 0.0
    %678 = vmatpush2.msra.mxu0 0.0
    %679 = vmatprep.subr.mxu0 0.0
    %680 = vmatpush2.msra.mxu0 0.0
    %681 = vmatprep.subr.mxu0 0.0
    %682 = vmatpush2.msra.mxu0 0.0
    %683 = vmatprep.subr.mxu0 0.0
    %684 = vmatpush2.msra.mxu0 0.0
    %685 = vmatprep.mubr.f32.mxu0 0.0
    %686 = vmatmul.mubr.f32.gmra.mxu0 %v616
    %v687 = vpop.f32.mrf.mxu0
    %v688 = vadd.f32 0.0, %v687
    %v689 = vpop.f32.mrf.mxu0
    %690 = vdwg.mxu0
    %vm691 = vcmask 39936
    %v693 = vsel %vm691, %v688, 0
    %v696 = vsel %vm691, %v46, 0
    %v699 = vsel %vm691, %v47, 0
    %v702 = vsel %vm691, %v48, 0
    %v705 = vsel %vm691, %v49, 0
    %v708 = vsel %vm691, %v50, 0
    %v711 = vsel %vm691, %v51, 0
    %v714 = vsel %vm691, %v52, 0
    %v717 = vsel %vm691, %v53, 0
    %v720 = vsel %vm691, %v54, 0
    %v723 = vsel %vm691, %v55, 0
    %v726 = vsel %vm691, %v56, 0
    %v729 = vsel %vm691, %v57, 0
    %v732 = vsel %vm691, %v58, 0
    %v735 = vsel %vm691, %v59, 0
    %v738 = vsel %vm691, %v60, 0
    %v741 = vsel %vm691, %v61, 0
    %743 = vmatprep.subr.mxu0 0.0
    %744 = vmatpush1.xpose.msra.mxu0 %v741
    %745 = vmatprep.subr.mxu0 0.0
    %746 = vmatpush1.xpose.msra.mxu0 %v738
    %747 = vmatprep.subr.mxu0 0.0
    %748 = vmatpush1.xpose.msra.mxu0 %v735
    %749 = vmatprep.subr.mxu0 0.0
    %750 = vmatpush1.xpose.msra.mxu0 %v732
    %751 = vmatprep.subr.mxu0 0.0
    %752 = vmatpush1.xpose.msra.mxu0 %v729
    %753 = vmatprep.subr.mxu0 0.0
    %754 = vmatpush1.xpose.msra.mxu0 %v726
    %755 = vmatprep.subr.mxu0 0.0
    %756 = vmatpush1.xpose.msra.mxu0 %v723
    %757 = vmatprep.subr.mxu0 0.0
    %758 = vmatpush1.xpose.msra.mxu0 %v720
    %759 = vmatprep.subr.mxu0 0.0
    %760 = vmatpush1.xpose.msra.mxu0 %v717
    %761 = vmatprep.subr.mxu0 0.0
    %762 = vmatpush1.xpose.msra.mxu0 %v714
    %763 = vmatprep.subr.mxu0 0.0
    %764 = vmatpush1.xpose.msra.mxu0 %v711
    %765 = vmatprep.subr.mxu0 0.0
    %766 = vmatpush1.xpose.msra.mxu0 %v708
    %767 = vmatprep.subr.mxu0 0.0
    %768 = vmatpush1.xpose.msra.mxu0 %v705
    %769 = vmatprep.subr.mxu0 0.0
    %770 = vmatpush1.xpose.msra.mxu0 %v702
    %771 = vmatprep.subr.mxu0 0.0
    %772 = vmatpush1.xpose.msra.mxu0 %v699
    %773 = vmatprep.subr.mxu0 0.0
    %774 = vmatpush1.xpose.msra.mxu0 %v696
    %775 = vmatprep.subr.mxu0 0.0
    %776 = vmatpush2.xpose.msra.mxu0 0.0
    %777 = vmatprep.subr.mxu0 0.0
    %778 = vmatpush2.xpose.msra.mxu0 0.0
    %779 = vmatprep.subr.mxu0 0.0
    %780 = vmatpush2.xpose.msra.mxu0 0.0
    %781 = vmatprep.subr.mxu0 0.0
    %782 = vmatpush2.xpose.msra.mxu0 0.0
    %783 = vmatprep.subr.mxu0 0.0
    %784 = vmatpush2.xpose.msra.mxu0 0.0
    %785 = vmatprep.subr.mxu0 0.0
    %786 = vmatpush2.xpose.msra.mxu0 0.0
    %787 = vmatprep.subr.mxu0 0.0
    %788 = vmatpush2.xpose.msra.mxu0 0.0
    %789 = vmatprep.subr.mxu0 0.0
    %790 = vmatpush2.xpose.msra.mxu0 0.0
    %791 = vmatprep.subr.mxu0 0.0
    %792 = vmatpush2.xpose.msra.mxu0 0.0
    %793 = vmatprep.subr.mxu0 0.0
    %794 = vmatpush2.xpose.msra.mxu0 0.0
    %795 = vmatprep.subr.mxu0 0.0
    %796 = vmatpush2.xpose.msra.mxu0 0.0
    %797 = vmatprep.subr.mxu0 0.0
    %798 = vmatpush2.xpose.msra.mxu0 0.0
    %799 = vmatprep.subr.mxu0 0.0
    %800 = vmatpush2.xpose.msra.mxu0 0.0
    %801 = vmatprep.subr.mxu0 0.0
    %802 = vmatpush2.xpose.msra.mxu0 0.0
    %803 = vmatprep.subr.mxu0 0.0
    %804 = vmatpush2.xpose.msra.mxu0 0.0
    %805 = vmatprep.subr.mxu0 0.0
    %806 = vmatpush2.xpose.msra.mxu0 0.0
    %807 = vmatprep.mubr.f32.mxu0 0.0
    %808 = vmatmul.mubr.f32.gmra.mxu0 %v693
    %v809 = vpop.f32.mrf.mxu0
    %v810 = vadd.f32 0.0, %v809
    %v811 = vpop.f32.mrf.mxu0
    %812 = vdwg.mxu0
    %v813 = vmax.f32 %v810, 1e-30
    %v814 = vrcp.pop %v813
    %v815 = vmul.f32 1.0, %v814
    %v816 = vmul.f32 %v618, %v815
    %v817 = vmul.f32 %v620, %v815
    %v818 = vmul.f32 %v816, %v816
    %v819 = vmul.f32 %v817, %v817
    %v820 = vadd.f32 %v818, %v819
    %v821 = vmul.f32 %v616, %v815
    %v822 = vsub.f32 1.0, %v821
    %v823 = vmul.f32 %v820, %v822
    %v824 = vmul.f32 %v820, %v616
    %v825 = vmul.f32 %v816, %v618
    %v826 = vmul.f32 %v817, %v620
    %v827 = vadd.f32 %v825, %v826
    %v828 = vmul.f32 %v827, 2.0
    %v829 = vsub.f32 %v824, %v828
    %v830 = vadd.f32 %v829, %v616
    %v831 = vmul.f32 %v830, %v815
    %v832 = vadd.f32 %v823, %v831
    %v833 = vmul.f32 %v832, %v42
    %834 = vadd.xlane.f32.xlu0 %v833
    %v835 = vpop.xlane.xlu0 %834
    %v836 = vrot.slane %v835, 4
    %v837 = vadd.f32 %v835, %v836
    %v838 = vrot.slane %v837, 2
    %v839 = vadd.f32 %v837, %v838
    %v840 = vrot.slane %v839, 1
    %v841 = vadd.f32 %v839, %v840
    %s842 = vtos %v841
    %s843 = smul.f32 %s842, 0.03125
    %v844 = vstv %s561
    %v845 = vrcp.pop %v844
    %s846 = vtos %v845
    %s847 = smul.f32 %s843, %s846
    %s848 = smax.f32 %s847, 1e-05
    %s849 = smin.f32 %s848, 0.99999
    %s850 = ssub.f32 1.0, %s849
    %v851 = vstv %s850
    %v852 = vrcp.pop %v851
    %s853 = vtos %v852
    %v854 = vstv %s849
    %v855 = vmul.f32 %v854, %v554
    %v856 = vsub.f32 %v816, %v855
    %v857 = vstv %s853
    %v858 = vmul.f32 %v856, %v857
    %v859 = vmul.f32 %v858, %v42
    %v860 = vmul.f32 %v854, %v557
    %v861 = vsub.f32 %v817, %v860
    %v862 = vmul.f32 %v861, %v857
    %v863 = vmul.f32 %v862, %v42
    %s864 = smul.f32 %s561, %s849
    %s865 = smul.f32 %s864, %s853
    %s866 = smax.f32 %s865, 1e-09
    %s867 = smin.f32 %s866, 100000.0
    %v868 = vstv %s867
    %v869 = vrcp.pop %v868
    %s870 = vtos %v869
    %s871 = smul.f32 0.025, %s870
    %872 = vmatprep.subr.mxu0 0.0
    %873 = vmatpush1.xpose.msra.mxu0 0.0
    %874 = vmatprep.subr.mxu0 0.0
    %875 = vmatpush1.xpose.msra.mxu0 0.0
    %876 = vmatprep.subr.mxu0 0.0
    %877 = vmatpush1.xpose.msra.mxu0 0.0
    %878 = vmatprep.subr.mxu0 0.0
    %879 = vmatpush1.xpose.msra.mxu0 0.0
    %880 = vmatprep.subr.mxu0 0.0
    %881 = vmatpush1.xpose.msra.mxu0 0.0
    %882 = vmatprep.subr.mxu0 0.0
    %883 = vmatpush1.xpose.msra.mxu0 0.0
    %884 = vmatprep.subr.mxu0 0.0
    %885 = vmatpush1.xpose.msra.mxu0 0.0
    %886 = vmatprep.subr.mxu0 0.0
    %887 = vmatpush1.xpose.msra.mxu0 0.0
    %888 = vmatprep.subr.mxu0 0.0
    %889 = vmatpush1.xpose.msra.mxu0 0.0
    %890 = vmatprep.subr.mxu0 0.0
    %891 = vmatpush1.xpose.msra.mxu0 0.0
    %892 = vmatprep.subr.mxu0 0.0
    %893 = vmatpush1.xpose.msra.mxu0 0.0
    %894 = vmatprep.subr.mxu0 0.0
    %895 = vmatpush1.xpose.msra.mxu0 0.0
    %896 = vmatprep.subr.mxu0 0.0
    %897 = vmatpush1.xpose.msra.mxu0 0.0
    %898 = vmatprep.subr.mxu0 0.0
    %899 = vmatpush1.xpose.msra.mxu0 0.0
    %900 = vmatprep.subr.mxu0 0.0
    %901 = vmatpush1.xpose.msra.mxu0 0.0
    %902 = vmatprep.subr.mxu0 0.0
    %903 = vmatpush1.xpose.msra.mxu0 %v63
    %904 = vmatprep.subr.mxu0 0.0
    %905 = vmatpush2.xpose.msra.mxu0 0.0
    %906 = vmatprep.subr.mxu0 0.0
    %907 = vmatpush2.xpose.msra.mxu0 0.0
    %908 = vmatprep.subr.mxu0 0.0
    %909 = vmatpush2.xpose.msra.mxu0 0.0
    %910 = vmatprep.subr.mxu0 0.0
    %911 = vmatpush2.xpose.msra.mxu0 0.0
    %912 = vmatprep.subr.mxu0 0.0
    %913 = vmatpush2.xpose.msra.mxu0 0.0
    %914 = vmatprep.subr.mxu0 0.0
    %915 = vmatpush2.xpose.msra.mxu0 0.0
    %916 = vmatprep.subr.mxu0 0.0
    %917 = vmatpush2.xpose.msra.mxu0 0.0
    %918 = vmatprep.subr.mxu0 0.0
    %919 = vmatpush2.xpose.msra.mxu0 0.0
    %920 = vmatprep.subr.mxu0 0.0
    %921 = vmatpush2.xpose.msra.mxu0 0.0
    %922 = vmatprep.subr.mxu0 0.0
    %923 = vmatpush2.xpose.msra.mxu0 0.0
    %924 = vmatprep.subr.mxu0 0.0
    %925 = vmatpush2.xpose.msra.mxu0 0.0
    %926 = vmatprep.subr.mxu0 0.0
    %927 = vmatpush2.xpose.msra.mxu0 0.0
    %928 = vmatprep.subr.mxu0 0.0
    %929 = vmatpush2.xpose.msra.mxu0 0.0
    %930 = vmatprep.subr.mxu0 0.0
    %931 = vmatpush2.xpose.msra.mxu0 0.0
    %932 = vmatprep.subr.mxu0 0.0
    %933 = vmatpush2.xpose.msra.mxu0 0.0
    %934 = vmatprep.subr.mxu0 0.0
    %935 = vmatpush2.xpose.msra.mxu0 0.0
    %936 = vmatprep.mubr.f32.mxu0 0.0
    %937 = vmatmul.mubr.f32.gmra.mxu0 %v859
    %v938 = vpop.f32.mrf.mxu0
    %v939 = vadd.f32 0.0, %v938
    %v940 = vpop.f32.mrf.mxu0
    %941 = vdwg.mxu0
    %942 = vmatprep.subr.mxu0 0.0
    %943 = vmatpush1.xpose.msra.mxu0 0.0
    %944 = vmatprep.subr.mxu0 0.0
    %945 = vmatpush1.xpose.msra.mxu0 0.0
    %946 = vmatprep.subr.mxu0 0.0
    %947 = vmatpush1.xpose.msra.mxu0 0.0
    %948 = vmatprep.subr.mxu0 0.0
    %949 = vmatpush1.xpose.msra.mxu0 0.0
    %950 = vmatprep.subr.mxu0 0.0
    %951 = vmatpush1.xpose.msra.mxu0 0.0
    %952 = vmatprep.subr.mxu0 0.0
    %953 = vmatpush1.xpose.msra.mxu0 0.0
    %954 = vmatprep.subr.mxu0 0.0
    %955 = vmatpush1.xpose.msra.mxu0 0.0
    %956 = vmatprep.subr.mxu0 0.0
    %957 = vmatpush1.xpose.msra.mxu0 0.0
    %958 = vmatprep.subr.mxu0 0.0
    %959 = vmatpush1.xpose.msra.mxu0 0.0
    %960 = vmatprep.subr.mxu0 0.0
    %961 = vmatpush1.xpose.msra.mxu0 0.0
    %962 = vmatprep.subr.mxu0 0.0
    %963 = vmatpush1.xpose.msra.mxu0 0.0
    %964 = vmatprep.subr.mxu0 0.0
    %965 = vmatpush1.xpose.msra.mxu0 0.0
    %966 = vmatprep.subr.mxu0 0.0
    %967 = vmatpush1.xpose.msra.mxu0 0.0
    %968 = vmatprep.subr.mxu0 0.0
    %969 = vmatpush1.xpose.msra.mxu0 0.0
    %970 = vmatprep.subr.mxu0 0.0
    %971 = vmatpush1.xpose.msra.mxu0 0.0
    %972 = vmatprep.subr.mxu0 0.0
    %973 = vmatpush1.xpose.msra.mxu0 %v134
    %974 = vmatprep.subr.mxu0 0.0
    %975 = vmatpush2.xpose.msra.mxu0 0.0
    %976 = vmatprep.subr.mxu0 0.0
    %977 = vmatpush2.xpose.msra.mxu0 0.0
    %978 = vmatprep.subr.mxu0 0.0
    %979 = vmatpush2.xpose.msra.mxu0 0.0
    %980 = vmatprep.subr.mxu0 0.0
    %981 = vmatpush2.xpose.msra.mxu0 0.0
    %982 = vmatprep.subr.mxu0 0.0
    %983 = vmatpush2.xpose.msra.mxu0 0.0
    %984 = vmatprep.subr.mxu0 0.0
    %985 = vmatpush2.xpose.msra.mxu0 0.0
    %986 = vmatprep.subr.mxu0 0.0
    %987 = vmatpush2.xpose.msra.mxu0 0.0
    %988 = vmatprep.subr.mxu0 0.0
    %989 = vmatpush2.xpose.msra.mxu0 0.0
    %990 = vmatprep.subr.mxu0 0.0
    %991 = vmatpush2.xpose.msra.mxu0 0.0
    %992 = vmatprep.subr.mxu0 0.0
    %993 = vmatpush2.xpose.msra.mxu0 0.0
    %994 = vmatprep.subr.mxu0 0.0
    %995 = vmatpush2.xpose.msra.mxu0 0.0
    %996 = vmatprep.subr.mxu0 0.0
    %997 = vmatpush2.xpose.msra.mxu0 0.0
    %998 = vmatprep.subr.mxu0 0.0
    %999 = vmatpush2.xpose.msra.mxu0 0.0
    %1000 = vmatprep.subr.mxu0 0.0
    %1001 = vmatpush2.xpose.msra.mxu0 0.0
    %1002 = vmatprep.subr.mxu0 0.0
    %1003 = vmatpush2.xpose.msra.mxu0 0.0
    %1004 = vmatprep.subr.mxu0 0.0
    %1005 = vmatpush2.xpose.msra.mxu0 0.0
    %1006 = vmatprep.mubr.f32.mxu0 0.0
    %1007 = vmatmul.mubr.f32.gmra.mxu0 %v863
    %v1008 = vpop.f32.mrf.mxu0
    %v1009 = vadd.f32 0.0, %v1008
    %v1010 = vpop.f32.mrf.mxu0
    %1011 = vdwg.mxu0
    %v1012 = vadd.f32 %v859, %v863
    %1013 = vmatprep.subr.mxu0 0.0
    %1014 = vmatpush1.xpose.msra.mxu0 0.0
    %1015 = vmatprep.subr.mxu0 0.0
    %1016 = vmatpush1.xpose.msra.mxu0 0.0
    %1017 = vmatprep.subr.mxu0 0.0
    %1018 = vmatpush1.xpose.msra.mxu0 0.0
    %1019 = vmatprep.subr.mxu0 0.0
    %1020 = vmatpush1.xpose.msra.mxu0 0.0
    %1021 = vmatprep.subr.mxu0 0.0
    %1022 = vmatpush1.xpose.msra.mxu0 0.0
    %1023 = vmatprep.subr.mxu0 0.0
    %1024 = vmatpush1.xpose.msra.mxu0 0.0
    %1025 = vmatprep.subr.mxu0 0.0
    %1026 = vmatpush1.xpose.msra.mxu0 0.0
    %1027 = vmatprep.subr.mxu0 0.0
    %1028 = vmatpush1.xpose.msra.mxu0 0.0
    %1029 = vmatprep.subr.mxu0 0.0
    %1030 = vmatpush1.xpose.msra.mxu0 0.0
    %1031 = vmatprep.subr.mxu0 0.0
    %1032 = vmatpush1.xpose.msra.mxu0 0.0
    %1033 = vmatprep.subr.mxu0 0.0
    %1034 = vmatpush1.xpose.msra.mxu0 0.0
    %1035 = vmatprep.subr.mxu0 0.0
    %1036 = vmatpush1.xpose.msra.mxu0 0.0
    %1037 = vmatprep.subr.mxu0 0.0
    %1038 = vmatpush1.xpose.msra.mxu0 0.0
    %1039 = vmatprep.subr.mxu0 0.0
    %1040 = vmatpush1.xpose.msra.mxu0 0.0
    %1041 = vmatprep.subr.mxu0 0.0
    %1042 = vmatpush1.xpose.msra.mxu0 0.0
    %1043 = vmatprep.subr.mxu0 0.0
    %1044 = vmatpush1.xpose.msra.mxu0 %v206
    %1045 = vmatprep.subr.mxu0 0.0
    %1046 = vmatpush2.xpose.msra.mxu0 0.0
    %1047 = vmatprep.subr.mxu0 0.0
    %1048 = vmatpush2.xpose.msra.mxu0 0.0
    %1049 = vmatprep.subr.mxu0 0.0
    %1050 = vmatpush2.xpose.msra.mxu0 0.0
    %1051 = vmatprep.subr.mxu0 0.0
    %1052 = vmatpush2.xpose.msra.mxu0 0.0
    %1053 = vmatprep.subr.mxu0 0.0
    %1054 = vmatpush2.xpose.msra.mxu0 0.0
    %1055 = vmatprep.subr.mxu0 0.0
    %1056 = vmatpush2.xpose.msra.mxu0 0.0
    %1057 = vmatprep.subr.mxu0 0.0
    %1058 = vmatpush2.xpose.msra.mxu0 0.0
    %1059 = vmatprep.subr.mxu0 0.0
    %1060 = vmatpush2.xpose.msra.mxu0 0.0
    %1061 = vmatprep.subr.mxu0 0.0
    %1062 = vmatpush2.xpose.msra.mxu0 0.0
    %1063 = vmatprep.subr.mxu0 0.0
    %1064 = vmatpush2.xpose.msra.mxu0 0.0
    %1065 = vmatprep.subr.mxu0 0.0
    %1066 = vmatpush2.xpose.msra.mxu0 0.0
    %1067 = vmatprep.subr.mxu0 0.0
    %1068 = vmatpush2.xpose.msra.mxu0 0.0
    %1069 = vmatprep.subr.mxu0 0.0
    %1070 = vmatpush2.xpose.msra.mxu0 0.0
    %1071 = vmatprep.subr.mxu0 0.0
    %1072 = vmatpush2.xpose.msra.mxu0 0.0
    %1073 = vmatprep.subr.mxu0 0.0
    %1074 = vmatpush2.xpose.msra.mxu0 0.0
    %1075 = vmatprep.subr.mxu0 0.0
    %1076 = vmatpush2.xpose.msra.mxu0 0.0
    %1077 = vmatprep.mubr.f32.mxu0 0.0
    %1078 = vmatmul.mubr.f32.gmra.mxu0 %v1012
    %v1079 = vpop.f32.mrf.mxu0
    %v1080 = vadd.f32 0.0, %v1079
    %v1081 = vpop.f32.mrf.mxu0
    %1082 = vdwg.mxu0
    %v1083 = vsub.f32 %v939, %v1009
    %v1084 = vsub.f32 %v1080, %v939
    %v1085 = vsub.f32 %v1084, %v1009
    %v1086 = vstv %s871
    %v1087 = vadd.f32 %v43, %v1086
    %v1088 = vrcp.pop %v1087
    %v1089 = vmul.f32 1.0, %v1088
    %v1090 = vmul.f32 %v1086, %v1083
    %v1091 = vadd.f32 %v44, %v1090
    %v1093 = vlaneseq
    %v1094 = vshrl.u32 %v1093, 7
    %v1095 = vsub.s32 0, %v1094
    %v1096 = vrot.slane %v1089, %v1095
    %v1098 = vmul.f32 %v1096, %v1091
    %v1099 = vmul.f32 %v1086, %v1085
    %v1100 = vadd.f32 %v45, %v1099
    %v1101 = vmul.f32 %v1096, %v1100
    %v1102 = vsel %vm295, %v1089, 0.0
    %1103 = vadd.xlane.f32.xlu0 %v1102
    %v1104 = vpop.xlane.xlu0 %1103
    %v1105 = vrot.slane %v1104, 4
    %v1106 = vadd.f32 %v1104, %v1105
    %v1107 = vrot.slane %v1106, 2
    %v1108 = vadd.f32 %v1106, %v1107
    %v1109 = vrot.slane %v1108, 1
    %v1110 = vadd.f32 %v1108, %v1109
    %s1111 = vtos %v1110
    %v1112 = vrcp.pop 8.0
    %s1113 = vtos %v1112
    %s1114 = smul.f32 %s1111, %s1113
    %s1115 = smul.f32 %s1114, 0.025
    %v1116 = vsub.f32 %v1098, %v1083
    %v1117 = vsub.f32 %v1101, %v1085
    %v1119 = vsel %vm312, %v1116, 0
    %1121 = vmatprep.subr.mxu0 0.0
    %1122 = vmatpush1.msra.mxu0 0.0
    %1123 = vmatprep.subr.mxu0 0.0
    %1124 = vmatpush1.msra.mxu0 0.0
    %1125 = vmatprep.subr.mxu0 0.0
    %1126 = vmatpush1.msra.mxu0 0.0
    %1127 = vmatprep.subr.mxu0 0.0
    %1128 = vmatpush1.msra.mxu0 0.0
    %1129 = vmatprep.subr.mxu0 0.0
    %1130 = vmatpush1.msra.mxu0 0.0
    %1131 = vmatprep.subr.mxu0 0.0
    %1132 = vmatpush1.msra.mxu0 0.0
    %1133 = vmatprep.subr.mxu0 0.0
    %1134 = vmatpush1.msra.mxu0 0.0
    %1135 = vmatprep.subr.mxu0 0.0
    %1136 = vmatpush1.msra.mxu0 0.0
    %1137 = vmatprep.subr.mxu0 0.0
    %1138 = vmatpush1.msra.mxu0 0.0
    %1139 = vmatprep.subr.mxu0 0.0
    %1140 = vmatpush1.msra.mxu0 0.0
    %1141 = vmatprep.subr.mxu0 0.0
    %1142 = vmatpush1.msra.mxu0 0.0
    %1143 = vmatprep.subr.mxu0 0.0
    %1144 = vmatpush1.msra.mxu0 0.0
    %1145 = vmatprep.subr.mxu0 0.0
    %1146 = vmatpush1.msra.mxu0 0.0
    %1147 = vmatprep.subr.mxu0 0.0
    %1148 = vmatpush1.msra.mxu0 0.0
    %1149 = vmatprep.subr.mxu0 0.0
    %1150 = vmatpush1.msra.mxu0 0.0
    %1151 = vmatprep.subr.mxu0 0.0
    %1152 = vmatpush1.msra.mxu0 %v63
    %1153 = vmatprep.subr.mxu0 0.0
    %1154 = vmatpush2.msra.mxu0 0.0
    %1155 = vmatprep.subr.mxu0 0.0
    %1156 = vmatpush2.msra.mxu0 0.0
    %1157 = vmatprep.subr.mxu0 0.0
    %1158 = vmatpush2.msra.mxu0 0.0
    %1159 = vmatprep.subr.mxu0 0.0
    %1160 = vmatpush2.msra.mxu0 0.0
    %1161 = vmatprep.subr.mxu0 0.0
    %1162 = vmatpush2.msra.mxu0 0.0
    %1163 = vmatprep.subr.mxu0 0.0
    %1164 = vmatpush2.msra.mxu0 0.0
    %1165 = vmatprep.subr.mxu0 0.0
    %1166 = vmatpush2.msra.mxu0 0.0
    %1167 = vmatprep.subr.mxu0 0.0
    %1168 = vmatpush2.msra.mxu0 0.0
    %1169 = vmatprep.subr.mxu0 0.0
    %1170 = vmatpush2.msra.mxu0 0.0
    %1171 = vmatprep.subr.mxu0 0.0
    %1172 = vmatpush2.msra.mxu0 0.0
    %1173 = vmatprep.subr.mxu0 0.0
    %1174 = vmatpush2.msra.mxu0 0.0
    %1175 = vmatprep.subr.mxu0 0.0
    %1176 = vmatpush2.msra.mxu0 0.0
    %1177 = vmatprep.subr.mxu0 0.0
    %1178 = vmatpush2.msra.mxu0 0.0
    %1179 = vmatprep.subr.mxu0 0.0
    %1180 = vmatpush2.msra.mxu0 0.0
    %1181 = vmatprep.subr.mxu0 0.0
    %1182 = vmatpush2.msra.mxu0 0.0
    %1183 = vmatprep.subr.mxu0 0.0
    %1184 = vmatpush2.msra.mxu0 0.0
    %1185 = vmatprep.mubr.f32.mxu0 0.0
    %1186 = vmatmul.mubr.f32.gmra.mxu0 %v1119
    %v1187 = vpop.f32.mrf.mxu0
    %v1188 = vadd.f32 0.0, %v1187
    %v1189 = vpop.f32.mrf.mxu0
    %1190 = vdwg.mxu0
    %v1192 = vsel %vm312, %v1117, 0
    %1194 = vmatprep.subr.mxu0 0.0
    %1195 = vmatpush1.msra.mxu0 0.0
    %1196 = vmatprep.subr.mxu0 0.0
    %1197 = vmatpush1.msra.mxu0 0.0
    %1198 = vmatprep.subr.mxu0 0.0
    %1199 = vmatpush1.msra.mxu0 0.0
    %1200 = vmatprep.subr.mxu0 0.0
    %1201 = vmatpush1.msra.mxu0 0.0
    %1202 = vmatprep.subr.mxu0 0.0
    %1203 = vmatpush1.msra.mxu0 0.0
    %1204 = vmatprep.subr.mxu0 0.0
    %1205 = vmatpush1.msra.mxu0 0.0
    %1206 = vmatprep.subr.mxu0 0.0
    %1207 = vmatpush1.msra.mxu0 0.0
    %1208 = vmatprep.subr.mxu0 0.0
    %1209 = vmatpush1.msra.mxu0 0.0
    %1210 = vmatprep.subr.mxu0 0.0
    %1211 = vmatpush1.msra.mxu0 0.0
    %1212 = vmatprep.subr.mxu0 0.0
    %1213 = vmatpush1.msra.mxu0 0.0
    %1214 = vmatprep.subr.mxu0 0.0
    %1215 = vmatpush1.msra.mxu0 0.0
    %1216 = vmatprep.subr.mxu0 0.0
    %1217 = vmatpush1.msra.mxu0 0.0
    %1218 = vmatprep.subr.mxu0 0.0
    %1219 = vmatpush1.msra.mxu0 0.0
    %1220 = vmatprep.subr.mxu0 0.0
    %1221 = vmatpush1.msra.mxu0 0.0
    %1222 = vmatprep.subr.mxu0 0.0
    %1223 = vmatpush1.msra.mxu0 0.0
    %1224 = vmatprep.subr.mxu0 0.0
    %1225 = vmatpush1.msra.mxu0 %v134
    %1226 = vmatprep.subr.mxu0 0.0
    %1227 = vmatpush2.msra.mxu0 0.0
    %1228 = vmatprep.subr.mxu0 0.0
    %1229 = vmatpush2.msra.mxu0 0.0
    %1230 = vmatprep.subr.mxu0 0.0
    %1231 = vmatpush2.msra.mxu0 0.0
    %1232 = vmatprep.subr.mxu0 0.0
    %1233 = vmatpush2.msra.mxu0 0.0
    %1234 = vmatprep.subr.mxu0 0.0
    %1235 = vmatpush2.msra.mxu0 0.0
    %1236 = vmatprep.subr.mxu0 0.0
    %1237 = vmatpush2.msra.mxu0 0.0
    %1238 = vmatprep.subr.mxu0 0.0
    %1239 = vmatpush2.msra.mxu0 0.0
    %1240 = vmatprep.subr.mxu0 0.0
    %1241 = vmatpush2.msra.mxu0 0.0
    %1242 = vmatprep.subr.mxu0 0.0
    %1243 = vmatpush2.msra.mxu0 0.0
    %1244 = vmatprep.subr.mxu0 0.0
    %1245 = vmatpush2.msra.mxu0 0.0
    %1246 = vmatprep.subr.mxu0 0.0
    %1247 = vmatpush2.msra.mxu0 0.0
    %1248 = vmatprep.subr.mxu0 0.0
    %1249 = vmatpush2.msra.mxu0 0.0
    %1250 = vmatprep.subr.mxu0 0.0
    %1251 = vmatpush2.msra.mxu0 0.0
    %1252 = vmatprep.subr.mxu0 0.0
    %1253 = vmatpush2.msra.mxu0 0.0
    %1254 = vmatprep.subr.mxu0 0.0
    %1255 = vmatpush2.msra.mxu0 0.0
    %1256 = vmatprep.subr.mxu0 0.0
    %1257 = vmatpush2.msra.mxu0 0.0
    %1258 = vmatprep.mubr.f32.mxu0 0.0
    %1259 = vmatmul.mubr.f32.gmra.mxu0 %v1192
    %v1260 = vpop.f32.mrf.mxu0
    %v1261 = vadd.f32 0.0, %v1260
    %v1262 = vpop.f32.mrf.mxu0
    %1263 = vdwg.mxu0
    %v1264 = vadd.f32 %v1116, %v1117
    %v1266 = vsel %vm312, %v1264, 0
    %1268 = vmatprep.subr.mxu0 0.0
    %1269 = vmatpush1.msra.mxu0 0.0
    %1270 = vmatprep.subr.mxu0 0.0
    %1271 = vmatpush1.msra.mxu0 0.0
    %1272 = vmatprep.subr.mxu0 0.0
    %1273 = vmatpush1.msra.mxu0 0.0
    %1274 = vmatprep.subr.mxu0 0.0
    %1275 = vmatpush1.msra.mxu0 0.0
    %1276 = vmatprep.subr.mxu0 0.0
    %1277 = vmatpush1.msra.mxu0 0.0
    %1278 = vmatprep.subr.mxu0 0.0
    %1279 = vmatpush1.msra.mxu0 0.0
    %1280 = vmatprep.subr.mxu0 0.0
    %1281 = vmatpush1.msra.mxu0 0.0
    %1282 = vmatprep.subr.mxu0 0.0
    %1283 = vmatpush1.msra.mxu0 0.0
    %1284 = vmatprep.subr.mxu0 0.0
    %1285 = vmatpush1.msra.mxu0 0.0
    %1286 = vmatprep.subr.mxu0 0.0
    %1287 = vmatpush1.msra.mxu0 0.0
    %1288 = vmatprep.subr.mxu0 0.0
    %1289 = vmatpush1.msra.mxu0 0.0
    %1290 = vmatprep.subr.mxu0 0.0
    %1291 = vmatpush1.msra.mxu0 0.0
    %1292 = vmatprep.subr.mxu0 0.0
    %1293 = vmatpush1.msra.mxu0 0.0
    %1294 = vmatprep.subr.mxu0 0.0
    %1295 = vmatpush1.msra.mxu0 0.0
    %1296 = vmatprep.subr.mxu0 0.0
    %1297 = vmatpush1.msra.mxu0 0.0
    %1298 = vmatprep.subr.mxu0 0.0
    %1299 = vmatpush1.msra.mxu0 %v460
    %1300 = vmatprep.subr.mxu0 0.0
    %1301 = vmatpush2.msra.mxu0 0.0
    %1302 = vmatprep.subr.mxu0 0.0
    %1303 = vmatpush2.msra.mxu0 0.0
    %1304 = vmatprep.subr.mxu0 0.0
    %1305 = vmatpush2.msra.mxu0 0.0
    %1306 = vmatprep.subr.mxu0 0.0
    %1307 = vmatpush2.msra.mxu0 0.0
    %1308 = vmatprep.subr.mxu0 0.0
    %1309 = vmatpush2.msra.mxu0 0.0
    %1310 = vmatprep.subr.mxu0 0.0
    %1311 = vmatpush2.msra.mxu0 0.0
    %1312 = vmatprep.subr.mxu0 0.0
    %1313 = vmatpush2.msra.mxu0 0.0
    %1314 = vmatprep.subr.mxu0 0.0
    %1315 = vmatpush2.msra.mxu0 0.0
    %1316 = vmatprep.subr.mxu0 0.0
    %1317 = vmatpush2.msra.mxu0 0.0
    %1318 = vmatprep.subr.mxu0 0.0
    %1319 = vmatpush2.msra.mxu0 0.0
    %1320 = vmatprep.subr.mxu0 0.0
    %1321 = vmatpush2.msra.mxu0 0.0
    %1322 = vmatprep.subr.mxu0 0.0
    %1323 = vmatpush2.msra.mxu0 0.0
    %1324 = vmatprep.subr.mxu0 0.0
    %1325 = vmatpush2.msra.mxu0 0.0
    %1326 = vmatprep.subr.mxu0 0.0
    %1327 = vmatpush2.msra.mxu0 0.0
    %1328 = vmatprep.subr.mxu0 0.0
    %1329 = vmatpush2.msra.mxu0 0.0
    %1330 = vmatprep.subr.mxu0 0.0
    %1331 = vmatpush2.msra.mxu0 0.0
    %1332 = vmatprep.mubr.f32.mxu0 0.0
    %1333 = vmatmul.mubr.f32.gmra.mxu0 %v1266
    %v1334 = vpop.f32.mrf.mxu0
    %v1335 = vadd.f32 0.0, %v1334
    %v1336 = vpop.f32.mrf.mxu0
    %1337 = vdwg.mxu0
    %v1338 = vadd.f32 %v1188, %v1261
    %v1339 = vsub.f32 %v1335, %v1188
    %v1340 = vadd.f32 %v1339, %v1261
    %v1341 = vadd.f32 %v1338, %v859
    %v1342 = vadd.f32 %v1340, %v863
    %s1343 = smul.f32 %s1115, 0.5
    %s1344 = smul.f32 %s867, 0.5
    %s1345 = sadd.f32 %s1343, %s1344
    %v1346 = vstv %s867
    %v1347 = vrcp.pop %v1346
    %s1348 = vtos %v1347
    %s1349 = smul.f32 %s1345, %s1348
    %s1350 = smax.f32 %s1349, 1e-05
    %s1351 = smin.f32 %s1350, 0.99999
    %s1352 = ssub.f32 1.0, %s1351
    %v1353 = vstv %s1352
    %v1354 = vrcp.pop %v1353
    %s1355 = vtos %v1354
    %v1356 = vstv %s1351
    %v1357 = vmul.f32 %v1356, %v859
    %v1358 = vsub.f32 %v1341, %v1357
    %v1359 = vstv %s1355
    %v1360 = vmul.f32 %v1358, %v1359
    %v1361 = vmul.f32 %v1356, %v863
    %v1362 = vsub.f32 %v1342, %v1361
    %v1363 = vmul.f32 %v1362, %v1359
    %s1364 = smul.f32 %s1351, %s1355
    %s1365 = smul.f32 %s1364, %s867
    %s1366 = smax.f32 %s1365, 1e-09
    %s1367 = smin.f32 %s1366, 100000.0
    %v1368 = vstv %s1367
    %v1369 = vrcp.pop %v1368
    %s1370 = vtos %v1369
    %v1371 = vstv %s1370
    %v1372 = vmul.f32 %v1360, %v1371
    %v1373 = vmul.f32 %v1363, %v1371
    %v1374 = vmul.f32 %v1373, 0.0
    %v1375 = vadd.f32 %v1372, %v1374
    %v1376 = vmul.f32 %v1372, -4.371139e-08
    %v1377 = vadd.f32 %v1376, %v1373
    %v1378 = vmul.f32 %v1372, -1.0
    %v1379 = vmul.f32 %v1373, -8.742278e-08
    %v1380 = vadd.f32 %v1378, %v1379
    %v1381 = vmul.f32 %v1372, 1.1924881e-08
    %v1382 = vmul.f32 %v1373, -1.0
    %v1383 = vadd.f32 %v1381, %v1382
    %v1384 = vand.u32 2147483647, %v1375
    %v1385 = vmax.f32 %v1384, 0.0
    %v1386 = vand.u32 2147483647, %v1377
    %v1387 = vmax.f32 %v1385, %v1386
    %1388 = vmax.xlane.f32.xlu0 %v1387
    %v1389 = vpop.xlane.xlu0 %1388
    %v1390 = vrot.slane %v1389, 4
    %v1391 = vmax.f32 %v1389, %v1390
    %v1392 = vrot.slane %v1391, 2
    %v1393 = vmax.f32 %v1391, %v1392
    %v1394 = vrot.slane %v1393, 1
    %v1395 = vmax.f32 %v1393, %v1394
    %s1396 = vtos %v1395
    %v1397 = vstv %s1396
    %v1398 = vsub.f32 %v1375, %v1397
    %v1399 = vmul.f32 %v1398, 1.442695
    %v1400 = vpow.pop %v1399
    %v1401 = vadd.f32 %v1400, 0.0
    %v1402 = vmul.f32 %v1400, 0.0
    %v1403 = vadd.f32 %v1402, 0.0
    %v1404 = vsub.f32 %v1377, %v1397
    %v1405 = vmul.f32 %v1404, 1.442695
    %v1406 = vpow.pop %v1405
    %v1407 = vadd.f32 %v1401, %v1406
    %v1408 = vmul.f32 %v1406, -4.371139e-08
    %v1409 = vadd.f32 %v1401, %v1408
    %v1410 = vadd.f32 %v1403, %v1406
    %v1411 = vsub.f32 %v1380, %v1397
    %v1412 = vmul.f32 %v1411, 1.442695
    %v1413 = vpow.pop %v1412
    %v1414 = vadd.f32 %v1407, %v1413
    %v1415 = vmul.f32 %v1413, -1.0
    %v1416 = vadd.f32 %v1409, %v1415
    %v1417 = vmul.f32 %v1413, -8.742278e-08
    %v1418 = vadd.f32 %v1410, %v1417
    %v1419 = vsub.f32 %v1383, %v1397
    %v1420 = vmul.f32 %v1419, 1.442695
    %v1421 = vpow.pop %v1420
    %v1422 = vadd.f32 %v1414, %v1421
    %v1423 = vmul.f32 %v1421, 1.1924881e-08
    %v1424 = vadd.f32 %v1416, %v1423
    %v1425 = vmul.f32 %v1421, -1.0
    %v1426 = vadd.f32 %v1418, %v1425
    %1427 = vmatprep.subr.mxu0 0.0
    %1428 = vmatpush1.msra.mxu0 %v61
    %1429 = vmatprep.subr.mxu0 0.0
    %1430 = vmatpush1.msra.mxu0 %v60
    %1431 = vmatprep.subr.mxu0 0.0
    %1432 = vmatpush1.msra.mxu0 %v59
    %1433 = vmatprep.subr.mxu0 0.0
    %1434 = vmatpush1.msra.mxu0 %v58
    %1435 = vmatprep.subr.mxu0 0.0
    %1436 = vmatpush1.msra.mxu0 %v57
    %1437 = vmatprep.subr.mxu0 0.0
    %1438 = vmatpush1.msra.mxu0 %v56
    %1439 = vmatprep.subr.mxu0 0.0
    %1440 = vmatpush1.msra.mxu0 %v55
    %1441 = vmatprep.subr.mxu0 0.0
    %1442 = vmatpush1.msra.mxu0 %v54
    %1443 = vmatprep.subr.mxu0 0.0
    %1444 = vmatpush1.msra.mxu0 %v53
    %1445 = vmatprep.subr.mxu0 0.0
    %1446 = vmatpush1.msra.mxu0 %v52
    %1447 = vmatprep.subr.mxu0 0.0
    %1448 = vmatpush1.msra.mxu0 %v51
    %1449 = vmatprep.subr.mxu0 0.0
    %1450 = vmatpush1.msra.mxu0 %v50
    %1451 = vmatprep.subr.mxu0 0.0
    %1452 = vmatpush1.msra.mxu0 %v49
    %1453 = vmatprep.subr.mxu0 0.0
    %1454 = vmatpush1.msra.mxu0 %v48
    %1455 = vmatprep.subr.mxu0 0.0
    %1456 = vmatpush1.msra.mxu0 %v47
    %1457 = vmatprep.subr.mxu0 0.0
    %1458 = vmatpush1.msra.mxu0 %v46
    %1459 = vmatprep.subr.mxu0 0.0
    %1460 = vmatpush2.msra.mxu0 0.0
    %1461 = vmatprep.subr.mxu0 0.0
    %1462 = vmatpush2.msra.mxu0 0.0
    %1463 = vmatprep.subr.mxu0 0.0
    %1464 = vmatpush2.msra.mxu0 0.0
    %1465 = vmatprep.subr.mxu0 0.0
    %1466 = vmatpush2.msra.mxu0 0.0
    %1467 = vmatprep.subr.mxu0 0.0
    %1468 = vmatpush2.msra.mxu0 0.0
    %1469 = vmatprep.subr.mxu0 0.0
    %1470 = vmatpush2.msra.mxu0 0.0
    %1471 = vmatprep.subr.mxu0 0.0
    %1472 = vmatpush2.msra.mxu0 0.0
    %1473 = vmatprep.subr.mxu0 0.0
    %1474 = vmatpush2.msra.mxu0 0.0
    %1475 = vmatprep.subr.mxu0 0.0
    %1476 = vmatpush2.msra.mxu0 0.0
    %1477 = vmatprep.subr.mxu0 0.0
    %1478 = vmatpush2.msra.mxu0 0.0
    %1479 = vmatprep.subr.mxu0 0.0
    %1480 = vmatpush2.msra.mxu0 0.0
    %1481 = vmatprep.subr.mxu0 0.0
    %1482 = vmatpush2.msra.mxu0 0.0
    %1483 = vmatprep.subr.mxu0 0.0
    %1484 = vmatpush2.msra.mxu0 0.0
    %1485 = vmatprep.subr.mxu0 0.0
    %1486 = vmatpush2.msra.mxu0 0.0
    %1487 = vmatprep.subr.mxu0 0.0
    %1488 = vmatpush2.msra.mxu0 0.0
    %1489 = vmatprep.subr.mxu0 0.0
    %1490 = vmatpush2.msra.mxu0 0.0
    %1491 = vmatprep.mubr.f32.mxu0 0.0
    %1492 = vmatmul.mubr.f32.gmra.mxu0 %v1422
    %v1493 = vpop.f32.mrf.mxu0
    %v1494 = vadd.f32 0.0, %v1493
    %v1495 = vpop.f32.mrf.mxu0
    %1496 = vdwg.mxu0
    %v1498 = vsel %vm691, %v1494, 0
    %1500 = vmatprep.subr.mxu0 0.0
    %1501 = vmatpush1.xpose.msra.mxu0 %v741
    %1502 = vmatprep.subr.mxu0 0.0
    %1503 = vmatpush1.xpose.msra.mxu0 %v738
    %1504 = vmatprep.subr.mxu0 0.0
    %1505 = vmatpush1.xpose.msra.mxu0 %v735
    %1506 = vmatprep.subr.mxu0 0.0
    %1507 = vmatpush1.xpose.msra.mxu0 %v732
    %1508 = vmatprep.subr.mxu0 0.0
    %1509 = vmatpush1.xpose.msra.mxu0 %v729
    %1510 = vmatprep.subr.mxu0 0.0
    %1511 = vmatpush1.xpose.msra.mxu0 %v726
    %1512 = vmatprep.subr.mxu0 0.0
    %1513 = vmatpush1.xpose.msra.mxu0 %v723
    %1514 = vmatprep.subr.mxu0 0.0
    %1515 = vmatpush1.xpose.msra.mxu0 %v720
    %1516 = vmatprep.subr.mxu0 0.0
    %1517 = vmatpush1.xpose.msra.mxu0 %v717
    %1518 = vmatprep.subr.mxu0 0.0
    %1519 = vmatpush1.xpose.msra.mxu0 %v714
    %1520 = vmatprep.subr.mxu0 0.0
    %1521 = vmatpush1.xpose.msra.mxu0 %v711
    %1522 = vmatprep.subr.mxu0 0.0
    %1523 = vmatpush1.xpose.msra.mxu0 %v708
    %1524 = vmatprep.subr.mxu0 0.0
    %1525 = vmatpush1.xpose.msra.mxu0 %v705
    %1526 = vmatprep.subr.mxu0 0.0
    %1527 = vmatpush1.xpose.msra.mxu0 %v702
    %1528 = vmatprep.subr.mxu0 0.0
    %1529 = vmatpush1.xpose.msra.mxu0 %v699
    %1530 = vmatprep.subr.mxu0 0.0
    %1531 = vmatpush1.xpose.msra.mxu0 %v696
    %1532 = vmatprep.subr.mxu0 0.0
    %1533 = vmatpush2.xpose.msra.mxu0 0.0
    %1534 = vmatprep.subr.mxu0 0.0
    %1535 = vmatpush2.xpose.msra.mxu0 0.0
    %1536 = vmatprep.subr.mxu0 0.0
    %1537 = vmatpush2.xpose.msra.mxu0 0.0
    %1538 = vmatprep.subr.mxu0 0.0
    %1539 = vmatpush2.xpose.msra.mxu0 0.0
    %1540 = vmatprep.subr.mxu0 0.0
    %1541 = vmatpush2.xpose.msra.mxu0 0.0
    %1542 = vmatprep.subr.mxu0 0.0
    %1543 = vmatpush2.xpose.msra.mxu0 0.0
    %1544 = vmatprep.subr.mxu0 0.0
    %1545 = vmatpush2.xpose.msra.mxu0 0.0
    %1546 = vmatprep.subr.mxu0 0.0
    %1547 = vmatpush2.xpose.msra.mxu0 0.0
    %1548 = vmatprep.subr.mxu0 0.0
    %1549 = vmatpush2.xpose.msra.mxu0 0.0
    %1550 = vmatprep.subr.mxu0 0.0
    %1551 = vmatpush2.xpose.msra.mxu0 0.0
    %1552 = vmatprep.subr.mxu0 0.0
    %1553 = vmatpush2.xpose.msra.mxu0 0.0
    %1554 = vmatprep.subr.mxu0 0.0
    %1555 = vmatpush2.xpose.msra.mxu0 0.0
    %1556 = vmatprep.subr.mxu0 0.0
    %1557 = vmatpush2.xpose.msra.mxu0 0.0
    %1558 = vmatprep.subr.mxu0 0.0
    %1559 = vmatpush2.xpose.msra.mxu0 0.0
    %1560 = vmatprep.subr.mxu0 0.0
    %1561 = vmatpush2.xpose.msra.mxu0 0.0
    %1562 = vmatprep.subr.mxu0 0.0
    %1563 = vmatpush2.xpose.msra.mxu0 0.0
    %1564 = vmatprep.mubr.f32.mxu0 0.0
    %1565 = vmatmul.mubr.f32.gmra.mxu0 %v1498
    %v1566 = vpop.f32.mrf.mxu0
    %v1567 = vadd.f32 0.0, %v1566
    %v1568 = vpop.f32.mrf.mxu0
    %1569 = vdwg.mxu0
    %v1570 = vmax.f32 %v1567, 1e-30
    %v1571 = vrcp.pop %v1570
    %v1572 = vmul.f32 1.0, %v1571
    %v1573 = vmul.f32 %v1424, %v1572
    %v1574 = vmul.f32 %v1426, %v1572
    %v1575 = vmul.f32 %v1573, %v1573
    %v1576 = vmul.f32 %v1574, %v1574
    %v1577 = vadd.f32 %v1575, %v1576
    %v1578 = vmul.f32 %v1422, %v1572
    %v1579 = vsub.f32 1.0, %v1578
    %v1580 = vmul.f32 %v1577, %v1579
    %v1581 = vmul.f32 %v1577, %v1422
    %v1582 = vmul.f32 %v1573, %v1424
    %v1583 = vmul.f32 %v1574, %v1426
    %v1584 = vadd.f32 %v1582, %v1583
    %v1585 = vmul.f32 %v1584, 2.0
    %v1586 = vsub.f32 %v1581, %v1585
    %v1587 = vadd.f32 %v1586, %v1422
    %v1588 = vmul.f32 %v1587, %v1572
    %v1589 = vadd.f32 %v1580, %v1588
    %v1590 = vmul.f32 %v1589, %v42
    %1591 = vadd.xlane.f32.xlu0 %v1590
    %v1592 = vpop.xlane.xlu0 %1591
    %v1593 = vrot.slane %v1592, 4
    %v1594 = vadd.f32 %v1592, %v1593
    %v1595 = vrot.slane %v1594, 2
    %v1596 = vadd.f32 %v1594, %v1595
    %v1597 = vrot.slane %v1596, 1
    %v1598 = vadd.f32 %v1596, %v1597
    %s1599 = vtos %v1598
    %s1600 = smul.f32 %s1599, 0.03125
    %v1601 = vstv %s1367
    %v1602 = vrcp.pop %v1601
    %s1603 = vtos %v1602
    %s1604 = smul.f32 %s1600, %s1603
    %s1605 = smax.f32 %s1604, 1e-05
    %s1606 = smin.f32 %s1605, 0.99999
    %s1607 = ssub.f32 1.0, %s1606
    %v1608 = vstv %s1607
    %v1609 = vrcp.pop %v1608
    %s1610 = vtos %v1609
    %v1611 = vstv %s1606
    %v1612 = vmul.f32 %v1611, %v1360
    %v1613 = vsub.f32 %v1573, %v1612
    %v1614 = vstv %s1610
    %v1615 = vmul.f32 %v1613, %v1614
    %v1616 = vmul.f32 %v1615, %v42
    %v1617 = vmul.f32 %v1611, %v1363
    %v1618 = vsub.f32 %v1574, %v1617
    %v1619 = vmul.f32 %v1618, %v1614
    %v1620 = vmul.f32 %v1619, %v42
    %s1621 = smul.f32 %s1367, %s1606
    %s1622 = smul.f32 %s1621, %s1610
    %s1623 = smax.f32 %s1622, 1e-09
    %s1624 = smin.f32 %s1623, 100000.0
    %v1625 = vstv %s1624
    %v1626 = vrcp.pop %v1625
    %s1627 = vtos %v1626
    %s1628 = smul.f32 0.025, %s1627
    %1629 = vmatprep.subr.mxu0 0.0
    %1630 = vmatpush1.xpose.msra.mxu0 0.0
    %1631 = vmatprep.subr.mxu0 0.0
    %1632 = vmatpush1.xpose.msra.mxu0 0.0
    %1633 = vmatprep.subr.mxu0 0.0
    %1634 = vmatpush1.xpose.msra.mxu0 0.0
    %1635 = vmatprep.subr.mxu0 0.0
    %1636 = vmatpush1.xpose.msra.mxu0 0.0
    %1637 = vmatprep.subr.mxu0 0.0
    %1638 = vmatpush1.xpose.msra.mxu0 0.0
    %1639 = vmatprep.subr.mxu0 0.0
    %1640 = vmatpush1.xpose.msra.mxu0 0.0
    %1641 = vmatprep.subr.mxu0 0.0
    %1642 = vmatpush1.xpose.msra.mxu0 0.0
    %1643 = vmatprep.subr.mxu0 0.0
    %1644 = vmatpush1.xpose.msra.mxu0 0.0
    %1645 = vmatprep.subr.mxu0 0.0
    %1646 = vmatpush1.xpose.msra.mxu0 0.0
    %1647 = vmatprep.subr.mxu0 0.0
    %1648 = vmatpush1.xpose.msra.mxu0 0.0
    %1649 = vmatprep.subr.mxu0 0.0
    %1650 = vmatpush1.xpose.msra.mxu0 0.0
    %1651 = vmatprep.subr.mxu0 0.0
    %1652 = vmatpush1.xpose.msra.mxu0 0.0
    %1653 = vmatprep.subr.mxu0 0.0
    %1654 = vmatpush1.xpose.msra.mxu0 0.0
    %1655 = vmatprep.subr.mxu0 0.0
    %1656 = vmatpush1.xpose.msra.mxu0 0.0
    %1657 = vmatprep.subr.mxu0 0.0
    %1658 = vmatpush1.xpose.msra.mxu0 0.0
    %1659 = vmatprep.subr.mxu0 0.0
    %1660 = vmatpush1.xpose.msra.mxu0 %v63
    %1661 = vmatprep.subr.mxu0 0.0
    %1662 = vmatpush2.xpose.msra.mxu0 0.0
    %1663 = vmatprep.subr.mxu0 0.0
    %1664 = vmatpush2.xpose.msra.mxu0 0.0
    %1665 = vmatprep.subr.mxu0 0.0
    %1666 = vmatpush2.xpose.msra.mxu0 0.0
    %1667 = vmatprep.subr.mxu0 0.0
    %1668 = vmatpush2.xpose.msra.mxu0 0.0
    %1669 = vmatprep.subr.mxu0 0.0
    %1670 = vmatpush2.xpose.msra.mxu0 0.0
    %1671 = vmatprep.subr.mxu0 0.0
    %1672 = vmatpush2.xpose.msra.mxu0 0.0
    %1673 = vmatprep.subr.mxu0 0.0
    %1674 = vmatpush2.xpose.msra.mxu0 0.0
    %1675 = vmatprep.subr.mxu0 0.0
    %1676 = vmatpush2.xpose.msra.mxu0 0.0
    %1677 = vmatprep.subr.mxu0 0.0
    %1678 = vmatpush2.xpose.msra.mxu0 0.0
    %1679 = vmatprep.subr.mxu0 0.0
    %1680 = vmatpush2.xpose.msra.mxu0 0.0
    %1681 = vmatprep.subr.mxu0 0.0
    %1682 = vmatpush2.xpose.msra.mxu0 0.0
    %1683 = vmatprep.subr.mxu0 0.0
    %1684 = vmatpush2.xpose.msra.mxu0 0.0
    %1685 = vmatprep.subr.mxu0 0.0
    %1686 = vmatpush2.xpose.msra.mxu0 0.0
    %1687 = vmatprep.subr.mxu0 0.0
    %1688 = vmatpush2.xpose.msra.mxu0 0.0
    %1689 = vmatprep.subr.mxu0 0.0
    %1690 = vmatpush2.xpose.msra.mxu0 0.0
    %1691 = vmatprep.subr.mxu0 0.0
    %1692 = vmatpush2.xpose.msra.mxu0 0.0
    %1693 = vmatprep.mubr.f32.mxu0 0.0
    %1694 = vmatmul.mubr.f32.gmra.mxu0 %v1616
    %v1695 = vpop.f32.mrf.mxu0
    %v1696 = vadd.f32 0.0, %v1695
    %v1697 = vpop.f32.mrf.mxu0
    %1698 = vdwg.mxu0
    %1699 = vmatprep.subr.mxu0 0.0
    %1700 = vmatpush1.xpose.msra.mxu0 0.0
    %1701 = vmatprep.subr.mxu0 0.0
    %1702 = vmatpush1.xpose.msra.mxu0 0.0
    %1703 = vmatprep.subr.mxu0 0.0
    %1704 = vmatpush1.xpose.msra.mxu0 0.0
    %1705 = vmatprep.subr.mxu0 0.0
    %1706 = vmatpush1.xpose.msra.mxu0 0.0
    %1707 = vmatprep.subr.mxu0 0.0
    %1708 = vmatpush1.xpose.msra.mxu0 0.0
    %1709 = vmatprep.subr.mxu0 0.0
    %1710 = vmatpush1.xpose.msra.mxu0 0.0
    %1711 = vmatprep.subr.mxu0 0.0
    %1712 = vmatpush1.xpose.msra.mxu0 0.0
    %1713 = vmatprep.subr.mxu0 0.0
    %1714 = vmatpush1.xpose.msra.mxu0 0.0
    %1715 = vmatprep.subr.mxu0 0.0
    %1716 = vmatpush1.xpose.msra.mxu0 0.0
    %1717 = vmatprep.subr.mxu0 0.0
    %1718 = vmatpush1.xpose.msra.mxu0 0.0
    %1719 = vmatprep.subr.mxu0 0.0
    %1720 = vmatpush1.xpose.msra.mxu0 0.0
    %1721 = vmatprep.subr.mxu0 0.0
    %1722 = vmatpush1.xpose.msra.mxu0 0.0
    %1723 = vmatprep.subr.mxu0 0.0
    %1724 = vmatpush1.xpose.msra.mxu0 0.0
    %1725 = vmatprep.subr.mxu0 0.0
    %1726 = vmatpush1.xpose.msra.mxu0 0.0
    %1727 = vmatprep.subr.mxu0 0.0
    %1728 = vmatpush1.xpose.msra.mxu0 0.0
    %1729 = vmatprep.subr.mxu0 0.0
    %1730 = vmatpush1.xpose.msra.mxu0 %v134
    %1731 = vmatprep.subr.mxu0 0.0
    %1732 = vmatpush2.xpose.msra.mxu0 0.0
    %1733 = vmatprep.subr.mxu0 0.0
    %1734 = vmatpush2.xpose.msra.mxu0 0.0
    %1735 = vmatprep.subr.mxu0 0.0
    %1736 = vmatpush2.xpose.msra.mxu0 0.0
    %1737 = vmatprep.subr.mxu0 0.0
    %1738 = vmatpush2.xpose.msra.mxu0 0.0
    %1739 = vmatprep.subr.mxu0 0.0
    %1740 = vmatpush2.xpose.msra.mxu0 0.0
    %1741 = vmatprep.subr.mxu0 0.0
    %1742 = vmatpush2.xpose.msra.mxu0 0.0
    %1743 = vmatprep.subr.mxu0 0.0
    %1744 = vmatpush2.xpose.msra.mxu0 0.0
    %1745 = vmatprep.subr.mxu0 0.0
    %1746 = vmatpush2.xpose.msra.mxu0 0.0
    %1747 = vmatprep.subr.mxu0 0.0
    %1748 = vmatpush2.xpose.msra.mxu0 0.0
    %1749 = vmatprep.subr.mxu0 0.0
    %1750 = vmatpush2.xpose.msra.mxu0 0.0
    %1751 = vmatprep.subr.mxu0 0.0
    %1752 = vmatpush2.xpose.msra.mxu0 0.0
    %1753 = vmatprep.subr.mxu0 0.0
    %1754 = vmatpush2.xpose.msra.mxu0 0.0
    %1755 = vmatprep.subr.mxu0 0.0
    %1756 = vmatpush2.xpose.msra.mxu0 0.0
    %1757 = vmatprep.subr.mxu0 0.0
    %1758 = vmatpush2.xpose.msra.mxu0 0.0
    %1759 = vmatprep.subr.mxu0 0.0
    %1760 = vmatpush2.xpose.msra.mxu0 0.0
    %1761 = vmatprep.subr.mxu0 0.0
    %1762 = vmatpush2.xpose.msra.mxu0 0.0
    %1763 = vmatprep.mubr.f32.mxu0 0.0
    %1764 = vmatmul.mubr.f32.gmra.mxu0 %v1620
    %v1765 = vpop.f32.mrf.mxu0
    %v1766 = vadd.f32 0.0, %v1765
    %v1767 = vpop.f32.mrf.mxu0
    %1768 = vdwg.mxu0
    %v1769 = vadd.f32 %v1616, %v1620
    %1770 = vmatprep.subr.mxu0 0.0
    %1771 = vmatpush1.xpose.msra.mxu0 0.0
    %1772 = vmatprep.subr.mxu0 0.0
    %1773 = vmatpush1.xpose.msra.mxu0 0.0
    %1774 = vmatprep.subr.mxu0 0.0
    %1775 = vmatpush1.xpose.msra.mxu0 0.0
    %1776 = vmatprep.subr.mxu0 0.0
    %1777 = vmatpush1.xpose.msra.mxu0 0.0
    %1778 = vmatprep.subr.mxu0 0.0
    %1779 = vmatpush1.xpose.msra.mxu0 0.0
    %1780 = vmatprep.subr.mxu0 0.0
    %1781 = vmatpush1.xpose.msra.mxu0 0.0
    %1782 = vmatprep.subr.mxu0 0.0
    %1783 = vmatpush1.xpose.msra.mxu0 0.0
    %1784 = vmatprep.subr.mxu0 0.0
    %1785 = vmatpush1.xpose.msra.mxu0 0.0
    %1786 = vmatprep.subr.mxu0 0.0
    %1787 = vmatpush1.xpose.msra.mxu0 0.0
    %1788 = vmatprep.subr.mxu0 0.0
    %1789 = vmatpush1.xpose.msra.mxu0 0.0
    %1790 = vmatprep.subr.mxu0 0.0
    %1791 = vmatpush1.xpose.msra.mxu0 0.0
    %1792 = vmatprep.subr.mxu0 0.0
    %1793 = vmatpush1.xpose.msra.mxu0 0.0
    %1794 = vmatprep.subr.mxu0 0.0
    %1795 = vmatpush1.xpose.msra.mxu0 0.0
    %1796 = vmatprep.subr.mxu0 0.0
    %1797 = vmatpush1.xpose.msra.mxu0 0.0
    %1798 = vmatprep.subr.mxu0 0.0
    %1799 = vmatpush1.xpose.msra.mxu0 0.0
    %1800 = vmatprep.subr.mxu0 0.0
    %1801 = vmatpush1.xpose.msra.mxu0 %v206
    %1802 = vmatprep.subr.mxu0 0.0
    %1803 = vmatpush2.xpose.msra.mxu0 0.0
    %1804 = vmatprep.subr.mxu0 0.0
    %1805 = vmatpush2.xpose.msra.mxu0 0.0
    %1806 = vmatprep.subr.mxu0 0.0
    %1807 = vmatpush2.xpose.msra.mxu0 0.0
    %1808 = vmatprep.subr.mxu0 0.0
    %1809 = vmatpush2.xpose.msra.mxu0 0.0
    %1810 = vmatprep.subr.mxu0 0.0
    %1811 = vmatpush2.xpose.msra.mxu0 0.0
    %1812 = vmatprep.subr.mxu0 0.0
    %1813 = vmatpush2.xpose.msra.mxu0 0.0
    %1814 = vmatprep.subr.mxu0 0.0
    %1815 = vmatpush2.xpose.msra.mxu0 0.0
    %1816 = vmatprep.subr.mxu0 0.0
    %1817 = vmatpush2.xpose.msra.mxu0 0.0
    %1818 = vmatprep.subr.mxu0 0.0
    %1819 = vmatpush2.xpose.msra.mxu0 0.0
    %1820 = vmatprep.subr.mxu0 0.0
    %1821 = vmatpush2.xpose.msra.mxu0 0.0
    %1822 = vmatprep.subr.mxu0 0.0
    %1823 = vmatpush2.xpose.msra.mxu0 0.0
    %1824 = vmatprep.subr.mxu0 0.0
    %1825 = vmatpush2.xpose.msra.mxu0 0.0
    %1826 = vmatprep.subr.mxu0 0.0
    %1827 = vmatpush2.xpose.msra.mxu0 0.0
    %1828 = vmatprep.subr.mxu0 0.0
    %1829 = vmatpush2.xpose.msra.mxu0 0.0
    %1830 = vmatprep.subr.mxu0 0.0
    %1831 = vmatpush2.xpose.msra.mxu0 0.0
    %1832 = vmatprep.subr.mxu0 0.0
    %1833 = vmatpush2.xpose.msra.mxu0 0.0
    %1834 = vmatprep.mubr.f32.mxu0 0.0
    %1835 = vmatmul.mubr.f32.gmra.mxu0 %v1769
    %v1836 = vpop.f32.mrf.mxu0
    %v1837 = vadd.f32 0.0, %v1836
    %v1838 = vpop.f32.mrf.mxu0
    %1839 = vdwg.mxu0
    %v1840 = vsub.f32 %v1696, %v1766
    %v1841 = vsub.f32 %v1837, %v1696
    %v1842 = vsub.f32 %v1841, %v1766
    %v1843 = vstv %s1628
    %v1844 = vadd.f32 %v43, %v1843
    %v1845 = vrcp.pop %v1844
    %v1846 = vmul.f32 1.0, %v1845
    %v1847 = vmul.f32 %v1843, %v1840
    %v1848 = vadd.f32 %v44, %v1847
    %v1850 = vlaneseq
    %v1851 = vshrl.u32 %v1850, 7
    %v1852 = vsub.s32 0, %v1851
    %v1853 = vrot.slane %v1846, %v1852
    %v1855 = vmul.f32 %v1853, %v1848
    %v1856 = vmul.f32 %v1843, %v1842
    %v1857 = vadd.f32 %v45, %v1856
    %v1858 = vmul.f32 %v1853, %v1857
    %v1859 = vsel %vm295, %v1846, 0.0
    %1860 = vadd.xlane.f32.xlu0 %v1859
    %v1861 = vpop.xlane.xlu0 %1860
    %v1862 = vrot.slane %v1861, 4
    %v1863 = vadd.f32 %v1861, %v1862
    %v1864 = vrot.slane %v1863, 2
    %v1865 = vadd.f32 %v1863, %v1864
    %v1866 = vrot.slane %v1865, 1
    %v1867 = vadd.f32 %v1865, %v1866
    %s1868 = vtos %v1867
    %v1869 = vrcp.pop 8.0
    %s1870 = vtos %v1869
    %s1871 = smul.f32 %s1868, %s1870
    %s1872 = smul.f32 %s1871, 0.025
    %v1873 = vsub.f32 %v1855, %v1840
    %v1874 = vsub.f32 %v1858, %v1842
    %v1876 = vsel %vm312, %v1873, 0
    %1878 = vmatprep.subr.mxu0 0.0
    %1879 = vmatpush1.msra.mxu0 0.0
    %1880 = vmatprep.subr.mxu0 0.0
    %1881 = vmatpush1.msra.mxu0 0.0
    %1882 = vmatprep.subr.mxu0 0.0
    %1883 = vmatpush1.msra.mxu0 0.0
    %1884 = vmatprep.subr.mxu0 0.0
    %1885 = vmatpush1.msra.mxu0 0.0
    %1886 = vmatprep.subr.mxu0 0.0
    %1887 = vmatpush1.msra.mxu0 0.0
    %1888 = vmatprep.subr.mxu0 0.0
    %1889 = vmatpush1.msra.mxu0 0.0
    %1890 = vmatprep.subr.mxu0 0.0
    %1891 = vmatpush1.msra.mxu0 0.0
    %1892 = vmatprep.subr.mxu0 0.0
    %1893 = vmatpush1.msra.mxu0 0.0
    %1894 = vmatprep.subr.mxu0 0.0
    %1895 = vmatpush1.msra.mxu0 0.0
    %1896 = vmatprep.subr.mxu0 0.0
    %1897 = vmatpush1.msra.mxu0 0.0
    %1898 = vmatprep.subr.mxu0 0.0
    %1899 = vmatpush1.msra.mxu0 0.0
    %1900 = vmatprep.subr.mxu0 0.0
    %1901 = vmatpush1.msra.mxu0 0.0
    %1902 = vmatprep.subr.mxu0 0.0
    %1903 = vmatpush1.msra.mxu0 0.0
    %1904 = vmatprep.subr.mxu0 0.0
    %1905 = vmatpush1.msra.mxu0 0.0
    %1906 = vmatprep.subr.mxu0 0.0
    %1907 = vmatpush1.msra.mxu0 0.0
    %1908 = vmatprep.subr.mxu0 0.0
    %1909 = vmatpush1.msra.mxu0 %v63
    %1910 = vmatprep.subr.mxu0 0.0
    %1911 = vmatpush2.msra.mxu0 0.0
    %1912 = vmatprep.subr.mxu0 0.0
    %1913 = vmatpush2.msra.mxu0 0.0
    %1914 = vmatprep.subr.mxu0 0.0
    %1915 = vmatpush2.msra.mxu0 0.0
    %1916 = vmatprep.subr.mxu0 0.0
    %1917 = vmatpush2.msra.mxu0 0.0
    %1918 = vmatprep.subr.mxu0 0.0
    %1919 = vmatpush2.msra.mxu0 0.0
    %1920 = vmatprep.subr.mxu0 0.0
    %1921 = vmatpush2.msra.mxu0 0.0
    %1922 = vmatprep.subr.mxu0 0.0
    %1923 = vmatpush2.msra.mxu0 0.0
    %1924 = vmatprep.subr.mxu0 0.0
    %1925 = vmatpush2.msra.mxu0 0.0
    %1926 = vmatprep.subr.mxu0 0.0
    %1927 = vmatpush2.msra.mxu0 0.0
    %1928 = vmatprep.subr.mxu0 0.0
    %1929 = vmatpush2.msra.mxu0 0.0
    %1930 = vmatprep.subr.mxu0 0.0
    %1931 = vmatpush2.msra.mxu0 0.0
    %1932 = vmatprep.subr.mxu0 0.0
    %1933 = vmatpush2.msra.mxu0 0.0
    %1934 = vmatprep.subr.mxu0 0.0
    %1935 = vmatpush2.msra.mxu0 0.0
    %1936 = vmatprep.subr.mxu0 0.0
    %1937 = vmatpush2.msra.mxu0 0.0
    %1938 = vmatprep.subr.mxu0 0.0
    %1939 = vmatpush2.msra.mxu0 0.0
    %1940 = vmatprep.subr.mxu0 0.0
    %1941 = vmatpush2.msra.mxu0 0.0
    %1942 = vmatprep.mubr.f32.mxu0 0.0
    %1943 = vmatmul.mubr.f32.gmra.mxu0 %v1876
    %v1944 = vpop.f32.mrf.mxu0
    %v1945 = vadd.f32 0.0, %v1944
    %v1946 = vpop.f32.mrf.mxu0
    %1947 = vdwg.mxu0
    %v1949 = vsel %vm312, %v1874, 0
    %1951 = vmatprep.subr.mxu0 0.0
    %1952 = vmatpush1.msra.mxu0 0.0
    %1953 = vmatprep.subr.mxu0 0.0
    %1954 = vmatpush1.msra.mxu0 0.0
    %1955 = vmatprep.subr.mxu0 0.0
    %1956 = vmatpush1.msra.mxu0 0.0
    %1957 = vmatprep.subr.mxu0 0.0
    %1958 = vmatpush1.msra.mxu0 0.0
    %1959 = vmatprep.subr.mxu0 0.0
    %1960 = vmatpush1.msra.mxu0 0.0
    %1961 = vmatprep.subr.mxu0 0.0
    %1962 = vmatpush1.msra.mxu0 0.0
    %1963 = vmatprep.subr.mxu0 0.0
    %1964 = vmatpush1.msra.mxu0 0.0
    %1965 = vmatprep.subr.mxu0 0.0
    %1966 = vmatpush1.msra.mxu0 0.0
    %1967 = vmatprep.subr.mxu0 0.0
    %1968 = vmatpush1.msra.mxu0 0.0
    %1969 = vmatprep.subr.mxu0 0.0
    %1970 = vmatpush1.msra.mxu0 0.0
    %1971 = vmatprep.subr.mxu0 0.0
    %1972 = vmatpush1.msra.mxu0 0.0
    %1973 = vmatprep.subr.mxu0 0.0
    %1974 = vmatpush1.msra.mxu0 0.0
    %1975 = vmatprep.subr.mxu0 0.0
    %1976 = vmatpush1.msra.mxu0 0.0
    %1977 = vmatprep.subr.mxu0 0.0
    %1978 = vmatpush1.msra.mxu0 0.0
    %1979 = vmatprep.subr.mxu0 0.0
    %1980 = vmatpush1.msra.mxu0 0.0
    %1981 = vmatprep.subr.mxu0 0.0
    %1982 = vmatpush1.msra.mxu0 %v134
    %1983 = vmatprep.subr.mxu0 0.0
    %1984 = vmatpush2.msra.mxu0 0.0
    %1985 = vmatprep.subr.mxu0 0.0
    %1986 = vmatpush2.msra.mxu0 0.0
    %1987 = vmatprep.subr.mxu0 0.0
    %1988 = vmatpush2.msra.mxu0 0.0
    %1989 = vmatprep.subr.mxu0 0.0
    %1990 = vmatpush2.msra.mxu0 0.0
    %1991 = vmatprep.subr.mxu0 0.0
    %1992 = vmatpush2.msra.mxu0 0.0
    %1993 = vmatprep.subr.mxu0 0.0
    %1994 = vmatpush2.msra.mxu0 0.0
    %1995 = vmatprep.subr.mxu0 0.0
    %1996 = vmatpush2.msra.mxu0 0.0
    %1997 = vmatprep.subr.mxu0 0.0
    %1998 = vmatpush2.msra.mxu0 0.0
    %1999 = vmatprep.subr.mxu0 0.0
    %2000 = vmatpush2.msra.mxu0 0.0
    %2001 = vmatprep.subr.mxu0 0.0
    %2002 = vmatpush2.msra.mxu0 0.0
    %2003 = vmatprep.subr.mxu0 0.0
    %2004 = vmatpush2.msra.mxu0 0.0
    %2005 = vmatprep.subr.mxu0 0.0
    %2006 = vmatpush2.msra.mxu0 0.0
    %2007 = vmatprep.subr.mxu0 0.0
    %2008 = vmatpush2.msra.mxu0 0.0
    %2009 = vmatprep.subr.mxu0 0.0
    %2010 = vmatpush2.msra.mxu0 0.0
    %2011 = vmatprep.subr.mxu0 0.0
    %2012 = vmatpush2.msra.mxu0 0.0
    %2013 = vmatprep.subr.mxu0 0.0
    %2014 = vmatpush2.msra.mxu0 0.0
    %2015 = vmatprep.mubr.f32.mxu0 0.0
    %2016 = vmatmul.mubr.f32.gmra.mxu0 %v1949
    %v2017 = vpop.f32.mrf.mxu0
    %v2018 = vadd.f32 0.0, %v2017
    %v2019 = vpop.f32.mrf.mxu0
    %2020 = vdwg.mxu0
    %v2021 = vadd.f32 %v1873, %v1874
    %v2023 = vsel %vm312, %v2021, 0
    %2025 = vmatprep.subr.mxu0 0.0
    %2026 = vmatpush1.msra.mxu0 0.0
    %2027 = vmatprep.subr.mxu0 0.0
    %2028 = vmatpush1.msra.mxu0 0.0
    %2029 = vmatprep.subr.mxu0 0.0
    %2030 = vmatpush1.msra.mxu0 0.0
    %2031 = vmatprep.subr.mxu0 0.0
    %2032 = vmatpush1.msra.mxu0 0.0
    %2033 = vmatprep.subr.mxu0 0.0
    %2034 = vmatpush1.msra.mxu0 0.0
    %2035 = vmatprep.subr.mxu0 0.0
    %2036 = vmatpush1.msra.mxu0 0.0
    %2037 = vmatprep.subr.mxu0 0.0
    %2038 = vmatpush1.msra.mxu0 0.0
    %2039 = vmatprep.subr.mxu0 0.0
    %2040 = vmatpush1.msra.mxu0 0.0
    %2041 = vmatprep.subr.mxu0 0.0
    %2042 = vmatpush1.msra.mxu0 0.0
    %2043 = vmatprep.subr.mxu0 0.0
    %2044 = vmatpush1.msra.mxu0 0.0
    %2045 = vmatprep.subr.mxu0 0.0
    %2046 = vmatpush1.msra.mxu0 0.0
    %2047 = vmatprep.subr.mxu0 0.0
    %2048 = vmatpush1.msra.mxu0 0.0
    %2049 = vmatprep.subr.mxu0 0.0
    %2050 = vmatpush1.msra.mxu0 0.0
    %2051 = vmatprep.subr.mxu0 0.0
    %2052 = vmatpush1.msra.mxu0 0.0
    %2053 = vmatprep.subr.mxu0 0.0
    %2054 = vmatpush1.msra.mxu0 0.0
    %2055 = vmatprep.subr.mxu0 0.0
    %2056 = vmatpush1.msra.mxu0 %v460
    %2057 = vmatprep.subr.mxu0 0.0
    %2058 = vmatpush2.msra.mxu0 0.0
    %2059 = vmatprep.subr.mxu0 0.0
    %2060 = vmatpush2.msra.mxu0 0.0
    %2061 = vmatprep.subr.mxu0 0.0
    %2062 = vmatpush2.msra.mxu0 0.0
    %2063 = vmatprep.subr.mxu0 0.0
    %2064 = vmatpush2.msra.mxu0 0.0
    %2065 = vmatprep.subr.mxu0 0.0
    %2066 = vmatpush2.msra.mxu0 0.0
    %2067 = vmatprep.subr.mxu0 0.0
    %2068 = vmatpush2.msra.mxu0 0.0
    %2069 = vmatprep.subr.mxu0 0.0
    %2070 = vmatpush2.msra.mxu0 0.0
    %2071 = vmatprep.subr.mxu0 0.0
    %2072 = vmatpush2.msra.mxu0 0.0
    %2073 = vmatprep.subr.mxu0 0.0
    %2074 = vmatpush2.msra.mxu0 0.0
    %2075 = vmatprep.subr.mxu0 0.0
    %2076 = vmatpush2.msra.mxu0 0.0
    %2077 = vmatprep.subr.mxu0 0.0
    %2078 = vmatpush2.msra.mxu0 0.0
    %2079 = vmatprep.subr.mxu0 0.0
    %2080 = vmatpush2.msra.mxu0 0.0
    %2081 = vmatprep.subr.mxu0 0.0
    %2082 = vmatpush2.msra.mxu0 0.0
    %2083 = vmatprep.subr.mxu0 0.0
    %2084 = vmatpush2.msra.mxu0 0.0
    %2085 = vmatprep.subr.mxu0 0.0
    %2086 = vmatpush2.msra.mxu0 0.0
    %2087 = vmatprep.subr.mxu0 0.0
    %2088 = vmatpush2.msra.mxu0 0.0
    %2089 = vmatprep.mubr.f32.mxu0 0.0
    %2090 = vmatmul.mubr.f32.gmra.mxu0 %v2023
    %v2091 = vpop.f32.mrf.mxu0
    %v2092 = vadd.f32 0.0, %v2091
    %v2093 = vpop.f32.mrf.mxu0
    %2094 = vdwg.mxu0
    %v2095 = vadd.f32 %v1945, %v2018
    %v2096 = vsub.f32 %v2092, %v1945
    %v2097 = vadd.f32 %v2096, %v2018
    %v2098 = vadd.f32 %v2095, %v1616
    %v2099 = vadd.f32 %v2097, %v1620
    %s2100 = smul.f32 %s1872, 0.5
    %s2101 = smul.f32 %s1624, 0.5
    %s2102 = sadd.f32 %s2100, %s2101
    %v2103 = vstv %s1624
    %v2104 = vrcp.pop %v2103
    %s2105 = vtos %v2104
    %s2106 = smul.f32 %s2102, %s2105
    %s2107 = smax.f32 %s2106, 1e-05
    %s2108 = smin.f32 %s2107, 0.99999
    %s2109 = ssub.f32 1.0, %s2108
    %v2110 = vstv %s2109
    %v2111 = vrcp.pop %v2110
    %s2112 = vtos %v2111
    %v2113 = vstv %s2108
    %v2114 = vmul.f32 %v2113, %v1616
    %v2115 = vsub.f32 %v2098, %v2114
    %v2116 = vstv %s2112
    %v2117 = vmul.f32 %v2115, %v2116
    %v2118 = vmul.f32 %v2113, %v1620
    %v2119 = vsub.f32 %v2099, %v2118
    %v2120 = vmul.f32 %v2119, %v2116
    %s2121 = smul.f32 %s2108, %s2112
    %s2122 = smul.f32 %s2121, %s1624
    %s2123 = smax.f32 %s2122, 1e-09
    %s2124 = smin.f32 %s2123, 100000.0
    %v2125 = vstv %s2124
    %v2126 = vrcp.pop %v2125
    %s2127 = vtos %v2126
    %v2128 = vstv %s2127
    %v2129 = vmul.f32 %v2117, %v2128
    %v2130 = vmul.f32 %v2120, %v2128
    %v2131 = vmul.f32 %v2130, 0.0
    %v2132 = vadd.f32 %v2129, %v2131
    %v2133 = vmul.f32 %v2129, -4.371139e-08
    %v2134 = vadd.f32 %v2133, %v2130
    %v2135 = vmul.f32 %v2129, -1.0
    %v2136 = vmul.f32 %v2130, -8.742278e-08
    %v2137 = vadd.f32 %v2135, %v2136
    %v2138 = vmul.f32 %v2129, 1.1924881e-08
    %v2139 = vmul.f32 %v2130, -1.0
    %v2140 = vadd.f32 %v2138, %v2139
    %v2141 = vand.u32 2147483647, %v2132
    %v2142 = vmax.f32 %v2141, 0.0
    %v2143 = vand.u32 2147483647, %v2134
    %v2144 = vmax.f32 %v2142, %v2143
    %2145 = vmax.xlane.f32.xlu0 %v2144
    %v2146 = vpop.xlane.xlu0 %2145
    %v2147 = vrot.slane %v2146, 4
    %v2148 = vmax.f32 %v2146, %v2147
    %v2149 = vrot.slane %v2148, 2
    %v2150 = vmax.f32 %v2148, %v2149
    %v2151 = vrot.slane %v2150, 1
    %v2152 = vmax.f32 %v2150, %v2151
    %s2153 = vtos %v2152
    %v2154 = vstv %s2153
    %v2155 = vsub.f32 %v2132, %v2154
    %v2156 = vmul.f32 %v2155, 1.442695
    %v2157 = vpow.pop %v2156
    %v2158 = vadd.f32 %v2157, 0.0
    %v2159 = vmul.f32 %v2157, 0.0
    %v2160 = vadd.f32 %v2159, 0.0
    %v2161 = vsub.f32 %v2134, %v2154
    %v2162 = vmul.f32 %v2161, 1.442695
    %v2163 = vpow.pop %v2162
    %v2164 = vadd.f32 %v2158, %v2163
    %v2165 = vmul.f32 %v2163, -4.371139e-08
    %v2166 = vadd.f32 %v2158, %v2165
    %v2167 = vadd.f32 %v2160, %v2163
    %v2168 = vsub.f32 %v2137, %v2154
    %v2169 = vmul.f32 %v2168, 1.442695
    %v2170 = vpow.pop %v2169
    %v2171 = vadd.f32 %v2164, %v2170
    %v2172 = vmul.f32 %v2170, -1.0
    %v2173 = vadd.f32 %v2166, %v2172
    %v2174 = vmul.f32 %v2170, -8.742278e-08
    %v2175 = vadd.f32 %v2167, %v2174
    %v2176 = vsub.f32 %v2140, %v2154
    %v2177 = vmul.f32 %v2176, 1.442695
    %v2178 = vpow.pop %v2177
    %v2179 = vadd.f32 %v2171, %v2178
    %v2180 = vmul.f32 %v2178, 1.1924881e-08
    %v2181 = vadd.f32 %v2173, %v2180
    %v2182 = vmul.f32 %v2178, -1.0
    %v2183 = vadd.f32 %v2175, %v2182
    %2184 = vmatprep.subr.mxu0 0.0
    %2185 = vmatpush1.msra.mxu0 %v61
    %2186 = vmatprep.subr.mxu0 0.0
    %2187 = vmatpush1.msra.mxu0 %v60
    %2188 = vmatprep.subr.mxu0 0.0
    %2189 = vmatpush1.msra.mxu0 %v59
    %2190 = vmatprep.subr.mxu0 0.0
    %2191 = vmatpush1.msra.mxu0 %v58
    %2192 = vmatprep.subr.mxu0 0.0
    %2193 = vmatpush1.msra.mxu0 %v57
    %2194 = vmatprep.subr.mxu0 0.0
    %2195 = vmatpush1.msra.mxu0 %v56
    %2196 = vmatprep.subr.mxu0 0.0
    %2197 = vmatpush1.msra.mxu0 %v55
    %2198 = vmatprep.subr.mxu0 0.0
    %2199 = vmatpush1.msra.mxu0 %v54
    %2200 = vmatprep.subr.mxu0 0.0
    %2201 = vmatpush1.msra.mxu0 %v53
    %2202 = vmatprep.subr.mxu0 0.0
    %2203 = vmatpush1.msra.mxu0 %v52
    %2204 = vmatprep.subr.mxu0 0.0
    %2205 = vmatpush1.msra.mxu0 %v51
    %2206 = vmatprep.subr.mxu0 0.0
    %2207 = vmatpush1.msra.mxu0 %v50
    %2208 = vmatprep.subr.mxu0 0.0
    %2209 = vmatpush1.msra.mxu0 %v49
    %2210 = vmatprep.subr.mxu0 0.0
    %2211 = vmatpush1.msra.mxu0 %v48
    %2212 = vmatprep.subr.mxu0 0.0
    %2213 = vmatpush1.msra.mxu0 %v47
    %2214 = vmatprep.subr.mxu0 0.0
    %2215 = vmatpush1.msra.mxu0 %v46
    %2216 = vmatprep.subr.mxu0 0.0
    %2217 = vmatpush2.msra.mxu0 0.0
    %2218 = vmatprep.subr.mxu0 0.0
    %2219 = vmatpush2.msra.mxu0 0.0
    %2220 = vmatprep.subr.mxu0 0.0
    %2221 = vmatpush2.msra.mxu0 0.0
    %2222 = vmatprep.subr.mxu0 0.0
    %2223 = vmatpush2.msra.mxu0 0.0
    %2224 = vmatprep.subr.mxu0 0.0
    %2225 = vmatpush2.msra.mxu0 0.0
    %2226 = vmatprep.subr.mxu0 0.0
    %2227 = vmatpush2.msra.mxu0 0.0
    %2228 = vmatprep.subr.mxu0 0.0
    %2229 = vmatpush2.msra.mxu0 0.0
    %2230 = vmatprep.subr.mxu0 0.0
    %2231 = vmatpush2.msra.mxu0 0.0
    %2232 = vmatprep.subr.mxu0 0.0
    %2233 = vmatpush2.msra.mxu0 0.0
    %2234 = vmatprep.subr.mxu0 0.0
    %2235 = vmatpush2.msra.mxu0 0.0
    %2236 = vmatprep.subr.mxu0 0.0
    %2237 = vmatpush2.msra.mxu0 0.0
    %2238 = vmatprep.subr.mxu0 0.0
    %2239 = vmatpush2.msra.mxu0 0.0
    %2240 = vmatprep.subr.mxu0 0.0
    %2241 = vmatpush2.msra.mxu0 0.0
    %2242 = vmatprep.subr.mxu0 0.0
    %2243 = vmatpush2.msra.mxu0 0.0
    %2244 = vmatprep.subr.mxu0 0.0
    %2245 = vmatpush2.msra.mxu0 0.0
    %2246 = vmatprep.subr.mxu0 0.0
    %2247 = vmatpush2.msra.mxu0 0.0
    %2248 = vmatprep.mubr.f32.mxu0 0.0
    %2249 = vmatmul.mubr.f32.gmra.mxu0 %v2179
    %v2250 = vpop.f32.mrf.mxu0
    %v2251 = vadd.f32 0.0, %v2250
    %v2252 = vpop.f32.mrf.mxu0
    %2253 = vdwg.mxu0
    %v2255 = vsel %vm691, %v2251, 0
    %2257 = vmatprep.subr.mxu0 0.0
    %2258 = vmatpush1.xpose.msra.mxu0 %v741
    %2259 = vmatprep.subr.mxu0 0.0
    %2260 = vmatpush1.xpose.msra.mxu0 %v738
    %2261 = vmatprep.subr.mxu0 0.0
    %2262 = vmatpush1.xpose.msra.mxu0 %v735
    %2263 = vmatprep.subr.mxu0 0.0
    %2264 = vmatpush1.xpose.msra.mxu0 %v732
    %2265 = vmatprep.subr.mxu0 0.0
    %2266 = vmatpush1.xpose.msra.mxu0 %v729
    %2267 = vmatprep.subr.mxu0 0.0
    %2268 = vmatpush1.xpose.msra.mxu0 %v726
    %2269 = vmatprep.subr.mxu0 0.0
    %2270 = vmatpush1.xpose.msra.mxu0 %v723
    %2271 = vmatprep.subr.mxu0 0.0
    %2272 = vmatpush1.xpose.msra.mxu0 %v720
    %2273 = vmatprep.subr.mxu0 0.0
    %2274 = vmatpush1.xpose.msra.mxu0 %v717
    %2275 = vmatprep.subr.mxu0 0.0
    %2276 = vmatpush1.xpose.msra.mxu0 %v714
    %2277 = vmatprep.subr.mxu0 0.0
    %2278 = vmatpush1.xpose.msra.mxu0 %v711
    %2279 = vmatprep.subr.mxu0 0.0
    %2280 = vmatpush1.xpose.msra.mxu0 %v708
    %2281 = vmatprep.subr.mxu0 0.0
    %2282 = vmatpush1.xpose.msra.mxu0 %v705
    %2283 = vmatprep.subr.mxu0 0.0
    %2284 = vmatpush1.xpose.msra.mxu0 %v702
    %2285 = vmatprep.subr.mxu0 0.0
    %2286 = vmatpush1.xpose.msra.mxu0 %v699
    %2287 = vmatprep.subr.mxu0 0.0
    %2288 = vmatpush1.xpose.msra.mxu0 %v696
    %2289 = vmatprep.subr.mxu0 0.0
    %2290 = vmatpush2.xpose.msra.mxu0 0.0
    %2291 = vmatprep.subr.mxu0 0.0
    %2292 = vmatpush2.xpose.msra.mxu0 0.0
    %2293 = vmatprep.subr.mxu0 0.0
    %2294 = vmatpush2.xpose.msra.mxu0 0.0
    %2295 = vmatprep.subr.mxu0 0.0
    %2296 = vmatpush2.xpose.msra.mxu0 0.0
    %2297 = vmatprep.subr.mxu0 0.0
    %2298 = vmatpush2.xpose.msra.mxu0 0.0
    %2299 = vmatprep.subr.mxu0 0.0
    %2300 = vmatpush2.xpose.msra.mxu0 0.0
    %2301 = vmatprep.subr.mxu0 0.0
    %2302 = vmatpush2.xpose.msra.mxu0 0.0
    %2303 = vmatprep.subr.mxu0 0.0
    %2304 = vmatpush2.xpose.msra.mxu0 0.0
    %2305 = vmatprep.subr.mxu0 0.0
    %2306 = vmatpush2.xpose.msra.mxu0 0.0
    %2307 = vmatprep.subr.mxu0 0.0
    %2308 = vmatpush2.xpose.msra.mxu0 0.0
    %2309 = vmatprep.subr.mxu0 0.0
    %2310 = vmatpush2.xpose.msra.mxu0 0.0
    %2311 = vmatprep.subr.mxu0 0.0
    %2312 = vmatpush2.xpose.msra.mxu0 0.0
    %2313 = vmatprep.subr.mxu0 0.0
    %2314 = vmatpush2.xpose.msra.mxu0 0.0
    %2315 = vmatprep.subr.mxu0 0.0
    %2316 = vmatpush2.xpose.msra.mxu0 0.0
    %2317 = vmatprep.subr.mxu0 0.0
    %2318 = vmatpush2.xpose.msra.mxu0 0.0
    %2319 = vmatprep.subr.mxu0 0.0
    %2320 = vmatpush2.xpose.msra.mxu0 0.0
    %2321 = vmatprep.mubr.f32.mxu0 0.0
    %2322 = vmatmul.mubr.f32.gmra.mxu0 %v2255
    %v2323 = vpop.f32.mrf.mxu0
    %v2324 = vadd.f32 0.0, %v2323
    %v2325 = vpop.f32.mrf.mxu0
    %2326 = vdwg.mxu0
    %v2327 = vmax.f32 %v2324, 1e-30
    %v2328 = vrcp.pop %v2327
    %v2329 = vmul.f32 1.0, %v2328
    %v2330 = vmul.f32 %v2181, %v2329
    %v2331 = vmul.f32 %v2183, %v2329
    %v2332 = vmul.f32 %v2330, %v2330
    %v2333 = vmul.f32 %v2331, %v2331
    %v2334 = vadd.f32 %v2332, %v2333
    %v2335 = vmul.f32 %v2179, %v2329
    %v2336 = vsub.f32 1.0, %v2335
    %v2337 = vmul.f32 %v2334, %v2336
    %v2338 = vmul.f32 %v2334, %v2179
    %v2339 = vmul.f32 %v2330, %v2181
    %v2340 = vmul.f32 %v2331, %v2183
    %v2341 = vadd.f32 %v2339, %v2340
    %v2342 = vmul.f32 %v2341, 2.0
    %v2343 = vsub.f32 %v2338, %v2342
    %v2344 = vadd.f32 %v2343, %v2179
    %v2345 = vmul.f32 %v2344, %v2329
    %v2346 = vadd.f32 %v2337, %v2345
    %v2347 = vmul.f32 %v2346, %v42
    %2348 = vadd.xlane.f32.xlu0 %v2347
    %v2349 = vpop.xlane.xlu0 %2348
    %v2350 = vrot.slane %v2349, 4
    %v2351 = vadd.f32 %v2349, %v2350
    %v2352 = vrot.slane %v2351, 2
    %v2353 = vadd.f32 %v2351, %v2352
    %v2354 = vrot.slane %v2353, 1
    %v2355 = vadd.f32 %v2353, %v2354
    %s2356 = vtos %v2355
    %s2357 = smul.f32 %s2356, 0.03125
    %v2358 = vstv %s2124
    %v2359 = vrcp.pop %v2358
    %s2360 = vtos %v2359
    %s2361 = smul.f32 %s2357, %s2360
    %s2362 = smax.f32 %s2361, 1e-05
    %s2363 = smin.f32 %s2362, 0.99999
    %s2364 = ssub.f32 1.0, %s2363
    %v2365 = vstv %s2364
    %v2366 = vrcp.pop %v2365
    %s2367 = vtos %v2366
    %v2368 = vstv %s2363
    %v2369 = vmul.f32 %v2368, %v2117
    %v2370 = vsub.f32 %v2330, %v2369
    %v2371 = vstv %s2367
    %v2372 = vmul.f32 %v2370, %v2371
    %v2373 = vmul.f32 %v2372, %v42
    %v2374 = vmul.f32 %v2368, %v2120
    %v2375 = vsub.f32 %v2331, %v2374
    %v2376 = vmul.f32 %v2375, %v2371
    %v2377 = vmul.f32 %v2376, %v42
    %s2378 = smul.f32 %s2124, %s2363
    %s2379 = smul.f32 %s2378, %s2367
    %s2380 = smax.f32 %s2379, 1e-09
    %s2381 = smin.f32 %s2380, 100000.0
    %v2382 = vstv %s2381
    %v2383 = vrcp.pop %v2382
    %s2384 = vtos %v2383
    %s2385 = smul.f32 0.025, %s2384
    %2386 = vmatprep.subr.mxu0 0.0
    %2387 = vmatpush1.xpose.msra.mxu0 0.0
    %2388 = vmatprep.subr.mxu0 0.0
    %2389 = vmatpush1.xpose.msra.mxu0 0.0
    %2390 = vmatprep.subr.mxu0 0.0
    %2391 = vmatpush1.xpose.msra.mxu0 0.0
    %2392 = vmatprep.subr.mxu0 0.0
    %2393 = vmatpush1.xpose.msra.mxu0 0.0
    %2394 = vmatprep.subr.mxu0 0.0
    %2395 = vmatpush1.xpose.msra.mxu0 0.0
    %2396 = vmatprep.subr.mxu0 0.0
    %2397 = vmatpush1.xpose.msra.mxu0 0.0
    %2398 = vmatprep.subr.mxu0 0.0
    %2399 = vmatpush1.xpose.msra.mxu0 0.0
    %2400 = vmatprep.subr.mxu0 0.0
    %2401 = vmatpush1.xpose.msra.mxu0 0.0
    %2402 = vmatprep.subr.mxu0 0.0
    %2403 = vmatpush1.xpose.msra.mxu0 0.0
    %2404 = vmatprep.subr.mxu0 0.0
    %2405 = vmatpush1.xpose.msra.mxu0 0.0
    %2406 = vmatprep.subr.mxu0 0.0
    %2407 = vmatpush1.xpose.msra.mxu0 0.0
    %2408 = vmatprep.subr.mxu0 0.0
    %2409 = vmatpush1.xpose.msra.mxu0 0.0
    %2410 = vmatprep.subr.mxu0 0.0
    %2411 = vmatpush1.xpose.msra.mxu0 0.0
    %2412 = vmatprep.subr.mxu0 0.0
    %2413 = vmatpush1.xpose.msra.mxu0 0.0
    %2414 = vmatprep.subr.mxu0 0.0
    %2415 = vmatpush1.xpose.msra.mxu0 0.0
    %2416 = vmatprep.subr.mxu0 0.0
    %2417 = vmatpush1.xpose.msra.mxu0 %v63
    %2418 = vmatprep.subr.mxu0 0.0
    %2419 = vmatpush2.xpose.msra.mxu0 0.0
    %2420 = vmatprep.subr.mxu0 0.0
    %2421 = vmatpush2.xpose.msra.mxu0 0.0
    %2422 = vmatprep.subr.mxu0 0.0
    %2423 = vmatpush2.xpose.msra.mxu0 0.0
    %2424 = vmatprep.subr.mxu0 0.0
    %2425 = vmatpush2.xpose.msra.mxu0 0.0
    %2426 = vmatprep.subr.mxu0 0.0
    %2427 = vmatpush2.xpose.msra.mxu0 0.0
    %2428 = vmatprep.subr.mxu0 0.0
    %2429 = vmatpush2.xpose.msra.mxu0 0.0
    %2430 = vmatprep.subr.mxu0 0.0
    %2431 = vmatpush2.xpose.msra.mxu0 0.0
    %2432 = vmatprep.subr.mxu0 0.0
    %2433 = vmatpush2.xpose.msra.mxu0 0.0
    %2434 = vmatprep.subr.mxu0 0.0
    %2435 = vmatpush2.xpose.msra.mxu0 0.0
    %2436 = vmatprep.subr.mxu0 0.0
    %2437 = vmatpush2.xpose.msra.mxu0 0.0
    %2438 = vmatprep.subr.mxu0 0.0
    %2439 = vmatpush2.xpose.msra.mxu0 0.0
    %2440 = vmatprep.subr.mxu0 0.0
    %2441 = vmatpush2.xpose.msra.mxu0 0.0
    %2442 = vmatprep.subr.mxu0 0.0
    %2443 = vmatpush2.xpose.msra.mxu0 0.0
    %2444 = vmatprep.subr.mxu0 0.0
    %2445 = vmatpush2.xpose.msra.mxu0 0.0
    %2446 = vmatprep.subr.mxu0 0.0
    %2447 = vmatpush2.xpose.msra.mxu0 0.0
    %2448 = vmatprep.subr.mxu0 0.0
    %2449 = vmatpush2.xpose.msra.mxu0 0.0
    %2450 = vmatprep.mubr.f32.mxu0 0.0
    %2451 = vmatmul.mubr.f32.gmra.mxu0 %v2373
    %v2452 = vpop.f32.mrf.mxu0
    %v2453 = vadd.f32 0.0, %v2452
    %v2454 = vpop.f32.mrf.mxu0
    %2455 = vdwg.mxu0
    %2456 = vmatprep.subr.mxu0 0.0
    %2457 = vmatpush1.xpose.msra.mxu0 0.0
    %2458 = vmatprep.subr.mxu0 0.0
    %2459 = vmatpush1.xpose.msra.mxu0 0.0
    %2460 = vmatprep.subr.mxu0 0.0
    %2461 = vmatpush1.xpose.msra.mxu0 0.0
    %2462 = vmatprep.subr.mxu0 0.0
    %2463 = vmatpush1.xpose.msra.mxu0 0.0
    %2464 = vmatprep.subr.mxu0 0.0
    %2465 = vmatpush1.xpose.msra.mxu0 0.0
    %2466 = vmatprep.subr.mxu0 0.0
    %2467 = vmatpush1.xpose.msra.mxu0 0.0
    %2468 = vmatprep.subr.mxu0 0.0
    %2469 = vmatpush1.xpose.msra.mxu0 0.0
    %2470 = vmatprep.subr.mxu0 0.0
    %2471 = vmatpush1.xpose.msra.mxu0 0.0
    %2472 = vmatprep.subr.mxu0 0.0
    %2473 = vmatpush1.xpose.msra.mxu0 0.0
    %2474 = vmatprep.subr.mxu0 0.0
    %2475 = vmatpush1.xpose.msra.mxu0 0.0
    %2476 = vmatprep.subr.mxu0 0.0
    %2477 = vmatpush1.xpose.msra.mxu0 0.0
    %2478 = vmatprep.subr.mxu0 0.0
    %2479 = vmatpush1.xpose.msra.mxu0 0.0
    %2480 = vmatprep.subr.mxu0 0.0
    %2481 = vmatpush1.xpose.msra.mxu0 0.0
    %2482 = vmatprep.subr.mxu0 0.0
    %2483 = vmatpush1.xpose.msra.mxu0 0.0
    %2484 = vmatprep.subr.mxu0 0.0
    %2485 = vmatpush1.xpose.msra.mxu0 0.0
    %2486 = vmatprep.subr.mxu0 0.0
    %2487 = vmatpush1.xpose.msra.mxu0 %v134
    %2488 = vmatprep.subr.mxu0 0.0
    %2489 = vmatpush2.xpose.msra.mxu0 0.0
    %2490 = vmatprep.subr.mxu0 0.0
    %2491 = vmatpush2.xpose.msra.mxu0 0.0
    %2492 = vmatprep.subr.mxu0 0.0
    %2493 = vmatpush2.xpose.msra.mxu0 0.0
    %2494 = vmatprep.subr.mxu0 0.0
    %2495 = vmatpush2.xpose.msra.mxu0 0.0
    %2496 = vmatprep.subr.mxu0 0.0
    %2497 = vmatpush2.xpose.msra.mxu0 0.0
    %2498 = vmatprep.subr.mxu0 0.0
    %2499 = vmatpush2.xpose.msra.mxu0 0.0
    %2500 = vmatprep.subr.mxu0 0.0
    %2501 = vmatpush2.xpose.msra.mxu0 0.0
    %2502 = vmatprep.subr.mxu0 0.0
    %2503 = vmatpush2.xpose.msra.mxu0 0.0
    %2504 = vmatprep.subr.mxu0 0.0
    %2505 = vmatpush2.xpose.msra.mxu0 0.0
    %2506 = vmatprep.subr.mxu0 0.0
    %2507 = vmatpush2.xpose.msra.mxu0 0.0
    %2508 = vmatprep.subr.mxu0 0.0
    %2509 = vmatpush2.xpose.msra.mxu0 0.0
    %2510 = vmatprep.subr.mxu0 0.0
    %2511 = vmatpush2.xpose.msra.mxu0 0.0
    %2512 = vmatprep.subr.mxu0 0.0
    %2513 = vmatpush2.xpose.msra.mxu0 0.0
    %2514 = vmatprep.subr.mxu0 0.0
    %2515 = vmatpush2.xpose.msra.mxu0 0.0
    %2516 = vmatprep.subr.mxu0 0.0
    %2517 = vmatpush2.xpose.msra.mxu0 0.0
    %2518 = vmatprep.subr.mxu0 0.0
    %2519 = vmatpush2.xpose.msra.mxu0 0.0
    %2520 = vmatprep.mubr.f32.mxu0 0.0
    %2521 = vmatmul.mubr.f32.gmra.mxu0 %v2377
    %v2522 = vpop.f32.mrf.mxu0
    %v2523 = vadd.f32 0.0, %v2522
    %v2524 = vpop.f32.mrf.mxu0
    %2525 = vdwg.mxu0
    %v2526 = vadd.f32 %v2373, %v2377
    %2527 = vmatprep.subr.mxu0 0.0
    %2528 = vmatpush1.xpose.msra.mxu0 0.0
    %2529 = vmatprep.subr.mxu0 0.0
    %2530 = vmatpush1.xpose.msra.mxu0 0.0
    %2531 = vmatprep.subr.mxu0 0.0
    %2532 = vmatpush1.xpose.msra.mxu0 0.0
    %2533 = vmatprep.subr.mxu0 0.0
    %2534 = vmatpush1.xpose.msra.mxu0 0.0
    %2535 = vmatprep.subr.mxu0 0.0
    %2536 = vmatpush1.xpose.msra.mxu0 0.0
    %2537 = vmatprep.subr.mxu0 0.0
    %2538 = vmatpush1.xpose.msra.mxu0 0.0
    %2539 = vmatprep.subr.mxu0 0.0
    %2540 = vmatpush1.xpose.msra.mxu0 0.0
    %2541 = vmatprep.subr.mxu0 0.0
    %2542 = vmatpush1.xpose.msra.mxu0 0.0
    %2543 = vmatprep.subr.mxu0 0.0
    %2544 = vmatpush1.xpose.msra.mxu0 0.0
    %2545 = vmatprep.subr.mxu0 0.0
    %2546 = vmatpush1.xpose.msra.mxu0 0.0
    %2547 = vmatprep.subr.mxu0 0.0
    %2548 = vmatpush1.xpose.msra.mxu0 0.0
    %2549 = vmatprep.subr.mxu0 0.0
    %2550 = vmatpush1.xpose.msra.mxu0 0.0
    %2551 = vmatprep.subr.mxu0 0.0
    %2552 = vmatpush1.xpose.msra.mxu0 0.0
    %2553 = vmatprep.subr.mxu0 0.0
    %2554 = vmatpush1.xpose.msra.mxu0 0.0
    %2555 = vmatprep.subr.mxu0 0.0
    %2556 = vmatpush1.xpose.msra.mxu0 0.0
    %2557 = vmatprep.subr.mxu0 0.0
    %2558 = vmatpush1.xpose.msra.mxu0 %v206
    %2559 = vmatprep.subr.mxu0 0.0
    %2560 = vmatpush2.xpose.msra.mxu0 0.0
    %2561 = vmatprep.subr.mxu0 0.0
    %2562 = vmatpush2.xpose.msra.mxu0 0.0
    %2563 = vmatprep.subr.mxu0 0.0
    %2564 = vmatpush2.xpose.msra.mxu0 0.0
    %2565 = vmatprep.subr.mxu0 0.0
    %2566 = vmatpush2.xpose.msra.mxu0 0.0
    %2567 = vmatprep.subr.mxu0 0.0
    %2568 = vmatpush2.xpose.msra.mxu0 0.0
    %2569 = vmatprep.subr.mxu0 0.0
    %2570 = vmatpush2.xpose.msra.mxu0 0.0
    %2571 = vmatprep.subr.mxu0 0.0
    %2572 = vmatpush2.xpose.msra.mxu0 0.0
    %2573 = vmatprep.subr.mxu0 0.0
    %2574 = vmatpush2.xpose.msra.mxu0 0.0
    %2575 = vmatprep.subr.mxu0 0.0
    %2576 = vmatpush2.xpose.msra.mxu0 0.0
    %2577 = vmatprep.subr.mxu0 0.0
    %2578 = vmatpush2.xpose.msra.mxu0 0.0
    %2579 = vmatprep.subr.mxu0 0.0
    %2580 = vmatpush2.xpose.msra.mxu0 0.0
    %2581 = vmatprep.subr.mxu0 0.0
    %2582 = vmatpush2.xpose.msra.mxu0 0.0
    %2583 = vmatprep.subr.mxu0 0.0
    %2584 = vmatpush2.xpose.msra.mxu0 0.0
    %2585 = vmatprep.subr.mxu0 0.0
    %2586 = vmatpush2.xpose.msra.mxu0 0.0
    %2587 = vmatprep.subr.mxu0 0.0
    %2588 = vmatpush2.xpose.msra.mxu0 0.0
    %2589 = vmatprep.subr.mxu0 0.0
    %2590 = vmatpush2.xpose.msra.mxu0 0.0
    %2591 = vmatprep.mubr.f32.mxu0 0.0
    %2592 = vmatmul.mubr.f32.gmra.mxu0 %v2526
    %v2593 = vpop.f32.mrf.mxu0
    %v2594 = vadd.f32 0.0, %v2593
    %v2595 = vpop.f32.mrf.mxu0
    %2596 = vdwg.mxu0
    %v2597 = vsub.f32 %v2453, %v2523
    %v2598 = vsub.f32 %v2594, %v2453
    %v2599 = vsub.f32 %v2598, %v2523
    %v2600 = vstv %s2385
    %v2601 = vadd.f32 %v43, %v2600
    %v2602 = vrcp.pop %v2601
    %v2603 = vmul.f32 1.0, %v2602
    %v2604 = vmul.f32 %v2600, %v2597
    %v2605 = vadd.f32 %v44, %v2604
    %v2607 = vlaneseq
    %v2608 = vshrl.u32 %v2607, 7
    %v2609 = vsub.s32 0, %v2608
    %v2610 = vrot.slane %v2603, %v2609
    %v2612 = vmul.f32 %v2610, %v2605
    %v2613 = vmul.f32 %v2600, %v2599
    %v2614 = vadd.f32 %v45, %v2613
    %v2615 = vmul.f32 %v2610, %v2614
    %v2616 = vsel %vm295, %v2603, 0.0
    %2617 = vadd.xlane.f32.xlu0 %v2616
    %v2618 = vpop.xlane.xlu0 %2617
    %v2619 = vrot.slane %v2618, 4
    %v2620 = vadd.f32 %v2618, %v2619
    %v2621 = vrot.slane %v2620, 2
    %v2622 = vadd.f32 %v2620, %v2621
    %v2623 = vrot.slane %v2622, 1
    %v2624 = vadd.f32 %v2622, %v2623
    %s2625 = vtos %v2624
    %v2626 = vrcp.pop 8.0
    %s2627 = vtos %v2626
    %s2628 = smul.f32 %s2625, %s2627
    %s2629 = smul.f32 %s2628, 0.025
    %v2630 = vsub.f32 %v2612, %v2597
    %v2631 = vsub.f32 %v2615, %v2599
    %v2633 = vsel %vm312, %v2630, 0
    %2635 = vmatprep.subr.mxu0 0.0
    %2636 = vmatpush1.msra.mxu0 0.0
    %2637 = vmatprep.subr.mxu0 0.0
    %2638 = vmatpush1.msra.mxu0 0.0
    %2639 = vmatprep.subr.mxu0 0.0
    %2640 = vmatpush1.msra.mxu0 0.0
    %2641 = vmatprep.subr.mxu0 0.0
    %2642 = vmatpush1.msra.mxu0 0.0
    %2643 = vmatprep.subr.mxu0 0.0
    %2644 = vmatpush1.msra.mxu0 0.0
    %2645 = vmatprep.subr.mxu0 0.0
    %2646 = vmatpush1.msra.mxu0 0.0
    %2647 = vmatprep.subr.mxu0 0.0
    %2648 = vmatpush1.msra.mxu0 0.0
    %2649 = vmatprep.subr.mxu0 0.0
    %2650 = vmatpush1.msra.mxu0 0.0
    %2651 = vmatprep.subr.mxu0 0.0
    %2652 = vmatpush1.msra.mxu0 0.0
    %2653 = vmatprep.subr.mxu0 0.0
    %2654 = vmatpush1.msra.mxu0 0.0
    %2655 = vmatprep.subr.mxu0 0.0
    %2656 = vmatpush1.msra.mxu0 0.0
    %2657 = vmatprep.subr.mxu0 0.0
    %2658 = vmatpush1.msra.mxu0 0.0
    %2659 = vmatprep.subr.mxu0 0.0
    %2660 = vmatpush1.msra.mxu0 0.0
    %2661 = vmatprep.subr.mxu0 0.0
    %2662 = vmatpush1.msra.mxu0 0.0
    %2663 = vmatprep.subr.mxu0 0.0
    %2664 = vmatpush1.msra.mxu0 0.0
    %2665 = vmatprep.subr.mxu0 0.0
    %2666 = vmatpush1.msra.mxu0 %v63
    %2667 = vmatprep.subr.mxu0 0.0
    %2668 = vmatpush2.msra.mxu0 0.0
    %2669 = vmatprep.subr.mxu0 0.0
    %2670 = vmatpush2.msra.mxu0 0.0
    %2671 = vmatprep.subr.mxu0 0.0
    %2672 = vmatpush2.msra.mxu0 0.0
    %2673 = vmatprep.subr.mxu0 0.0
    %2674 = vmatpush2.msra.mxu0 0.0
    %2675 = vmatprep.subr.mxu0 0.0
    %2676 = vmatpush2.msra.mxu0 0.0
    %2677 = vmatprep.subr.mxu0 0.0
    %2678 = vmatpush2.msra.mxu0 0.0
    %2679 = vmatprep.subr.mxu0 0.0
    %2680 = vmatpush2.msra.mxu0 0.0
    %2681 = vmatprep.subr.mxu0 0.0
    %2682 = vmatpush2.msra.mxu0 0.0
    %2683 = vmatprep.subr.mxu0 0.0
    %2684 = vmatpush2.msra.mxu0 0.0
    %2685 = vmatprep.subr.mxu0 0.0
    %2686 = vmatpush2.msra.mxu0 0.0
    %2687 = vmatprep.subr.mxu0 0.0
    %2688 = vmatpush2.msra.mxu0 0.0
    %2689 = vmatprep.subr.mxu0 0.0
    %2690 = vmatpush2.msra.mxu0 0.0
    %2691 = vmatprep.subr.mxu0 0.0
    %2692 = vmatpush2.msra.mxu0 0.0
    %2693 = vmatprep.subr.mxu0 0.0
    %2694 = vmatpush2.msra.mxu0 0.0
    %2695 = vmatprep.subr.mxu0 0.0
    %2696 = vmatpush2.msra.mxu0 0.0
    %2697 = vmatprep.subr.mxu0 0.0
    %2698 = vmatpush2.msra.mxu0 0.0
    %2699 = vmatprep.mubr.f32.mxu0 0.0
    %2700 = vmatmul.mubr.f32.gmra.mxu0 %v2633
    %v2701 = vpop.f32.mrf.mxu0
    %v2702 = vadd.f32 0.0, %v2701
    %v2703 = vpop.f32.mrf.mxu0
    %2704 = vdwg.mxu0
    %v2706 = vsel %vm312, %v2631, 0
    %2708 = vmatprep.subr.mxu0 0.0
    %2709 = vmatpush1.msra.mxu0 0.0
    %2710 = vmatprep.subr.mxu0 0.0
    %2711 = vmatpush1.msra.mxu0 0.0
    %2712 = vmatprep.subr.mxu0 0.0
    %2713 = vmatpush1.msra.mxu0 0.0
    %2714 = vmatprep.subr.mxu0 0.0
    %2715 = vmatpush1.msra.mxu0 0.0
    %2716 = vmatprep.subr.mxu0 0.0
    %2717 = vmatpush1.msra.mxu0 0.0
    %2718 = vmatprep.subr.mxu0 0.0
    %2719 = vmatpush1.msra.mxu0 0.0
    %2720 = vmatprep.subr.mxu0 0.0
    %2721 = vmatpush1.msra.mxu0 0.0
    %2722 = vmatprep.subr.mxu0 0.0
    %2723 = vmatpush1.msra.mxu0 0.0
    %2724 = vmatprep.subr.mxu0 0.0
    %2725 = vmatpush1.msra.mxu0 0.0
    %2726 = vmatprep.subr.mxu0 0.0
    %2727 = vmatpush1.msra.mxu0 0.0
    %2728 = vmatprep.subr.mxu0 0.0
    %2729 = vmatpush1.msra.mxu0 0.0
    %2730 = vmatprep.subr.mxu0 0.0
    %2731 = vmatpush1.msra.mxu0 0.0
    %2732 = vmatprep.subr.mxu0 0.0
    %2733 = vmatpush1.msra.mxu0 0.0
    %2734 = vmatprep.subr.mxu0 0.0
    %2735 = vmatpush1.msra.mxu0 0.0
    %2736 = vmatprep.subr.mxu0 0.0
    %2737 = vmatpush1.msra.mxu0 0.0
    %2738 = vmatprep.subr.mxu0 0.0
    %2739 = vmatpush1.msra.mxu0 %v134
    %2740 = vmatprep.subr.mxu0 0.0
    %2741 = vmatpush2.msra.mxu0 0.0
    %2742 = vmatprep.subr.mxu0 0.0
    %2743 = vmatpush2.msra.mxu0 0.0
    %2744 = vmatprep.subr.mxu0 0.0
    %2745 = vmatpush2.msra.mxu0 0.0
    %2746 = vmatprep.subr.mxu0 0.0
    %2747 = vmatpush2.msra.mxu0 0.0
    %2748 = vmatprep.subr.mxu0 0.0
    %2749 = vmatpush2.msra.mxu0 0.0
    %2750 = vmatprep.subr.mxu0 0.0
    %2751 = vmatpush2.msra.mxu0 0.0
    %2752 = vmatprep.subr.mxu0 0.0
    %2753 = vmatpush2.msra.mxu0 0.0
    %2754 = vmatprep.subr.mxu0 0.0
    %2755 = vmatpush2.msra.mxu0 0.0
    %2756 = vmatprep.subr.mxu0 0.0
    %2757 = vmatpush2.msra.mxu0 0.0
    %2758 = vmatprep.subr.mxu0 0.0
    %2759 = vmatpush2.msra.mxu0 0.0
    %2760 = vmatprep.subr.mxu0 0.0
    %2761 = vmatpush2.msra.mxu0 0.0
    %2762 = vmatprep.subr.mxu0 0.0
    %2763 = vmatpush2.msra.mxu0 0.0
    %2764 = vmatprep.subr.mxu0 0.0
    %2765 = vmatpush2.msra.mxu0 0.0
    %2766 = vmatprep.subr.mxu0 0.0
    %2767 = vmatpush2.msra.mxu0 0.0
    %2768 = vmatprep.subr.mxu0 0.0
    %2769 = vmatpush2.msra.mxu0 0.0
    %2770 = vmatprep.subr.mxu0 0.0
    %2771 = vmatpush2.msra.mxu0 0.0
    %2772 = vmatprep.mubr.f32.mxu0 0.0
    %2773 = vmatmul.mubr.f32.gmra.mxu0 %v2706
    %v2774 = vpop.f32.mrf.mxu0
    %v2775 = vadd.f32 0.0, %v2774
    %v2776 = vpop.f32.mrf.mxu0
    %2777 = vdwg.mxu0
    %v2778 = vadd.f32 %v2630, %v2631
    %v2780 = vsel %vm312, %v2778, 0
    %2782 = vmatprep.subr.mxu0 0.0
    %2783 = vmatpush1.msra.mxu0 0.0
    %2784 = vmatprep.subr.mxu0 0.0
    %2785 = vmatpush1.msra.mxu0 0.0
    %2786 = vmatprep.subr.mxu0 0.0
    %2787 = vmatpush1.msra.mxu0 0.0
    %2788 = vmatprep.subr.mxu0 0.0
    %2789 = vmatpush1.msra.mxu0 0.0
    %2790 = vmatprep.subr.mxu0 0.0
    %2791 = vmatpush1.msra.mxu0 0.0
    %2792 = vmatprep.subr.mxu0 0.0
    %2793 = vmatpush1.msra.mxu0 0.0
    %2794 = vmatprep.subr.mxu0 0.0
    %2795 = vmatpush1.msra.mxu0 0.0
    %2796 = vmatprep.subr.mxu0 0.0
    %2797 = vmatpush1.msra.mxu0 0.0
    %2798 = vmatprep.subr.mxu0 0.0
    %2799 = vmatpush1.msra.mxu0 0.0
    %2800 = vmatprep.subr.mxu0 0.0
    %2801 = vmatpush1.msra.mxu0 0.0
    %2802 = vmatprep.subr.mxu0 0.0
    %2803 = vmatpush1.msra.mxu0 0.0
    %2804 = vmatprep.subr.mxu0 0.0
    %2805 = vmatpush1.msra.mxu0 0.0
    %2806 = vmatprep.subr.mxu0 0.0
    %2807 = vmatpush1.msra.mxu0 0.0
    %2808 = vmatprep.subr.mxu0 0.0
    %2809 = vmatpush1.msra.mxu0 0.0
    %2810 = vmatprep.subr.mxu0 0.0
    %2811 = vmatpush1.msra.mxu0 0.0
    %2812 = vmatprep.subr.mxu0 0.0
    %2813 = vmatpush1.msra.mxu0 %v460
    %2814 = vmatprep.subr.mxu0 0.0
    %2815 = vmatpush2.msra.mxu0 0.0
    %2816 = vmatprep.subr.mxu0 0.0
    %2817 = vmatpush2.msra.mxu0 0.0
    %2818 = vmatprep.subr.mxu0 0.0
    %2819 = vmatpush2.msra.mxu0 0.0
    %2820 = vmatprep.subr.mxu0 0.0
    %2821 = vmatpush2.msra.mxu0 0.0
    %2822 = vmatprep.subr.mxu0 0.0
    %2823 = vmatpush2.msra.mxu0 0.0
    %2824 = vmatprep.subr.mxu0 0.0
    %2825 = vmatpush2.msra.mxu0 0.0
    %2826 = vmatprep.subr.mxu0 0.0
    %2827 = vmatpush2.msra.mxu0 0.0
    %2828 = vmatprep.subr.mxu0 0.0
    %2829 = vmatpush2.msra.mxu0 0.0
    %2830 = vmatprep.subr.mxu0 0.0
    %2831 = vmatpush2.msra.mxu0 0.0
    %2832 = vmatprep.subr.mxu0 0.0
    %2833 = vmatpush2.msra.mxu0 0.0
    %2834 = vmatprep.subr.mxu0 0.0
    %2835 = vmatpush2.msra.mxu0 0.0
    %2836 = vmatprep.subr.mxu0 0.0
    %2837 = vmatpush2.msra.mxu0 0.0
    %2838 = vmatprep.subr.mxu0 0.0
    %2839 = vmatpush2.msra.mxu0 0.0
    %2840 = vmatprep.subr.mxu0 0.0
    %2841 = vmatpush2.msra.mxu0 0.0
    %2842 = vmatprep.subr.mxu0 0.0
    %2843 = vmatpush2.msra.mxu0 0.0
    %2844 = vmatprep.subr.mxu0 0.0
    %2845 = vmatpush2.msra.mxu0 0.0
    %2846 = vmatprep.mubr.f32.mxu0 0.0
    %2847 = vmatmul.mubr.f32.gmra.mxu0 %v2780
    %v2848 = vpop.f32.mrf.mxu0
    %v2849 = vadd.f32 0.0, %v2848
    %v2850 = vpop.f32.mrf.mxu0
    %2851 = vdwg.mxu0
    %v2852 = vadd.f32 %v2702, %v2775
    %v2853 = vsub.f32 %v2849, %v2702
    %v2854 = vadd.f32 %v2853, %v2775
    %v2855 = vadd.f32 %v2852, %v2373
    %v2856 = vadd.f32 %v2854, %v2377
    %s2857 = smul.f32 %s2629, 0.5
    %s2858 = smul.f32 %s2381, 0.5
    %s2859 = sadd.f32 %s2857, %s2858
    %v2860 = vstv %s2381
    %v2861 = vrcp.pop %v2860
    %s2862 = vtos %v2861
    %s2863 = smul.f32 %s2859, %s2862
    %s2864 = smax.f32 %s2863, 1e-05
    %s2865 = smin.f32 %s2864, 0.99999
    %s2866 = ssub.f32 1.0, %s2865
    %v2867 = vstv %s2866
    %v2868 = vrcp.pop %v2867
    %s2869 = vtos %v2868
    %v2870 = vstv %s2865
    %v2871 = vmul.f32 %v2870, %v2373
    %v2872 = vsub.f32 %v2855, %v2871
    %v2873 = vstv %s2869
    %v2874 = vmul.f32 %v2872, %v2873
    %v2875 = vmul.f32 %v2870, %v2377
    %v2876 = vsub.f32 %v2856, %v2875
    %v2877 = vmul.f32 %v2876, %v2873
    %s2878 = smul.f32 %s2865, %s2869
    %s2879 = smul.f32 %s2878, %s2381
    %s2880 = smax.f32 %s2879, 1e-09
    %s2881 = smin.f32 %s2880, 100000.0
    %v2882 = vstv %s2881
    %v2883 = vrcp.pop %v2882
    %s2884 = vtos %v2883
    %v2885 = vstv %s2884
    %v2886 = vmul.f32 %v2874, %v2885
    %v2887 = vmul.f32 %v2877, %v2885
    %v2888 = vmul.f32 %v2887, 0.0
    %v2889 = vadd.f32 %v2886, %v2888
    %v2890 = vmul.f32 %v2886, -4.371139e-08
    %v2891 = vadd.f32 %v2890, %v2887
    %v2892 = vmul.f32 %v2886, -1.0
    %v2893 = vmul.f32 %v2887, -8.742278e-08
    %v2894 = vadd.f32 %v2892, %v2893
    %v2895 = vmul.f32 %v2886, 1.1924881e-08
    %v2896 = vmul.f32 %v2887, -1.0
    %v2897 = vadd.f32 %v2895, %v2896
    %v2898 = vand.u32 2147483647, %v2889
    %v2899 = vmax.f32 %v2898, 0.0
    %v2900 = vand.u32 2147483647, %v2891
    %v2901 = vmax.f32 %v2899, %v2900
    %2902 = vmax.xlane.f32.xlu0 %v2901
    %v2903 = vpop.xlane.xlu0 %2902
    %v2904 = vrot.slane %v2903, 4
    %v2905 = vmax.f32 %v2903, %v2904
    %v2906 = vrot.slane %v2905, 2
    %v2907 = vmax.f32 %v2905, %v2906
    %v2908 = vrot.slane %v2907, 1
    %v2909 = vmax.f32 %v2907, %v2908
    %s2910 = vtos %v2909
    %v2911 = vstv %s2910
    %v2912 = vsub.f32 %v2889, %v2911
    %v2913 = vmul.f32 %v2912, 1.442695
    %v2914 = vpow.pop %v2913
    %v2915 = vadd.f32 %v2914, 0.0
    %v2916 = vmul.f32 %v2914, 0.0
    %v2917 = vadd.f32 %v2916, 0.0
    %v2918 = vsub.f32 %v2891, %v2911
    %v2919 = vmul.f32 %v2918, 1.442695
    %v2920 = vpow.pop %v2919
    %v2921 = vadd.f32 %v2915, %v2920
    %v2922 = vmul.f32 %v2920, -4.371139e-08
    %v2923 = vadd.f32 %v2915, %v2922
    %v2924 = vadd.f32 %v2917, %v2920
    %v2925 = vsub.f32 %v2894, %v2911
    %v2926 = vmul.f32 %v2925, 1.442695
    %v2927 = vpow.pop %v2926
    %v2928 = vadd.f32 %v2921, %v2927
    %v2929 = vmul.f32 %v2927, -1.0
    %v2930 = vadd.f32 %v2923, %v2929
    %v2931 = vmul.f32 %v2927, -8.742278e-08
    %v2932 = vadd.f32 %v2924, %v2931
    %v2933 = vsub.f32 %v2897, %v2911
    %v2934 = vmul.f32 %v2933, 1.442695
    %v2935 = vpow.pop %v2934
    %v2936 = vadd.f32 %v2928, %v2935
    %v2937 = vmul.f32 %v2935, 1.1924881e-08
    %v2938 = vadd.f32 %v2930, %v2937
    %v2939 = vmul.f32 %v2935, -1.0
    %v2940 = vadd.f32 %v2932, %v2939
    %2941 = vmatprep.subr.mxu0 0.0
    %2942 = vmatpush1.msra.mxu0 %v61
    %2943 = vmatprep.subr.mxu0 0.0
    %2944 = vmatpush1.msra.mxu0 %v60
    %2945 = vmatprep.subr.mxu0 0.0
    %2946 = vmatpush1.msra.mxu0 %v59
    %2947 = vmatprep.subr.mxu0 0.0
    %2948 = vmatpush1.msra.mxu0 %v58
    %2949 = vmatprep.subr.mxu0 0.0
    %2950 = vmatpush1.msra.mxu0 %v57
    %2951 = vmatprep.subr.mxu0 0.0
    %2952 = vmatpush1.msra.mxu0 %v56
    %2953 = vmatprep.subr.mxu0 0.0
    %2954 = vmatpush1.msra.mxu0 %v55
    %2955 = vmatprep.subr.mxu0 0.0
    %2956 = vmatpush1.msra.mxu0 %v54
    %2957 = vmatprep.subr.mxu0 0.0
    %2958 = vmatpush1.msra.mxu0 %v53
    %2959 = vmatprep.subr.mxu0 0.0
    %2960 = vmatpush1.msra.mxu0 %v52
    %2961 = vmatprep.subr.mxu0 0.0
    %2962 = vmatpush1.msra.mxu0 %v51
    %2963 = vmatprep.subr.mxu0 0.0
    %2964 = vmatpush1.msra.mxu0 %v50
    %2965 = vmatprep.subr.mxu0 0.0
    %2966 = vmatpush1.msra.mxu0 %v49
    %2967 = vmatprep.subr.mxu0 0.0
    %2968 = vmatpush1.msra.mxu0 %v48
    %2969 = vmatprep.subr.mxu0 0.0
    %2970 = vmatpush1.msra.mxu0 %v47
    %2971 = vmatprep.subr.mxu0 0.0
    %2972 = vmatpush1.msra.mxu0 %v46
    %2973 = vmatprep.subr.mxu0 0.0
    %2974 = vmatpush2.msra.mxu0 0.0
    %2975 = vmatprep.subr.mxu0 0.0
    %2976 = vmatpush2.msra.mxu0 0.0
    %2977 = vmatprep.subr.mxu0 0.0
    %2978 = vmatpush2.msra.mxu0 0.0
    %2979 = vmatprep.subr.mxu0 0.0
    %2980 = vmatpush2.msra.mxu0 0.0
    %2981 = vmatprep.subr.mxu0 0.0
    %2982 = vmatpush2.msra.mxu0 0.0
    %2983 = vmatprep.subr.mxu0 0.0
    %2984 = vmatpush2.msra.mxu0 0.0
    %2985 = vmatprep.subr.mxu0 0.0
    %2986 = vmatpush2.msra.mxu0 0.0
    %2987 = vmatprep.subr.mxu0 0.0
    %2988 = vmatpush2.msra.mxu0 0.0
    %2989 = vmatprep.subr.mxu0 0.0
    %2990 = vmatpush2.msra.mxu0 0.0
    %2991 = vmatprep.subr.mxu0 0.0
    %2992 = vmatpush2.msra.mxu0 0.0
    %2993 = vmatprep.subr.mxu0 0.0
    %2994 = vmatpush2.msra.mxu0 0.0
    %2995 = vmatprep.subr.mxu0 0.0
    %2996 = vmatpush2.msra.mxu0 0.0
    %2997 = vmatprep.subr.mxu0 0.0
    %2998 = vmatpush2.msra.mxu0 0.0
    %2999 = vmatprep.subr.mxu0 0.0
    %3000 = vmatpush2.msra.mxu0 0.0
    %3001 = vmatprep.subr.mxu0 0.0
    %3002 = vmatpush2.msra.mxu0 0.0
    %3003 = vmatprep.subr.mxu0 0.0
    %3004 = vmatpush2.msra.mxu0 0.0
    %3005 = vmatprep.mubr.f32.mxu0 0.0
    %3006 = vmatmul.mubr.f32.gmra.mxu0 %v2936
    %v3007 = vpop.f32.mrf.mxu0
    %v3008 = vadd.f32 0.0, %v3007
    %v3009 = vpop.f32.mrf.mxu0
    %3010 = vdwg.mxu0
    %v3012 = vsel %vm691, %v3008, 0
    %3014 = vmatprep.subr.mxu0 0.0
    %3015 = vmatpush1.xpose.msra.mxu0 %v741
    %3016 = vmatprep.subr.mxu0 0.0
    %3017 = vmatpush1.xpose.msra.mxu0 %v738
    %3018 = vmatprep.subr.mxu0 0.0
    %3019 = vmatpush1.xpose.msra.mxu0 %v735
    %3020 = vmatprep.subr.mxu0 0.0
    %3021 = vmatpush1.xpose.msra.mxu0 %v732
    %3022 = vmatprep.subr.mxu0 0.0
    %3023 = vmatpush1.xpose.msra.mxu0 %v729
    %3024 = vmatprep.subr.mxu0 0.0
    %3025 = vmatpush1.xpose.msra.mxu0 %v726
    %3026 = vmatprep.subr.mxu0 0.0
    %3027 = vmatpush1.xpose.msra.mxu0 %v723
    %3028 = vmatprep.subr.mxu0 0.0
    %3029 = vmatpush1.xpose.msra.mxu0 %v720
    %3030 = vmatprep.subr.mxu0 0.0
    %3031 = vmatpush1.xpose.msra.mxu0 %v717
    %3032 = vmatprep.subr.mxu0 0.0
    %3033 = vmatpush1.xpose.msra.mxu0 %v714
    %3034 = vmatprep.subr.mxu0 0.0
    %3035 = vmatpush1.xpose.msra.mxu0 %v711
    %3036 = vmatprep.subr.mxu0 0.0
    %3037 = vmatpush1.xpose.msra.mxu0 %v708
    %3038 = vmatprep.subr.mxu0 0.0
    %3039 = vmatpush1.xpose.msra.mxu0 %v705
    %3040 = vmatprep.subr.mxu0 0.0
    %3041 = vmatpush1.xpose.msra.mxu0 %v702
    %3042 = vmatprep.subr.mxu0 0.0
    %3043 = vmatpush1.xpose.msra.mxu0 %v699
    %3044 = vmatprep.subr.mxu0 0.0
    %3045 = vmatpush1.xpose.msra.mxu0 %v696
    %3046 = vmatprep.subr.mxu0 0.0
    %3047 = vmatpush2.xpose.msra.mxu0 0.0
    %3048 = vmatprep.subr.mxu0 0.0
    %3049 = vmatpush2.xpose.msra.mxu0 0.0
    %3050 = vmatprep.subr.mxu0 0.0
    %3051 = vmatpush2.xpose.msra.mxu0 0.0
    %3052 = vmatprep.subr.mxu0 0.0
    %3053 = vmatpush2.xpose.msra.mxu0 0.0
    %3054 = vmatprep.subr.mxu0 0.0
    %3055 = vmatpush2.xpose.msra.mxu0 0.0
    %3056 = vmatprep.subr.mxu0 0.0
    %3057 = vmatpush2.xpose.msra.mxu0 0.0
    %3058 = vmatprep.subr.mxu0 0.0
    %3059 = vmatpush2.xpose.msra.mxu0 0.0
    %3060 = vmatprep.subr.mxu0 0.0
    %3061 = vmatpush2.xpose.msra.mxu0 0.0
    %3062 = vmatprep.subr.mxu0 0.0
    %3063 = vmatpush2.xpose.msra.mxu0 0.0
    %3064 = vmatprep.subr.mxu0 0.0
    %3065 = vmatpush2.xpose.msra.mxu0 0.0
    %3066 = vmatprep.subr.mxu0 0.0
    %3067 = vmatpush2.xpose.msra.mxu0 0.0
    %3068 = vmatprep.subr.mxu0 0.0
    %3069 = vmatpush2.xpose.msra.mxu0 0.0
    %3070 = vmatprep.subr.mxu0 0.0
    %3071 = vmatpush2.xpose.msra.mxu0 0.0
    %3072 = vmatprep.subr.mxu0 0.0
    %3073 = vmatpush2.xpose.msra.mxu0 0.0
    %3074 = vmatprep.subr.mxu0 0.0
    %3075 = vmatpush2.xpose.msra.mxu0 0.0
    %3076 = vmatprep.subr.mxu0 0.0
    %3077 = vmatpush2.xpose.msra.mxu0 0.0
    %3078 = vmatprep.mubr.f32.mxu0 0.0
    %3079 = vmatmul.mubr.f32.gmra.mxu0 %v3012
    %v3080 = vpop.f32.mrf.mxu0
    %v3081 = vadd.f32 0.0, %v3080
    %v3082 = vpop.f32.mrf.mxu0
    %3083 = vdwg.mxu0
    %v3084 = vmax.f32 %v3081, 1e-30
    %v3085 = vrcp.pop %v3084
    %v3086 = vmul.f32 1.0, %v3085
    %v3087 = vmul.f32 %v2938, %v3086
    %v3088 = vmul.f32 %v2940, %v3086
    %v3089 = vmul.f32 %v3087, %v3087
    %v3090 = vmul.f32 %v3088, %v3088
    %v3091 = vadd.f32 %v3089, %v3090
    %v3092 = vmul.f32 %v2936, %v3086
    %v3093 = vsub.f32 1.0, %v3092
    %v3094 = vmul.f32 %v3091, %v3093
    %v3095 = vmul.f32 %v3091, %v2936
    %v3096 = vmul.f32 %v3087, %v2938
    %v3097 = vmul.f32 %v3088, %v2940
    %v3098 = vadd.f32 %v3096, %v3097
    %v3099 = vmul.f32 %v3098, 2.0
    %v3100 = vsub.f32 %v3095, %v3099
    %v3101 = vadd.f32 %v3100, %v2936
    %v3102 = vmul.f32 %v3101, %v3086
    %v3103 = vadd.f32 %v3094, %v3102
    %v3104 = vmul.f32 %v3103, %v42
    %3105 = vadd.xlane.f32.xlu0 %v3104
    %v3106 = vpop.xlane.xlu0 %3105
    %v3107 = vrot.slane %v3106, 4
    %v3108 = vadd.f32 %v3106, %v3107
    %v3109 = vrot.slane %v3108, 2
    %v3110 = vadd.f32 %v3108, %v3109
    %v3111 = vrot.slane %v3110, 1
    %v3112 = vadd.f32 %v3110, %v3111
    %s3113 = vtos %v3112
    %s3114 = smul.f32 %s3113, 0.03125
    %v3115 = vstv %s2881
    %v3116 = vrcp.pop %v3115
    %s3117 = vtos %v3116
    %s3118 = smul.f32 %s3114, %s3117
    %s3119 = smax.f32 %s3118, 1e-05
    %s3120 = smin.f32 %s3119, 0.99999
    %s3121 = ssub.f32 1.0, %s3120
    %v3122 = vstv %s3121
    %v3123 = vrcp.pop %v3122
    %s3124 = vtos %v3123
    %s3125 = smul.f32 %s2881, %s3120
    %s3126 = smul.f32 %s3125, %s3124
    %s3127 = smax.f32 %s3126, 1e-09
    %s3128 = smin.f32 %s3127, 100000.0
    %v3129 = vmul.f32 %v3087, %v42
    %v3130 = vmul.f32 %v3088, %v42
    %v3131 = vmul.f32 %v2874, %v42
    %v3132 = vmul.f32 %v2877, %v42
    %3133 = vst [vmem:[#allocation2] sm:$0xff] %v3129
    %3134 = vst [vmem:[#allocation4] sm:$0xff] %v3130
    %3135 = vst [vmem:[#allocation6] sm:$0xff] %v3104
    %3136 = vst [vmem:[#allocation7] sm:$0xff] %v3131
    %3137 = vst [vmem:[#allocation9] sm:$0xff] %v3132
    %v3138 = vstv %s3128
    %vm3139 = vcmask 0
    %3140 = vst.msk [vmem:[#allocation10] sm:$0x1] %vm3139, %v3138
    // Predicated region
    $region38: #{tpu_custom_call.1} parent=1 // pred_check
      _
    $region39: #{tpu_custom_call.1} parent=1 // pred_check_branch
      %3142 = sbr.rel (0) target = $region41
    $region40: #{tpu_custom_call.1} parent=1 // pred_region
      %s3144 = ssub.s32 128, 128
      %3145 = vsyncadd [#allocation3], %s3144
      %s3147 = sshll.u32 [#allocation2], 4
      %s3148 = int_to_ptr.vmem [resolvable:$true] %s3147
      %3150 = dma.vmem_to_hbm [thread:$0]  %s3148, 128, %s9, [#allocation3]
    $region41: #{tpu_custom_call.1} parent=1 // pred_fallthru
      _
    // Predicated region
    $region42: #{tpu_custom_call.1} parent=1 // pred_check
      _
    $region43: #{tpu_custom_call.1} parent=1 // pred_check_branch
      %3152 = sbr.rel (0) target = $region45
    $region44: #{tpu_custom_call.1} parent=1 // pred_region
      %s3154 = ssub.s32 128, 128
      %3155 = vsyncadd [#allocation5], %s3154
      %s3157 = sshll.u32 [#allocation4], 4
      %s3158 = int_to_ptr.vmem [resolvable:$true] %s3157
      %3160 = dma.vmem_to_hbm [thread:$0]  %s3158, 128, %s10, [#allocation5]
    $region45: #{tpu_custom_call.1} parent=1 // pred_fallthru
      _
    // Predicated region
    $region46: #{tpu_custom_call.1} parent=1 // pred_check
      _
    $region47: #{tpu_custom_call.1} parent=1 // pred_check_branch
      %3162 = sbr.rel (0) target = $region49
    $region48: #{tpu_custom_call.1} parent=1 // pred_region
      %s3164 = ssub.s32 128, 128
      %3165 = vsyncadd [#allocation5], %s3164
      %s3167 = sshll.u32 [#allocation6], 4
      %s3168 = int_to_ptr.vmem [resolvable:$true] %s3167
      %3170 = dma.vmem_to_hbm [thread:$0]  %s3168, 128, %s11, [#allocation5]
    $region49: #{tpu_custom_call.1} parent=1 // pred_fallthru
      _
    // Predicated region
    $region50: #{tpu_custom_call.1} parent=1 // pred_check
      _
    $region51: #{tpu_custom_call.1} parent=1 // pred_check_branch
      %3172 = sbr.rel (0) target = $region53
    $region52: #{tpu_custom_call.1} parent=1 // pred_region
      %s3174 = ssub.s32 128, 128
      %3175 = vsyncadd [#allocation8], %s3174
      %s3177 = sshll.u32 [#allocation7], 4
      %s3178 = int_to_ptr.vmem [resolvable:$true] %s3177
      %3180 = dma.vmem_to_hbm [thread:$0]  %s3178, 128, %s12, [#allocation8]
    $region53: #{tpu_custom_call.1} parent=1 // pred_fallthru
      _
    // Predicated region
    $region54: #{tpu_custom_call.1} parent=1 // pred_check
      _
    $region55: #{tpu_custom_call.1} parent=1 // pred_check_branch
      %3182 = sbr.rel (0) target = $region57
    $region56: #{tpu_custom_call.1} parent=1 // pred_region
      %s3184 = ssub.s32 128, 128
      %3185 = vsyncadd [#allocation8], %s3184
      %s3187 = sshll.u32 [#allocation9], 4
      %s3188 = int_to_ptr.vmem [resolvable:$true] %s3187
      %3190 = dma.vmem_to_hbm [thread:$0]  %s3188, 128, %s13, [#allocation8]
    $region57: #{tpu_custom_call.1} parent=1 // pred_fallthru
      _
    // Predicated region
    $region58: #{tpu_custom_call.1} parent=1 // pred_check
      _
    $region59: #{tpu_custom_call.1} parent=1 // pred_check_branch
      %3192 = sbr.rel (0) target = $region61
    $region60: #{tpu_custom_call.1} parent=1 // pred_region
      %s3194 = ssub.s32 16, 16
      %3195 = vsyncadd [#allocation11], %s3194
      %s3197 = sshll.u32 [#allocation10], 4
      %s3198 = int_to_ptr.vmem [resolvable:$true] %s3197
      %3200 = dma.vmem_to_hbm [thread:$0]  %s3198, 16, %s14, [#allocation11]
    $region61: #{tpu_custom_call.1} parent=1 // pred_fallthru
      _
    // Predicated region
    $region62: #{tpu_custom_call.1} parent=1 // pred_check
      _
    $region63: #{tpu_custom_call.1} parent=1 // pred_check_branch
      %3202 = sbr.rel (0) target = $region65
    $region64: #{tpu_custom_call.1} parent=1 // pred_region
      %3203 = dma.done [#allocation3], 128
    $region65: #{tpu_custom_call.1} parent=1 // pred_fallthru
      _
    // Predicated region
    $region66: #{tpu_custom_call.1} parent=1 // pred_check
      _
    $region67: #{tpu_custom_call.1} parent=1 // pred_check_branch
      %3205 = sbr.rel (0) target = $region69
    $region68: #{tpu_custom_call.1} parent=1 // pred_region
      %3206 = dma.done [#allocation5], 128
    $region69: #{tpu_custom_call.1} parent=1 // pred_fallthru
      _
    // Predicated region
    $region70: #{tpu_custom_call.1} parent=1 // pred_check
      _
    $region71: #{tpu_custom_call.1} parent=1 // pred_check_branch
      %3208 = sbr.rel (0) target = $region73
    $region72: #{tpu_custom_call.1} parent=1 // pred_region
      %3209 = dma.done [#allocation5], 128
    $region73: #{tpu_custom_call.1} parent=1 // pred_fallthru
      _
    // Predicated region
    $region74: #{tpu_custom_call.1} parent=1 // pred_check
      _
    $region75: #{tpu_custom_call.1} parent=1 // pred_check_branch
      %3211 = sbr.rel (0) target = $region77
    $region76: #{tpu_custom_call.1} parent=1 // pred_region
      %3212 = dma.done [#allocation8], 128
    $region77: #{tpu_custom_call.1} parent=1 // pred_fallthru
      _
    // Predicated region
    $region78: #{tpu_custom_call.1} parent=1 // pred_check
      _
    $region79: #{tpu_custom_call.1} parent=1 // pred_check_branch
      %3214 = sbr.rel (0) target = $region81
    $region80: #{tpu_custom_call.1} parent=1 // pred_region
      %3215 = dma.done [#allocation8], 128
    $region81: #{tpu_custom_call.1} parent=1 // pred_fallthru
      _
    // Predicated region
    $region82: #{tpu_custom_call.1} parent=1 // pred_check
      _
    $region83: #{tpu_custom_call.1} parent=1 // pred_check_branch
      %3217 = sbr.rel (0) target = $region85
    $region84: #{tpu_custom_call.1} parent=1 // pred_region
      %3218 = dma.done [#allocation11], 16
    $region85: #{tpu_custom_call.1} parent=1 // pred_fallthru
      _
    %3219 = vsyncpa [#allocation3], 1
    %3220 = vsyncpa [#allocation5], 1
    %3221 = vsyncpa [#allocation8], 1
    %3222 = vsyncpa [#allocation11], 1

</llo_original>
